<compile_context>
chip_gen: v5e
topology: v5e:2x2
jax: 0.10.0
libtpu: 0.0.40
codegen_flags: <defaults>
</compile_context>

<pallas_src>
import functools

import numpy as np
import jax
import jax.numpy as jnp
from jax.experimental import pallas as pl
from jax.experimental.pallas import tpu as pltpu

EPS = 1e-5  # PyTorch LayerNorm default eps


def _layernorm(x, g, b):
    mean = jnp.mean(x, axis=-1, keepdims=True)
    var = jnp.mean(jnp.square(x - mean), axis=-1, keepdims=True)
    return (x - mean) * jax.lax.rsqrt(var + EPS) * g + b


def selfatt_dec_kernel(x_ref, mask_ref,
                       ln1_g_ref, ln1_b_ref,
                       wqkv_ref, bqkv_ref,
                       wo_h_ref, bo_ref,
                       w1_ref, b1_ref, w2_ref, b2_ref,
                       ln2_g_ref, ln2_b_ref,
                       o_ref, *, head_num, block_rows, time_steps):
    BB, T = block_rows, time_steps
    x = x_ref[...]                                # (BB*T, D) f32
    R, D = x.shape
    hd = D // head_num
    scale = 1.0 / (hd ** 0.5)
    bf16 = jnp.bfloat16

    # --- pre-attention LayerNorm (f32) ---
    xn = _layernorm(x, ln1_g_ref[0], ln1_b_ref[0])

    # --- fused QKV projection: one (R, D) @ (D, 3D) MXU pass, bf16 operands ---
    qkv = jnp.dot(xn.astype(bf16), wqkv_ref[...],
                  preferred_element_type=jnp.float32) + bqkv_ref[0]     # (R, 3D)

    mask_add = mask_ref[...]                      # (BB, 1, T) additive key-padding mask

    # --- attention: static head loop, rows batched in 3-D einsums ---
    # Per-head context goes straight through its out-projection slice and is
    # accumulated, avoiding a lane-wise concat of heads.
    att = jnp.zeros((R, D), jnp.float32)
    for h in range(head_num):
        o_q = h * hd
        o_k = D + h * hd
        o_v = 2 * D + h * hd
        qh = (qkv[:, o_q:o_q + hd] * scale).reshape(BB, T, hd).astype(bf16)
        kh = qkv[:, o_k:o_k + hd].reshape(BB, T, hd).astype(bf16)
        vh = qkv[:, o_v:o_v + hd].reshape(BB, T, hd).astype(bf16)

        s = jnp.einsum('bqd,bkd->bqk', qh, kh,
                       preferred_element_type=jnp.float32) + mask_add   # (BB, T, T)
        m = jnp.max(s, axis=-1, keepdims=True)
        p = jnp.exp(s - m)
        denom = jnp.sum(p, axis=-1, keepdims=True)
        # NOTE: an all-padded row gives denom == 0 -> NaN, matching PyTorch.
        ctx = jnp.einsum('bqk,bkd->bqd', p.astype(bf16), vh,
                         preferred_element_type=jnp.float32)
        ctx = ctx * pl.reciprocal(denom, approx=True)   # deferred softmax norm (EUP)

        att = att + jnp.dot(ctx.reshape(R, hd).astype(bf16), wo_h_ref[h],
                            preferred_element_type=jnp.float32)
    att = att + bo_ref[0]

    # --- residual + FFN (Linear+ReLU twice) + final LayerNorm ---
    s_ = att + x
    f1 = jnp.maximum(jnp.dot(s_.astype(bf16), w1_ref[...],
                             preferred_element_type=jnp.float32) + b1_ref[0], 0.0)
    f2 = jnp.maximum(jnp.dot(f1.astype(bf16), w2_ref[...],
                             preferred_element_type=jnp.float32) + b2_ref[0], 0.0)
    o_ref[...] = _layernorm(f2, ln2_g_ref[0], ln2_b_ref[0]).astype(o_ref.dtype)


def _choose_block_rows(B, T, D, kD, vmem_budget=24 * 1024 * 1024):
    """Largest BB (batch rows per grid step) that divides B, keeps BB*T
    sublane-aligned, fits a conservative VMEM budget, and keeps >= 2 grid
    steps where possible (so the parallel axis can shard across cores)."""
    def footprint(bb):
        rows = bb * T
        f32 = 4
        act = rows * (2 * D + 3 * D + 3 * D + kD + D) * f32     # x, xn, qkv, f1, out
        attn = bb * T * T * 3 * f32 + rows * D * f32            # scores/p + ctx/att
        io = 2 * 2 * rows * D * f32                              # double-buffered x/out
        return act + attn + io

    cands = [bb for bb in range(1, B + 1)
             if B % bb == 0 and ((bb * T) % 8 == 0 or bb == B)]
    fitting = [bb for bb in cands if footprint(bb) <= vmem_budget]
    if not fitting:
        return min(cands)
    multi = [bb for bb in fitting if B // bb >= 2]
    return max(multi) if multi else max(fitting)


def self_att_layer_dec(x, padding_mask, params, head_num):
    """x: (F, A, T, D) float32; padding_mask: (A, T) bool (True = padded key)."""
    Fdim, A, T, D = x.shape
    assert D % head_num == 0
    B = Fdim * A
    hd = D // head_num
    kD = params['w1'].shape[1]

    BB = _choose_block_rows(B, T, D, kD)
    grid = B // BB

    x2 = x.reshape(B * T, D)

    # key_padding_mask = padding_mask.repeat(F, 1): row b (= f*A + a) uses padding_mask[a]
    mask_add = jnp.where(padding_mask, jnp.float32(-1e30), jnp.float32(0.0))
    mask_add = jnp.tile(mask_add, (Fdim, 1)).reshape(B, 1, T)

    bf16 = jnp.bfloat16
    # fused QKV weight/bias; per-head split of the out-projection weight
    w_qkv = jnp.concatenate([params['wq'], params['wk'], params['wv']], axis=1).astype(bf16)
    b_qkv = jnp.concatenate([params['bq'], params['bk'], params['bv']], axis=1)
    wo_heads = params['wo'].reshape(head_num, hd, D).astype(bf16)
    w1 = params['w1'].astype(bf16)
    w2 = params['w2'].astype(bf16)

    weights = [
        params['ln1_g'], params['ln1_b'],
        w_qkv, b_qkv,
        wo_heads, params['bo'],
        w1, params['b1'], w2, params['b2'],
        params['ln2_g'], params['ln2_b'],
    ]

    def build(single_buffer_weights):
        def weight_spec(w):
            nd = w.ndim
            if single_buffer_weights:
                return pl.BlockSpec(w.shape, lambda i, _n=nd: (0,) * _n,
                                    pipeline_mode=pl.Buffered(1))
            return pl.BlockSpec(w.shape, lambda i, _n=nd: (0,) * _n)

        in_specs = [
            pl.BlockSpec((BB * T, D), lambda i: (i, 0)),      # x rows (tall 2-D slab)
            pl.BlockSpec((BB, 1, T), lambda i: (i, 0, 0)),    # additive mask rows
        ] + [weight_spec(w) for w in weights]

        return pl.pallas_call(
            functools.partial(selfatt_dec_kernel, head_num=head_num,
                              block_rows=BB, time_steps=T),
            out_shape=jax.ShapeDtypeStruct((B * T, D), jnp.float32),
            grid_spec=pltpu.PrefetchScalarGridSpec(
                num_scalar_prefetch=0,
                grid=(grid,),
                in_specs=in_specs,
                out_specs=pl.BlockSpec((BB * T, D), lambda i: (i, 0)),
            ),
            compiler_params=pltpu.CompilerParams(
                dimension_semantics=("parallel",),
                vmem_limit_bytes=32 * 1024 * 1024,
            ),
        )

    try:
        out = build(True)(x2, mask_add, *weights)
    except Exception:
        # pl.Buffered(1) single-buffering not supported by this jax version:
        # fall back to default double-buffered weight blocks.
        out = build(False)(x2, mask_add, *weights)
    return out.reshape(Fdim, A, T, D)


def init_params(key, D, head_num, k):
    """Deterministic synthetic parameters matching the PyTorch module shapes."""
    ks = jax.random.split(key, 8)

    def u(kk, shape, fan_in):
        bound = 1.0 / np.sqrt(fan_in)
        return jax.random.uniform(kk, shape, jnp.float32, -bound, bound)

    in_proj_w = u(ks[0], (3 * D, D), D)     # nn.MultiheadAttention.in_proj_weight
    in_proj_b = u(ks[1], (3 * D,), D)
    out_w = u(ks[2], (D, D), D)             # out_proj.weight
    out_b = u(ks[3], (D,), D)
    w1 = u(ks[4], (k * D, D), D)            # layer_F1_ Linear(D, k*D).weight
    b1 = u(ks[5], (k * D,), D)
    w2 = u(ks[6], (D, k * D), k * D)        # layer_F2_ Linear(k*D, D).weight
    b2 = u(ks[7], (D,), k * D)

    return dict(
        ln1_g=jnp.ones((1, D), jnp.float32), ln1_b=jnp.zeros((1, D), jnp.float32),
        wq=in_proj_w[:D].T, bq=in_proj_b[:D].reshape(1, D),
        wk=in_proj_w[D:2 * D].T, bk=in_proj_b[D:2 * D].reshape(1, D),
        wv=in_proj_w[2 * D:].T, bv=in_proj_b[2 * D:].reshape(1, D),
        wo=out_w.T, bo=out_b.reshape(1, D),
        w1=w1.T, b1=b1.reshape(1, k * D),
        w2=w2.T, b2=b2.reshape(1, D),
        ln2_g=jnp.ones((1, D), jnp.float32), ln2_b=jnp.zeros((1, D), jnp.float32),
    )


def ref_forward(x, padding_mask, params, head_num):
    """Pure-JAX (f32) reference of the PyTorch forward (across_time=True)."""
    Fdim, A, T, D = x.shape
    B = Fdim * A
    hd = D // head_num
    xb = x.reshape(B, T, D)

    def ln(v, g, b):
        mu = jnp.mean(v, -1, keepdims=True)
        var = jnp.mean(jnp.square(v - mu), -1, keepdims=True)
        return (v - mu) * jax.lax.rsqrt(var + EPS) * g + b

    xn = ln(xb, params['ln1_g'][0], params['ln1_b'][0])
    q = xn @ params['wq'] + params['bq'][0]
    k = xn @ params['wk'] + params['bk'][0]
    v = xn @ params['wv'] + params['bv'][0]
    qh = q.reshape(B, T, head_num, hd).transpose(0, 2, 1, 3)
    kh = k.reshape(B, T, head_num, hd).transpose(0, 2, 1, 3)
    vh = v.reshape(B, T, head_num, hd).transpose(0, 2, 1, 3)
    scores = jnp.einsum('bhqd,bhkd->bhqk', qh, kh) / np.sqrt(hd)
    mask_add = jnp.where(padding_mask, -1e30, 0.0).astype(jnp.float32)
    mask_add = jnp.tile(mask_add, (Fdim, 1))[:, None, None, :]
    scores = scores + mask_add
    p = jax.nn.softmax(scores, axis=-1)
    ctx = jnp.einsum('bhqk,bhkd->bhqd', p, vh).transpose(0, 2, 1, 3).reshape(B, T, D)
    att = ctx @ params['wo'] + params['bo'][0]
    s_ = att + xb
    f1 = jax.nn.relu(s_ @ params['w1'] + params['b1'][0])
    f2 = jax.nn.relu(f1 @ params['w2'] + params['b2'][0])
    z = ln(f2, params['ln2_g'][0], params['ln2_b'][0])
    return z.reshape(Fdim, A, T, D)


if __name__ == "__main__":
    # small shapes consistent with the module: x (F, A, T, D)
    Fdim, A, T, D, H, K = 2, 3, 8, 32, 4, 4
    key = jax.random.PRNGKey(0)
    kx, kp, km, kb = jax.random.split(key, 4)

    x = jax.random.normal(kx, (Fdim, A, T, D), jnp.float32)
    padding_mask = jax.random.bernoulli(km, 0.3, (A, T))
    padding_mask = padding_mask.at[:, 0].set(False)       # keep >=1 valid key per row
    batch_mask = jax.random.bernoulli(kb, 0.5, (A, A))
    # batch_mask is only consumed by the across_time=False branch (attn_mask);
    # it is unused when across_time=True, exactly as in the PyTorch forward.

    params = init_params(kp, D, H, K)

    out = self_att_layer_dec(x, padding_mask, params, H)
    out = jax.block_until_ready(out)

    ref = ref_forward(x, padding_mask, params, H)
    assert out.shape == (Fdim, A, T, D)
    # tolerance loosened vs f32 reference because matmul operands are bf16 in-kernel
    np.testing.assert_allclose(np.asarray(out), np.asarray(ref), atol=5e-2, rtol=5e-2)
    print("KERNEL_OK")
</pallas_src>

<mosaic_0001>
module attributes {stable_mosaic.version = 11 : i64} {
  func.func @selfatt_dec_kernel(%arg0: i32, %arg1: memref<24x32xf32, #tpu.memory_space<vmem>>, %arg2: memref<3x1x8xf32, #tpu.memory_space<vmem>>, %arg3: memref<1x32xf32, #tpu.memory_space<vmem>>, %arg4: memref<1x32xf32, #tpu.memory_space<vmem>>, %arg5: memref<32x96xbf16, #tpu.memory_space<vmem>>, %arg6: memref<1x96xf32, #tpu.memory_space<vmem>>, %arg7: memref<4x8x32xbf16, #tpu.memory_space<vmem>>, %arg8: memref<1x32xf32, #tpu.memory_space<vmem>>, %arg9: memref<32x128xbf16, #tpu.memory_space<vmem>>, %arg10: memref<1x128xf32, #tpu.memory_space<vmem>>, %arg11: memref<128x32xbf16, #tpu.memory_space<vmem>>, %arg12: memref<1x32xf32, #tpu.memory_space<vmem>>, %arg13: memref<1x32xf32, #tpu.memory_space<vmem>>, %arg14: memref<1x32xf32, #tpu.memory_space<vmem>>, %arg15: memref<24x32xf32, #tpu.memory_space<vmem>>) attributes {dimension_semantics = [#tpu.dimension_semantics<parallel>], iteration_bounds = array<i64: 2>, scalar_prefetch = 0 : i64, scratch_operands = 0 : i64, tpu.core_type = #tpu.core_type<tc>, window_params = [{transform_indices = @transform_0, window_bounds = array<i64: 24, 32>}, {transform_indices = @transform_1, window_bounds = array<i64: 3, 1, 8>}, {pipeline_mode = #tpu.pipeline_mode<synchronous>, transform_indices = @transform_2, window_bounds = array<i64: 1, 32>}, {pipeline_mode = #tpu.pipeline_mode<synchronous>, transform_indices = @transform_3, window_bounds = array<i64: 1, 32>}, {pipeline_mode = #tpu.pipeline_mode<synchronous>, transform_indices = @transform_4, window_bounds = array<i64: 32, 96>}, {pipeline_mode = #tpu.pipeline_mode<synchronous>, transform_indices = @transform_5, window_bounds = array<i64: 1, 96>}, {pipeline_mode = #tpu.pipeline_mode<synchronous>, transform_indices = @transform_6, window_bounds = array<i64: 4, 8, 32>}, {pipeline_mode = #tpu.pipeline_mode<synchronous>, transform_indices = @transform_7, window_bounds = array<i64: 1, 32>}, {pipeline_mode = #tpu.pipeline_mode<synchronous>, transform_indices = @transform_8, window_bounds = array<i64: 32, 128>}, {pipeline_mode = #tpu.pipeline_mode<synchronous>, transform_indices = @transform_9, window_bounds = array<i64: 1, 128>}, {pipeline_mode = #tpu.pipeline_mode<synchronous>, transform_indices = @transform_10, window_bounds = array<i64: 128, 32>}, {pipeline_mode = #tpu.pipeline_mode<synchronous>, transform_indices = @transform_11, window_bounds = array<i64: 1, 32>}, {pipeline_mode = #tpu.pipeline_mode<synchronous>, transform_indices = @transform_12, window_bounds = array<i64: 1, 32>}, {pipeline_mode = #tpu.pipeline_mode<synchronous>, transform_indices = @transform_13, window_bounds = array<i64: 1, 32>}, {transform_indices = @transform_14, window_bounds = array<i64: 24, 32>}]} {
    %c0 = arith.constant 0 : index
    %c0_0 = arith.constant 0 : index
    %0 = vector.load %arg1[%c0, %c0_0] : memref<24x32xf32, #tpu.memory_space<vmem>>, vector<24x32xf32>
    %c0_1 = arith.constant 0 : index
    %c0_2 = arith.constant 0 : index
    %1 = vector.load %arg3[%c0_1, %c0_2] : memref<1x32xf32, #tpu.memory_space<vmem>>, vector<1x32xf32>
    %2 = vector.shape_cast %1 : vector<1x32xf32> to vector<32xf32>
    %c0_3 = arith.constant 0 : index
    %c0_4 = arith.constant 0 : index
    %3 = vector.load %arg4[%c0_3, %c0_4] : memref<1x32xf32, #tpu.memory_space<vmem>>, vector<1x32xf32>
    %4 = vector.shape_cast %3 : vector<1x32xf32> to vector<32xf32>
    %cst = arith.constant dense<0.000000e+00> : vector<24xf32>
    %5 = vector.multi_reduction <add>, %0, %cst [1] : vector<24x32xf32> to vector<24xf32>
    %6 = vector.shape_cast %5 : vector<24xf32> to vector<24x1xf32>
    %cst_5 = arith.constant 3.200000e+01 : f32
    %7 = vector.broadcast %cst_5 : f32 to vector<24x1xf32>
    %8 = arith.divf %6, %7 : vector<24x1xf32>
    %9 = vector.broadcast %8 : vector<24x1xf32> to vector<24x32xf32>
    %10 = arith.subf %0, %9 : vector<24x32xf32>
    %11 = arith.mulf %10, %10 : vector<24x32xf32>
    %cst_6 = arith.constant dense<0.000000e+00> : vector<24xf32>
    %12 = vector.multi_reduction <add>, %11, %cst_6 [1] : vector<24x32xf32> to vector<24xf32>
    %13 = vector.shape_cast %12 : vector<24xf32> to vector<24x1xf32>
    %cst_7 = arith.constant 3.200000e+01 : f32
    %14 = vector.broadcast %cst_7 : f32 to vector<24x1xf32>
    %15 = arith.divf %13, %14 : vector<24x1xf32>
    %16 = vector.broadcast %8 : vector<24x1xf32> to vector<24x32xf32>
    %17 = arith.subf %0, %16 : vector<24x32xf32>
    %cst_8 = arith.constant 9.99999974E-6 : f32
    %18 = vector.broadcast %cst_8 : f32 to vector<24x1xf32>
    %19 = arith.addf %15, %18 : vector<24x1xf32>
    %20 = math.rsqrt %19 : vector<24x1xf32>
    %21 = vector.broadcast %20 : vector<24x1xf32> to vector<24x32xf32>
    %22 = arith.mulf %17, %21 : vector<24x32xf32>
    %23 = vector.shape_cast %2 : vector<32xf32> to vector<1x32xf32>
    %24 = vector.broadcast %23 : vector<1x32xf32> to vector<24x32xf32>
    %25 = arith.mulf %22, %24 : vector<24x32xf32>
    %26 = vector.shape_cast %4 : vector<32xf32> to vector<1x32xf32>
    %27 = vector.broadcast %26 : vector<1x32xf32> to vector<24x32xf32>
    %28 = arith.addf %25, %27 : vector<24x32xf32>
    %29 = arith.truncf %28 : vector<24x32xf32> to vector<24x32xbf16>
    %c0_9 = arith.constant 0 : index
    %c0_10 = arith.constant 0 : index
    %30 = vector.load %arg5[%c0_9, %c0_10] : memref<32x96xbf16, #tpu.memory_space<vmem>>, vector<32x96xbf16>
    %cst_11 = arith.constant dense<0.000000e+00> : vector<24x96xf32>
    %31 = tpu.matmul %29, %30, %cst_11 {dimension_numbers = #tpu.dot_dimension_numbers<[1], [0], [0], [1], [0, 0, 1, 1], [], []>} : vector<24x32xbf16>, vector<32x96xbf16>, vector<24x96xf32> -> vector<24x96xf32>
    %c0_12 = arith.constant 0 : index
    %c0_13 = arith.constant 0 : index
    %32 = vector.load %arg6[%c0_12, %c0_13] : memref<1x96xf32, #tpu.memory_space<vmem>>, vector<1x96xf32>
    %33 = vector.shape_cast %32 : vector<1x96xf32> to vector<96xf32>
    %34 = vector.shape_cast %33 : vector<96xf32> to vector<1x96xf32>
    %35 = vector.broadcast %34 : vector<1x96xf32> to vector<24x96xf32>
    %36 = arith.addf %31, %35 : vector<24x96xf32>
    %c0_14 = arith.constant 0 : index
    %c0_15 = arith.constant 0 : index
    %c0_16 = arith.constant 0 : index
    %37 = vector.load %arg2[%c0_14, %c0_15, %c0_16] : memref<3x1x8xf32, #tpu.memory_space<vmem>>, vector<3x1x8xf32>
    %cst_17 = arith.constant 0.000000e+00 : f32
    %38 = vector.broadcast %cst_17 : f32 to vector<24x32xf32>
    %39 = vector.extract_strided_slice %36 {offsets = [0, 0], sizes = [24, 8], strides = [1, 1]} : vector<24x96xf32> to vector<24x8xf32>
    %cst_18 = arith.constant 0.353553385 : f32
    %40 = vector.broadcast %cst_18 : f32 to vector<24x8xf32>
    %41 = arith.mulf %39, %40 : vector<24x8xf32>
    %42 = vector.shape_cast %41 : vector<24x8xf32> to vector<3x8x8xf32>
    %43 = arith.truncf %42 : vector<3x8x8xf32> to vector<3x8x8xbf16>
    %44 = vector.extract_strided_slice %36 {offsets = [0, 32], sizes = [24, 8], strides = [1, 1]} : vector<24x96xf32> to vector<24x8xf32>
    %45 = vector.shape_cast %44 : vector<24x8xf32> to vector<3x8x8xf32>
    %46 = arith.truncf %45 : vector<3x8x8xf32> to vector<3x8x8xbf16>
    %47 = vector.extract_strided_slice %36 {offsets = [0, 64], sizes = [24, 8], strides = [1, 1]} : vector<24x96xf32> to vector<24x8xf32>
    %48 = vector.shape_cast %47 : vector<24x8xf32> to vector<3x8x8xf32>
    %49 = arith.truncf %48 : vector<3x8x8xf32> to vector<3x8x8xbf16>
    "tpu.trace_start"() <{level = 10 : i32, message = "bqd,bkd->bqk"}> : () -> ()
    %cst_19 = arith.constant dense<0.000000e+00> : vector<3x8x8xf32>
    %50 = tpu.matmul %43, %46, %cst_19 {dimension_numbers = #tpu.dot_dimension_numbers<[2], [2], [1], [1], [0, 0, 0, 1, 1, 1], [0], [0]>} : vector<3x8x8xbf16>, vector<3x8x8xbf16>, vector<3x8x8xf32> -> vector<3x8x8xf32>
    "tpu.trace_stop"() : () -> ()
    %51 = vector.broadcast %37 : vector<3x1x8xf32> to vector<3x8x8xf32>
    %52 = arith.addf %50, %51 : vector<3x8x8xf32>
    %cst_20 = arith.constant dense<0xFF800000> : vector<3x8xf32>
    %53 = vector.multi_reduction <maximumf>, %52, %cst_20 [2] : vector<3x8x8xf32> to vector<3x8xf32>
    %54 = vector.shape_cast %53 : vector<3x8xf32> to vector<3x8x1xf32>
    %55 = vector.broadcast %54 : vector<3x8x1xf32> to vector<3x8x8xf32>
    %56 = arith.subf %52, %55 : vector<3x8x8xf32>
    %57 = math.exp %56 : vector<3x8x8xf32>
    %cst_21 = arith.constant dense<0.000000e+00> : vector<3x8xf32>
    %58 = vector.multi_reduction <add>, %57, %cst_21 [2] : vector<3x8x8xf32> to vector<3x8xf32>
    %59 = vector.shape_cast %58 : vector<3x8xf32> to vector<3x8x1xf32>
    %60 = arith.truncf %57 : vector<3x8x8xf32> to vector<3x8x8xbf16>
    "tpu.trace_start"() <{level = 10 : i32, message = "bqk,bkd->bqd"}> : () -> ()
    %cst_22 = arith.constant dense<0.000000e+00> : vector<3x8x8xf32>
    %61 = tpu.matmul %60, %49, %cst_22 {dimension_numbers = #tpu.dot_dimension_numbers<[2], [1], [1], [2], [0, 0, 0, 1, 1, 2], [0], [0]>} : vector<3x8x8xbf16>, vector<3x8x8xbf16>, vector<3x8x8xf32> -> vector<3x8x8xf32>
    "tpu.trace_stop"() : () -> ()
    %62 = tpu.reciprocal %59 {approx = true} : vector<3x8x1xf32> -> vector<3x8x1xf32>
    %63 = vector.broadcast %62 : vector<3x8x1xf32> to vector<3x8x8xf32>
    %64 = arith.mulf %61, %63 : vector<3x8x8xf32>
    %65 = vector.shape_cast %64 : vector<3x8x8xf32> to vector<24x8xf32>
    %66 = arith.truncf %65 : vector<24x8xf32> to vector<24x8xbf16>
    %c0_23 = arith.constant 0 : index
    %c0_24 = arith.constant 0 : index
    %c0_25 = arith.constant 0 : index
    %67 = vector.load %arg7[%c0_23, %c0_24, %c0_25] : memref<4x8x32xbf16, #tpu.memory_space<vmem>>, vector<1x8x32xbf16>
    %68 = vector.shape_cast %67 : vector<1x8x32xbf16> to vector<8x32xbf16>
    %cst_26 = arith.constant dense<0.000000e+00> : vector<24x32xf32>
    %69 = tpu.matmul %66, %68, %cst_26 {dimension_numbers = #tpu.dot_dimension_numbers<[1], [0], [0], [1], [0, 0, 1, 1], [], []>} : vector<24x8xbf16>, vector<8x32xbf16>, vector<24x32xf32> -> vector<24x32xf32>
    %70 = arith.addf %38, %69 : vector<24x32xf32>
    %71 = vector.extract_strided_slice %36 {offsets = [0, 8], sizes = [24, 8], strides = [1, 1]} : vector<24x96xf32> to vector<24x8xf32>
    %cst_27 = arith.constant 0.353553385 : f32
    %72 = vector.broadcast %cst_27 : f32 to vector<24x8xf32>
    %73 = arith.mulf %71, %72 : vector<24x8xf32>
    %74 = vector.shape_cast %73 : vector<24x8xf32> to vector<3x8x8xf32>
    %75 = arith.truncf %74 : vector<3x8x8xf32> to vector<3x8x8xbf16>
    %76 = vector.extract_strided_slice %36 {offsets = [0, 40], sizes = [24, 8], strides = [1, 1]} : vector<24x96xf32> to vector<24x8xf32>
    %77 = vector.shape_cast %76 : vector<24x8xf32> to vector<3x8x8xf32>
    %78 = arith.truncf %77 : vector<3x8x8xf32> to vector<3x8x8xbf16>
    %79 = vector.extract_strided_slice %36 {offsets = [0, 72], sizes = [24, 8], strides = [1, 1]} : vector<24x96xf32> to vector<24x8xf32>
    %80 = vector.shape_cast %79 : vector<24x8xf32> to vector<3x8x8xf32>
    %81 = arith.truncf %80 : vector<3x8x8xf32> to vector<3x8x8xbf16>
    "tpu.trace_start"() <{level = 10 : i32, message = "bqd,bkd->bqk"}> : () -> ()
    %cst_28 = arith.constant dense<0.000000e+00> : vector<3x8x8xf32>
    %82 = tpu.matmul %75, %78, %cst_28 {dimension_numbers = #tpu.dot_dimension_numbers<[2], [2], [1], [1], [0, 0, 0, 1, 1, 1], [0], [0]>} : vector<3x8x8xbf16>, vector<3x8x8xbf16>, vector<3x8x8xf32> -> vector<3x8x8xf32>
    "tpu.trace_stop"() : () -> ()
    %83 = vector.broadcast %37 : vector<3x1x8xf32> to vector<3x8x8xf32>
    %84 = arith.addf %82, %83 : vector<3x8x8xf32>
    %cst_29 = arith.constant dense<0xFF800000> : vector<3x8xf32>
    %85 = vector.multi_reduction <maximumf>, %84, %cst_29 [2] : vector<3x8x8xf32> to vector<3x8xf32>
    %86 = vector.shape_cast %85 : vector<3x8xf32> to vector<3x8x1xf32>
    %87 = vector.broadcast %86 : vector<3x8x1xf32> to vector<3x8x8xf32>
    %88 = arith.subf %84, %87 : vector<3x8x8xf32>
    %89 = math.exp %88 : vector<3x8x8xf32>
    %cst_30 = arith.constant dense<0.000000e+00> : vector<3x8xf32>
    %90 = vector.multi_reduction <add>, %89, %cst_30 [2] : vector<3x8x8xf32> to vector<3x8xf32>
    %91 = vector.shape_cast %90 : vector<3x8xf32> to vector<3x8x1xf32>
    %92 = arith.truncf %89 : vector<3x8x8xf32> to vector<3x8x8xbf16>
    "tpu.trace_start"() <{level = 10 : i32, message = "bqk,bkd->bqd"}> : () -> ()
    %cst_31 = arith.constant dense<0.000000e+00> : vector<3x8x8xf32>
    %93 = tpu.matmul %92, %81, %cst_31 {dimension_numbers = #tpu.dot_dimension_numbers<[2], [1], [1], [2], [0, 0, 0, 1, 1, 2], [0], [0]>} : vector<3x8x8xbf16>, vector<3x8x8xbf16>, vector<3x8x8xf32> -> vector<3x8x8xf32>
    "tpu.trace_stop"() : () -> ()
    %94 = tpu.reciprocal %91 {approx = true} : vector<3x8x1xf32> -> vector<3x8x1xf32>
    %95 = vector.broadcast %94 : vector<3x8x1xf32> to vector<3x8x8xf32>
    %96 = arith.mulf %93, %95 : vector<3x8x8xf32>
    %97 = vector.shape_cast %96 : vector<3x8x8xf32> to vector<24x8xf32>
    %98 = arith.truncf %97 : vector<24x8xf32> to vector<24x8xbf16>
    %c1 = arith.constant 1 : index
    %c0_32 = arith.constant 0 : index
    %c0_33 = arith.constant 0 : index
    %99 = vector.load %arg7[%c1, %c0_32, %c0_33] : memref<4x8x32xbf16, #tpu.memory_space<vmem>>, vector<1x8x32xbf16>
    %100 = vector.shape_cast %99 : vector<1x8x32xbf16> to vector<8x32xbf16>
    %cst_34 = arith.constant dense<0.000000e+00> : vector<24x32xf32>
    %101 = tpu.matmul %98, %100, %cst_34 {dimension_numbers = #tpu.dot_dimension_numbers<[1], [0], [0], [1], [0, 0, 1, 1], [], []>} : vector<24x8xbf16>, vector<8x32xbf16>, vector<24x32xf32> -> vector<24x32xf32>
    %102 = arith.addf %70, %101 : vector<24x32xf32>
    %103 = vector.extract_strided_slice %36 {offsets = [0, 16], sizes = [24, 8], strides = [1, 1]} : vector<24x96xf32> to vector<24x8xf32>
    %cst_35 = arith.constant 0.353553385 : f32
    %104 = vector.broadcast %cst_35 : f32 to vector<24x8xf32>
    %105 = arith.mulf %103, %104 : vector<24x8xf32>
    %106 = vector.shape_cast %105 : vector<24x8xf32> to vector<3x8x8xf32>
    %107 = arith.truncf %106 : vector<3x8x8xf32> to vector<3x8x8xbf16>
    %108 = vector.extract_strided_slice %36 {offsets = [0, 48], sizes = [24, 8], strides = [1, 1]} : vector<24x96xf32> to vector<24x8xf32>
    %109 = vector.shape_cast %108 : vector<24x8xf32> to vector<3x8x8xf32>
    %110 = arith.truncf %109 : vector<3x8x8xf32> to vector<3x8x8xbf16>
    %111 = vector.extract_strided_slice %36 {offsets = [0, 80], sizes = [24, 8], strides = [1, 1]} : vector<24x96xf32> to vector<24x8xf32>
    %112 = vector.shape_cast %111 : vector<24x8xf32> to vector<3x8x8xf32>
    %113 = arith.truncf %112 : vector<3x8x8xf32> to vector<3x8x8xbf16>
    "tpu.trace_start"() <{level = 10 : i32, message = "bqd,bkd->bqk"}> : () -> ()
    %cst_36 = arith.constant dense<0.000000e+00> : vector<3x8x8xf32>
    %114 = tpu.matmul %107, %110, %cst_36 {dimension_numbers = #tpu.dot_dimension_numbers<[2], [2], [1], [1], [0, 0, 0, 1, 1, 1], [0], [0]>} : vector<3x8x8xbf16>, vector<3x8x8xbf16>, vector<3x8x8xf32> -> vector<3x8x8xf32>
    "tpu.trace_stop"() : () -> ()
    %115 = vector.broadcast %37 : vector<3x1x8xf32> to vector<3x8x8xf32>
    %116 = arith.addf %114, %115 : vector<3x8x8xf32>
    %cst_37 = arith.constant dense<0xFF800000> : vector<3x8xf32>
    %117 = vector.multi_reduction <maximumf>, %116, %cst_37 [2] : vector<3x8x8xf32> to vector<3x8xf32>
    %118 = vector.shape_cast %117 : vector<3x8xf32> to vector<3x8x1xf32>
    %119 = vector.broadcast %118 : vector<3x8x1xf32> to vector<3x8x8xf32>
    %120 = arith.subf %116, %119 : vector<3x8x8xf32>
    %121 = math.exp %120 : vector<3x8x8xf32>
    %cst_38 = arith.constant dense<0.000000e+00> : vector<3x8xf32>
    %122 = vector.multi_reduction <add>, %121, %cst_38 [2] : vector<3x8x8xf32> to vector<3x8xf32>
    %123 = vector.shape_cast %122 : vector<3x8xf32> to vector<3x8x1xf32>
    %124 = arith.truncf %121 : vector<3x8x8xf32> to vector<3x8x8xbf16>
    "tpu.trace_start"() <{level = 10 : i32, message = "bqk,bkd->bqd"}> : () -> ()
    %cst_39 = arith.constant dense<0.000000e+00> : vector<3x8x8xf32>
    %125 = tpu.matmul %124, %113, %cst_39 {dimension_numbers = #tpu.dot_dimension_numbers<[2], [1], [1], [2], [0, 0, 0, 1, 1, 2], [0], [0]>} : vector<3x8x8xbf16>, vector<3x8x8xbf16>, vector<3x8x8xf32> -> vector<3x8x8xf32>
    "tpu.trace_stop"() : () -> ()
    %126 = tpu.reciprocal %123 {approx = true} : vector<3x8x1xf32> -> vector<3x8x1xf32>
    %127 = vector.broadcast %126 : vector<3x8x1xf32> to vector<3x8x8xf32>
    %128 = arith.mulf %125, %127 : vector<3x8x8xf32>
    %129 = vector.shape_cast %128 : vector<3x8x8xf32> to vector<24x8xf32>
    %130 = arith.truncf %129 : vector<24x8xf32> to vector<24x8xbf16>
    %c2 = arith.constant 2 : index
    %c0_40 = arith.constant 0 : index
    %c0_41 = arith.constant 0 : index
    %131 = vector.load %arg7[%c2, %c0_40, %c0_41] : memref<4x8x32xbf16, #tpu.memory_space<vmem>>, vector<1x8x32xbf16>
    %132 = vector.shape_cast %131 : vector<1x8x32xbf16> to vector<8x32xbf16>
    %cst_42 = arith.constant dense<0.000000e+00> : vector<24x32xf32>
    %133 = tpu.matmul %130, %132, %cst_42 {dimension_numbers = #tpu.dot_dimension_numbers<[1], [0], [0], [1], [0, 0, 1, 1], [], []>} : vector<24x8xbf16>, vector<8x32xbf16>, vector<24x32xf32> -> vector<24x32xf32>
    %134 = arith.addf %102, %133 : vector<24x32xf32>
    %135 = vector.extract_strided_slice %36 {offsets = [0, 24], sizes = [24, 8], strides = [1, 1]} : vector<24x96xf32> to vector<24x8xf32>
    %cst_43 = arith.constant 0.353553385 : f32
    %136 = vector.broadcast %cst_43 : f32 to vector<24x8xf32>
    %137 = arith.mulf %135, %136 : vector<24x8xf32>
    %138 = vector.shape_cast %137 : vector<24x8xf32> to vector<3x8x8xf32>
    %139 = arith.truncf %138 : vector<3x8x8xf32> to vector<3x8x8xbf16>
    %140 = vector.extract_strided_slice %36 {offsets = [0, 56], sizes = [24, 8], strides = [1, 1]} : vector<24x96xf32> to vector<24x8xf32>
    %141 = vector.shape_cast %140 : vector<24x8xf32> to vector<3x8x8xf32>
    %142 = arith.truncf %141 : vector<3x8x8xf32> to vector<3x8x8xbf16>
    %143 = vector.extract_strided_slice %36 {offsets = [0, 88], sizes = [24, 8], strides = [1, 1]} : vector<24x96xf32> to vector<24x8xf32>
    %144 = vector.shape_cast %143 : vector<24x8xf32> to vector<3x8x8xf32>
    %145 = arith.truncf %144 : vector<3x8x8xf32> to vector<3x8x8xbf16>
    "tpu.trace_start"() <{level = 10 : i32, message = "bqd,bkd->bqk"}> : () -> ()
    %cst_44 = arith.constant dense<0.000000e+00> : vector<3x8x8xf32>
    %146 = tpu.matmul %139, %142, %cst_44 {dimension_numbers = #tpu.dot_dimension_numbers<[2], [2], [1], [1], [0, 0, 0, 1, 1, 1], [0], [0]>} : vector<3x8x8xbf16>, vector<3x8x8xbf16>, vector<3x8x8xf32> -> vector<3x8x8xf32>
    "tpu.trace_stop"() : () -> ()
    %147 = vector.broadcast %37 : vector<3x1x8xf32> to vector<3x8x8xf32>
    %148 = arith.addf %146, %147 : vector<3x8x8xf32>
    %cst_45 = arith.constant dense<0xFF800000> : vector<3x8xf32>
    %149 = vector.multi_reduction <maximumf>, %148, %cst_45 [2] : vector<3x8x8xf32> to vector<3x8xf32>
    %150 = vector.shape_cast %149 : vector<3x8xf32> to vector<3x8x1xf32>
    %151 = vector.broadcast %150 : vector<3x8x1xf32> to vector<3x8x8xf32>
    %152 = arith.subf %148, %151 : vector<3x8x8xf32>
    %153 = math.exp %152 : vector<3x8x8xf32>
    %cst_46 = arith.constant dense<0.000000e+00> : vector<3x8xf32>
    %154 = vector.multi_reduction <add>, %153, %cst_46 [2] : vector<3x8x8xf32> to vector<3x8xf32>
    %155 = vector.shape_cast %154 : vector<3x8xf32> to vector<3x8x1xf32>
    %156 = arith.truncf %153 : vector<3x8x8xf32> to vector<3x8x8xbf16>
    "tpu.trace_start"() <{level = 10 : i32, message = "bqk,bkd->bqd"}> : () -> ()
    %cst_47 = arith.constant dense<0.000000e+00> : vector<3x8x8xf32>
    %157 = tpu.matmul %156, %145, %cst_47 {dimension_numbers = #tpu.dot_dimension_numbers<[2], [1], [1], [2], [0, 0, 0, 1, 1, 2], [0], [0]>} : vector<3x8x8xbf16>, vector<3x8x8xbf16>, vector<3x8x8xf32> -> vector<3x8x8xf32>
    "tpu.trace_stop"() : () -> ()
    %158 = tpu.reciprocal %155 {approx = true} : vector<3x8x1xf32> -> vector<3x8x1xf32>
    %159 = vector.broadcast %158 : vector<3x8x1xf32> to vector<3x8x8xf32>
    %160 = arith.mulf %157, %159 : vector<3x8x8xf32>
    %161 = vector.shape_cast %160 : vector<3x8x8xf32> to vector<24x8xf32>
    %162 = arith.truncf %161 : vector<24x8xf32> to vector<24x8xbf16>
    %c3 = arith.constant 3 : index
    %c0_48 = arith.constant 0 : index
    %c0_49 = arith.constant 0 : index
    %163 = vector.load %arg7[%c3, %c0_48, %c0_49] : memref<4x8x32xbf16, #tpu.memory_space<vmem>>, vector<1x8x32xbf16>
    %164 = vector.shape_cast %163 : vector<1x8x32xbf16> to vector<8x32xbf16>
    %cst_50 = arith.constant dense<0.000000e+00> : vector<24x32xf32>
    %165 = tpu.matmul %162, %164, %cst_50 {dimension_numbers = #tpu.dot_dimension_numbers<[1], [0], [0], [1], [0, 0, 1, 1], [], []>} : vector<24x8xbf16>, vector<8x32xbf16>, vector<24x32xf32> -> vector<24x32xf32>
    %166 = arith.addf %134, %165 : vector<24x32xf32>
    %c0_51 = arith.constant 0 : index
    %c0_52 = arith.constant 0 : index
    %167 = vector.load %arg8[%c0_51, %c0_52] : memref<1x32xf32, #tpu.memory_space<vmem>>, vector<1x32xf32>
    %168 = vector.shape_cast %167 : vector<1x32xf32> to vector<32xf32>
    %169 = vector.shape_cast %168 : vector<32xf32> to vector<1x32xf32>
    %170 = vector.broadcast %169 : vector<1x32xf32> to vector<24x32xf32>
    %171 = arith.addf %166, %170 : vector<24x32xf32>
    %172 = arith.addf %171, %0 : vector<24x32xf32>
    %173 = arith.truncf %172 : vector<24x32xf32> to vector<24x32xbf16>
    %c0_53 = arith.constant 0 : index
    %c0_54 = arith.constant 0 : index
    %174 = vector.load %arg9[%c0_53, %c0_54] : memref<32x128xbf16, #tpu.memory_space<vmem>>, vector<32x128xbf16>
    %cst_55 = arith.constant dense<0.000000e+00> : vector<24x128xf32>
    %175 = tpu.matmul %173, %174, %cst_55 {dimension_numbers = #tpu.dot_dimension_numbers<[1], [0], [0], [1], [0, 0, 1, 1], [], []>} : vector<24x32xbf16>, vector<32x128xbf16>, vector<24x128xf32> -> vector<24x128xf32>
    %c0_56 = arith.constant 0 : index
    %c0_57 = arith.constant 0 : index
    %176 = vector.load %arg10[%c0_56, %c0_57] : memref<1x128xf32, #tpu.memory_space<vmem>>, vector<1x128xf32>
    %177 = vector.shape_cast %176 : vector<1x128xf32> to vector<128xf32>
    %178 = vector.shape_cast %177 : vector<128xf32> to vector<1x128xf32>
    %179 = vector.broadcast %178 : vector<1x128xf32> to vector<24x128xf32>
    %180 = arith.addf %175, %179 : vector<24x128xf32>
    %cst_58 = arith.constant 0.000000e+00 : f32
    %181 = vector.broadcast %cst_58 : f32 to vector<24x128xf32>
    %182 = arith.maximumf %180, %181 : vector<24x128xf32>
    %183 = arith.truncf %182 : vector<24x128xf32> to vector<24x128xbf16>
    %c0_59 = arith.constant 0 : index
    %c0_60 = arith.constant 0 : index
    %184 = vector.load %arg11[%c0_59, %c0_60] : memref<128x32xbf16, #tpu.memory_space<vmem>>, vector<128x32xbf16>
    %cst_61 = arith.constant dense<0.000000e+00> : vector<24x32xf32>
    %185 = tpu.matmul %183, %184, %cst_61 {dimension_numbers = #tpu.dot_dimension_numbers<[1], [0], [0], [1], [0, 0, 1, 1], [], []>} : vector<24x128xbf16>, vector<128x32xbf16>, vector<24x32xf32> -> vector<24x32xf32>
    %c0_62 = arith.constant 0 : index
    %c0_63 = arith.constant 0 : index
    %186 = vector.load %arg12[%c0_62, %c0_63] : memref<1x32xf32, #tpu.memory_space<vmem>>, vector<1x32xf32>
    %187 = vector.shape_cast %186 : vector<1x32xf32> to vector<32xf32>
    %188 = vector.shape_cast %187 : vector<32xf32> to vector<1x32xf32>
    %189 = vector.broadcast %188 : vector<1x32xf32> to vector<24x32xf32>
    %190 = arith.addf %185, %189 : vector<24x32xf32>
    %cst_64 = arith.constant 0.000000e+00 : f32
    %191 = vector.broadcast %cst_64 : f32 to vector<24x32xf32>
    %192 = arith.maximumf %190, %191 : vector<24x32xf32>
    %c0_65 = arith.constant 0 : index
    %c0_66 = arith.constant 0 : index
    %193 = vector.load %arg13[%c0_65, %c0_66] : memref<1x32xf32, #tpu.memory_space<vmem>>, vector<1x32xf32>
    %194 = vector.shape_cast %193 : vector<1x32xf32> to vector<32xf32>
    %c0_67 = arith.constant 0 : index
    %c0_68 = arith.constant 0 : index
    %195 = vector.load %arg14[%c0_67, %c0_68] : memref<1x32xf32, #tpu.memory_space<vmem>>, vector<1x32xf32>
    %196 = vector.shape_cast %195 : vector<1x32xf32> to vector<32xf32>
    %cst_69 = arith.constant dense<0.000000e+00> : vector<24xf32>
    %197 = vector.multi_reduction <add>, %192, %cst_69 [1] : vector<24x32xf32> to vector<24xf32>
    %198 = vector.shape_cast %197 : vector<24xf32> to vector<24x1xf32>
    %cst_70 = arith.constant 3.200000e+01 : f32
    %199 = vector.broadcast %cst_70 : f32 to vector<24x1xf32>
    %200 = arith.divf %198, %199 : vector<24x1xf32>
    %201 = vector.broadcast %200 : vector<24x1xf32> to vector<24x32xf32>
    %202 = arith.subf %192, %201 : vector<24x32xf32>
    %203 = arith.mulf %202, %202 : vector<24x32xf32>
    %cst_71 = arith.constant dense<0.000000e+00> : vector<24xf32>
    %204 = vector.multi_reduction <add>, %203, %cst_71 [1] : vector<24x32xf32> to vector<24xf32>
    %205 = vector.shape_cast %204 : vector<24xf32> to vector<24x1xf32>
    %cst_72 = arith.constant 3.200000e+01 : f32
    %206 = vector.broadcast %cst_72 : f32 to vector<24x1xf32>
    %207 = arith.divf %205, %206 : vector<24x1xf32>
    %208 = vector.broadcast %200 : vector<24x1xf32> to vector<24x32xf32>
    %209 = arith.subf %192, %208 : vector<24x32xf32>
    %cst_73 = arith.constant 9.99999974E-6 : f32
    %210 = vector.broadcast %cst_73 : f32 to vector<24x1xf32>
    %211 = arith.addf %207, %210 : vector<24x1xf32>
    %212 = math.rsqrt %211 : vector<24x1xf32>
    %213 = vector.broadcast %212 : vector<24x1xf32> to vector<24x32xf32>
    %214 = arith.mulf %209, %213 : vector<24x32xf32>
    %215 = vector.shape_cast %194 : vector<32xf32> to vector<1x32xf32>
    %216 = vector.broadcast %215 : vector<1x32xf32> to vector<24x32xf32>
    %217 = arith.mulf %214, %216 : vector<24x32xf32>
    %218 = vector.shape_cast %196 : vector<32xf32> to vector<1x32xf32>
    %219 = vector.broadcast %218 : vector<1x32xf32> to vector<24x32xf32>
    %220 = arith.addf %217, %219 : vector<24x32xf32>
    %c0_74 = arith.constant 0 : index
    %c0_75 = arith.constant 0 : index
    %221 = vector.load %arg15[%c0_74, %c0_75] : memref<24x32xf32, #tpu.memory_space<vmem>>, vector<24x32xf32>
    tpu.vector_store %arg15[%c0_74, %c0_75], %220 {strides = array<i32>} : memref<24x32xf32, #tpu.memory_space<vmem>>, vector<24x32xf32>,
    return
  }
  func.func @transform_0(%arg0: i32) -> (i32, i32) {
    %c0_i32 = arith.constant 0 : i32
    %c0_i32_0 = arith.constant 0 : i32
    return %arg0, %c0_i32 : i32, i32
  }
  func.func @transform_1(%arg0: i32) -> (i32, i32, i32) {
    %c0_i32 = arith.constant 0 : i32
    %c0_i32_0 = arith.constant 0 : i32
    %c0_i32_1 = arith.constant 0 : i32
    return %arg0, %c0_i32, %c0_i32_0 : i32, i32, i32
  }
  func.func @transform_2(%arg0: i32) -> (i32, i32) {
    %c0_i32 = arith.constant 0 : i32
    %c0_i32_0 = arith.constant 0 : i32
    %c0_i32_1 = arith.constant 0 : i32
    return %c0_i32, %c0_i32_0 : i32, i32
  }
  func.func @transform_3(%arg0: i32) -> (i32, i32) {
    %c0_i32 = arith.constant 0 : i32
    %c0_i32_0 = arith.constant 0 : i32
    %c0_i32_1 = arith.constant 0 : i32
    return %c0_i32, %c0_i32_0 : i32, i32
  }
  func.func @transform_4(%arg0: i32) -> (i32, i32) {
    %c0_i32 = arith.constant 0 : i32
    %c0_i32_0 = arith.constant 0 : i32
    %c0_i32_1 = arith.constant 0 : i32
    return %c0_i32, %c0_i32_0 : i32, i32
  }
  func.func @transform_5(%arg0: i32) -> (i32, i32) {
    %c0_i32 = arith.constant 0 : i32
    %c0_i32_0 = arith.constant 0 : i32
    %c0_i32_1 = arith.constant 0 : i32
    return %c0_i32, %c0_i32_0 : i32, i32
  }
  func.func @transform_6(%arg0: i32) -> (i32, i32, i32) {
    %c0_i32 = arith.constant 0 : i32
    %c0_i32_0 = arith.constant 0 : i32
    %c0_i32_1 = arith.constant 0 : i32
    %c0_i32_2 = arith.constant 0 : i32
    return %c0_i32, %c0_i32_0, %c0_i32_1 : i32, i32, i32
  }
  func.func @transform_7(%arg0: i32) -> (i32, i32) {
    %c0_i32 = arith.constant 0 : i32
    %c0_i32_0 = arith.constant 0 : i32
    %c0_i32_1 = arith.constant 0 : i32
    return %c0_i32, %c0_i32_0 : i32, i32
  }
  func.func @transform_8(%arg0: i32) -> (i32, i32) {
    %c0_i32 = arith.constant 0 : i32
    %c0_i32_0 = arith.constant 0 : i32
    %c0_i32_1 = arith.constant 0 : i32
    return %c0_i32, %c0_i32_0 : i32, i32
  }
  func.func @transform_9(%arg0: i32) -> (i32, i32) {
    %c0_i32 = arith.constant 0 : i32
    %c0_i32_0 = arith.constant 0 : i32
    %c0_i32_1 = arith.constant 0 : i32
    return %c0_i32, %c0_i32_0 : i32, i32
  }
  func.func @transform_10(%arg0: i32) -> (i32, i32) {
    %c0_i32 = arith.constant 0 : i32
    %c0_i32_0 = arith.constant 0 : i32
    %c0_i32_1 = arith.constant 0 : i32
    return %c0_i32, %c0_i32_0 : i32, i32
  }
  func.func @transform_11(%arg0: i32) -> (i32, i32) {
    %c0_i32 = arith.constant 0 : i32
    %c0_i32_0 = arith.constant 0 : i32
    %c0_i32_1 = arith.constant 0 : i32
    return %c0_i32, %c0_i32_0 : i32, i32
  }
  func.func @transform_12(%arg0: i32) -> (i32, i32) {
    %c0_i32 = arith.constant 0 : i32
    %c0_i32_0 = arith.constant 0 : i32
    %c0_i32_1 = arith.constant 0 : i32
    return %c0_i32, %c0_i32_0 : i32, i32
  }
  func.func @transform_13(%arg0: i32) -> (i32, i32) {
    %c0_i32 = arith.constant 0 : i32
    %c0_i32_0 = arith.constant 0 : i32
    %c0_i32_1 = arith.constant 0 : i32
    return %c0_i32, %c0_i32_0 : i32, i32
  }
  func.func @transform_14(%arg0: i32) -> (i32, i32) {
    %c0_i32 = arith.constant 0 : i32
    %c0_i32_0 = arith.constant 0 : i32
    return %arg0, %c0_i32 : i32, i32
  }
}

module attributes {stable_mosaic.version = 11 : i64} {
  func.func @selfatt_dec_kernel(%arg0: i32, %arg1: memref<24x32xf32, #tpu.memory_space<vmem>>, %arg2: memref<3x1x8xf32, #tpu.memory_space<vmem>>, %arg3: memref<1x32xf32, #tpu.memory_space<vmem>>, %arg4: memref<1x32xf32, #tpu.memory_space<vmem>>, %arg5: memref<32x96xbf16, #tpu.memory_space<vmem>>, %arg6: memref<1x96xf32, #tpu.memory_space<vmem>>, %arg7: memref<4x8x32xbf16, #tpu.memory_space<vmem>>, %arg8: memref<1x32xf32, #tpu.memory_space<vmem>>, %arg9: memref<32x128xbf16, #tpu.memory_space<vmem>>, %arg10: memref<1x128xf32, #tpu.memory_space<vmem>>, %arg11: memref<128x32xbf16, #tpu.memory_space<vmem>>, %arg12: memref<1x32xf32, #tpu.memory_space<vmem>>, %arg13: memref<1x32xf32, #tpu.memory_space<vmem>>, %arg14: memref<1x32xf32, #tpu.memory_space<vmem>>, %arg15: memref<24x32xf32, #tpu.memory_space<vmem>>) attributes {dimension_semantics = [#tpu.dimension_semantics<parallel>], iteration_bounds = array<i64: 2>, scalar_prefetch = 0 : i64, scratch_operands = 0 : i64, tpu.core_type = #tpu.core_type<tc>, window_params = [{transform_indices = @transform_0, window_bounds = array<i64: 24, 32>}, {transform_indices = @transform_1, window_bounds = array<i64: 3, 1, 8>}, {pipeline_mode = #tpu.pipeline_mode<synchronous>, transform_indices = @transform_2, window_bounds = array<i64: 1, 32>}, {pipeline_mode = #tpu.pipeline_mode<synchronous>, transform_indices = @transform_3, window_bounds = array<i64: 1, 32>}, {pipeline_mode = #tpu.pipeline_mode<synchronous>, transform_indices = @transform_4, window_bounds = array<i64: 32, 96>}, {pipeline_mode = #tpu.pipeline_mode<synchronous>, transform_indices = @transform_5, window_bounds = array<i64: 1, 96>}, {pipeline_mode = #tpu.pipeline_mode<synchronous>, transform_indices = @transform_6, window_bounds = array<i64: 4, 8, 32>}, {pipeline_mode = #tpu.pipeline_mode<synchronous>, transform_indices = @transform_7, window_bounds = array<i64: 1, 32>}, {pipeline_mode = #tpu.pipeline_mode<synchronous>, transform_indices = @transform_8, window_bounds = array<i64: 32, 128>}, {pipeline_mode = #tpu.pipeline_mode<synchronous>, transform_indices = @transform_9, window_bounds = array<i64: 1, 128>}, {pipeline_mode = #tpu.pipeline_mode<synchronous>, transform_indices = @transform_10, window_bounds = array<i64: 128, 32>}, {pipeline_mode = #tpu.pipeline_mode<synchronous>, transform_indices = @transform_11, window_bounds = array<i64: 1, 32>}, {pipeline_mode = #tpu.pipeline_mode<synchronous>, transform_indices = @transform_12, window_bounds = array<i64: 1, 32>}, {pipeline_mode = #tpu.pipeline_mode<synchronous>, transform_indices = @transform_13, window_bounds = array<i64: 1, 32>}, {transform_indices = @transform_14, window_bounds = array<i64: 24, 32>}]} {
    %c0 = arith.constant 0 : index
    %c0_0 = arith.constant 0 : index
    %0 = vector.load %arg1[%c0, %c0_0] : memref<24x32xf32, #tpu.memory_space<vmem>>, vector<24x32xf32>
    %c0_1 = arith.constant 0 : index
    %c0_2 = arith.constant 0 : index
    %1 = vector.load %arg3[%c0_1, %c0_2] : memref<1x32xf32, #tpu.memory_space<vmem>>, vector<1x32xf32>
    %2 = vector.shape_cast %1 : vector<1x32xf32> to vector<32xf32>
    %c0_3 = arith.constant 0 : index
    %c0_4 = arith.constant 0 : index
    %3 = vector.load %arg4[%c0_3, %c0_4] : memref<1x32xf32, #tpu.memory_space<vmem>>, vector<1x32xf32>
    %4 = vector.shape_cast %3 : vector<1x32xf32> to vector<32xf32>
    %cst = arith.constant dense<0.000000e+00> : vector<24xf32>
    %5 = vector.multi_reduction <add>, %0, %cst [1] : vector<24x32xf32> to vector<24xf32>
    %6 = vector.shape_cast %5 : vector<24xf32> to vector<24x1xf32>
    %cst_5 = arith.constant 3.200000e+01 : f32
    %7 = vector.broadcast %cst_5 : f32 to vector<24x1xf32>
    %8 = arith.divf %6, %7 : vector<24x1xf32>
    %9 = vector.broadcast %8 : vector<24x1xf32> to vector<24x32xf32>
    %10 = arith.subf %0, %9 : vector<24x32xf32>
    %11 = arith.mulf %10, %10 : vector<24x32xf32>
    %cst_6 = arith.constant dense<0.000000e+00> : vector<24xf32>
    %12 = vector.multi_reduction <add>, %11, %cst_6 [1] : vector<24x32xf32> to vector<24xf32>
    %13 = vector.shape_cast %12 : vector<24xf32> to vector<24x1xf32>
    %cst_7 = arith.constant 3.200000e+01 : f32
    %14 = vector.broadcast %cst_7 : f32 to vector<24x1xf32>
    %15 = arith.divf %13, %14 : vector<24x1xf32>
    %16 = vector.broadcast %8 : vector<24x1xf32> to vector<24x32xf32>
    %17 = arith.subf %0, %16 : vector<24x32xf32>
    %cst_8 = arith.constant 9.99999974E-6 : f32
    %18 = vector.broadcast %cst_8 : f32 to vector<24x1xf32>
    %19 = arith.addf %15, %18 : vector<24x1xf32>
    %20 = math.rsqrt %19 : vector<24x1xf32>
    %21 = vector.broadcast %20 : vector<24x1xf32> to vector<24x32xf32>
    %22 = arith.mulf %17, %21 : vector<24x32xf32>
    %23 = vector.shape_cast %2 : vector<32xf32> to vector<1x32xf32>
    %24 = vector.broadcast %23 : vector<1x32xf32> to vector<24x32xf32>
    %25 = arith.mulf %22, %24 : vector<24x32xf32>
    %26 = vector.shape_cast %4 : vector<32xf32> to vector<1x32xf32>
    %27 = vector.broadcast %26 : vector<1x32xf32> to vector<24x32xf32>
    %28 = arith.addf %25, %27 : vector<24x32xf32>
    %29 = arith.truncf %28 : vector<24x32xf32> to vector<24x32xbf16>
    %c0_9 = arith.constant 0 : index
    %c0_10 = arith.constant 0 : index
    %30 = vector.load %arg5[%c0_9, %c0_10] : memref<32x96xbf16, #tpu.memory_space<vmem>>, vector<32x96xbf16>
    %cst_11 = arith.constant dense<0.000000e+00> : vector<24x96xf32>
    %31 = tpu.matmul %29, %30, %cst_11 {dimension_numbers = #tpu.dot_dimension_numbers<[1], [0], [0], [1], [0, 0, 1, 1], [], []>} : vector<24x32xbf16>, vector<32x96xbf16>, vector<24x96xf32> -> vector<24x96xf32>
    %c0_12 = arith.constant 0 : index
    %c0_13 = arith.constant 0 : index
    %32 = vector.load %arg6[%c0_12, %c0_13] : memref<1x96xf32, #tpu.memory_space<vmem>>, vector<1x96xf32>
    %33 = vector.shape_cast %32 : vector<1x96xf32> to vector<96xf32>
    %34 = vector.shape_cast %33 : vector<96xf32> to vector<1x96xf32>
    %35 = vector.broadcast %34 : vector<1x96xf32> to vector<24x96xf32>
    %36 = arith.addf %31, %35 : vector<24x96xf32>
    %c0_14 = arith.constant 0 : index
    %c0_15 = arith.constant 0 : index
    %c0_16 = arith.constant 0 : index
    %37 = vector.load %arg2[%c0_14, %c0_15, %c0_16] : memref<3x1x8xf32, #tpu.memory_space<vmem>>, vector<3x1x8xf32>
    %cst_17 = arith.constant 0.000000e+00 : f32
    %38 = vector.broadcast %cst_17 : f32 to vector<24x32xf32>
    %39 = vector.extract_strided_slice %36 {offsets = [0, 0], sizes = [24, 8], strides = [1, 1]} : vector<24x96xf32> to vector<24x8xf32>
    %cst_18 = arith.constant 0.353553385 : f32
    %40 = vector.broadcast %cst_18 : f32 to vector<24x8xf32>
    %41 = arith.mulf %39, %40 : vector<24x8xf32>
    %42 = vector.shape_cast %41 : vector<24x8xf32> to vector<3x8x8xf32>
    %43 = arith.truncf %42 : vector<3x8x8xf32> to vector<3x8x8xbf16>
    %44 = vector.extract_strided_slice %36 {offsets = [0, 32], sizes = [24, 8], strides = [1, 1]} : vector<24x96xf32> to vector<24x8xf32>
    %45 = vector.shape_cast %44 : vector<24x8xf32> to vector<3x8x8xf32>
    %46 = arith.truncf %45 : vector<3x8x8xf32> to vector<3x8x8xbf16>
    %47 = vector.extract_strided_slice %36 {offsets = [0, 64], sizes = [24, 8], strides = [1, 1]} : vector<24x96xf32> to vector<24x8xf32>
    %48 = vector.shape_cast %47 : vector<24x8xf32> to vector<3x8x8xf32>
    %49 = arith.truncf %48 : vector<3x8x8xf32> to vector<3x8x8xbf16>
    "tpu.trace_start"() <{level = 10 : i32, message = "bqd,bkd->bqk"}> : () -> ()
    %cst_19 = arith.constant dense<0.000000e+00> : vector<3x8x8xf32>
    %50 = tpu.matmul %43, %46, %cst_19 {dimension_numbers = #tpu.dot_dimension_numbers<[2], [2], [1], [1], [0, 0, 0, 1, 1, 1], [0], [0]>} : vector<3x8x8xbf16>, vector<3x8x8xbf16>, vector<3x8x8xf32> -> vector<3x8x8xf32>
    "tpu.trace_stop"() : () -> ()
    %51 = vector.broadcast %37 : vector<3x1x8xf32> to vector<3x8x8xf32>
    %52 = arith.addf %50, %51 : vector<3x8x8xf32>
    %cst_20 = arith.constant dense<0xFF800000> : vector<3x8xf32>
    %53 = vector.multi_reduction <maximumf>, %52, %cst_20 [2] : vector<3x8x8xf32> to vector<3x8xf32>
    %54 = vector.shape_cast %53 : vector<3x8xf32> to vector<3x8x1xf32>
    %55 = vector.broadcast %54 : vector<3x8x1xf32> to vector<3x8x8xf32>
    %56 = arith.subf %52, %55 : vector<3x8x8xf32>
    %57 = math.exp %56 : vector<3x8x8xf32>
    %cst_21 = arith.constant dense<0.000000e+00> : vector<3x8xf32>
    %58 = vector.multi_reduction <add>, %57, %cst_21 [2] : vector<3x8x8xf32> to vector<3x8xf32>
    %59 = vector.shape_cast %58 : vector<3x8xf32> to vector<3x8x1xf32>
    %60 = arith.truncf %57 : vector<3x8x8xf32> to vector<3x8x8xbf16>
    "tpu.trace_start"() <{level = 10 : i32, message = "bqk,bkd->bqd"}> : () -> ()
    %cst_22 = arith.constant dense<0.000000e+00> : vector<3x8x8xf32>
    %61 = tpu.matmul %60, %49, %cst_22 {dimension_numbers = #tpu.dot_dimension_numbers<[2], [1], [1], [2], [0, 0, 0, 1, 1, 2], [0], [0]>} : vector<3x8x8xbf16>, vector<3x8x8xbf16>, vector<3x8x8xf32> -> vector<3x8x8xf32>
    "tpu.trace_stop"() : () -> ()
    %62 = tpu.reciprocal %59 {approx = true} : vector<3x8x1xf32> -> vector<3x8x1xf32>
    %63 = vector.broadcast %62 : vector<3x8x1xf32> to vector<3x8x8xf32>
    %64 = arith.mulf %61, %63 : vector<3x8x8xf32>
    %65 = vector.shape_cast %64 : vector<3x8x8xf32> to vector<24x8xf32>
    %66 = arith.truncf %65 : vector<24x8xf32> to vector<24x8xbf16>
    %c0_23 = arith.constant 0 : index
    %c0_24 = arith.constant 0 : index
    %c0_25 = arith.constant 0 : index
    %67 = vector.load %arg7[%c0_23, %c0_24, %c0_25] : memref<4x8x32xbf16, #tpu.memory_space<vmem>>, vector<1x8x32xbf16>
    %68 = vector.shape_cast %67 : vector<1x8x32xbf16> to vector<8x32xbf16>
    %cst_26 = arith.constant dense<0.000000e+00> : vector<24x32xf32>
    %69 = tpu.matmul %66, %68, %cst_26 {dimension_numbers = #tpu.dot_dimension_numbers<[1], [0], [0], [1], [0, 0, 1, 1], [], []>} : vector<24x8xbf16>, vector<8x32xbf16>, vector<24x32xf32> -> vector<24x32xf32>
    %70 = arith.addf %38, %69 : vector<24x32xf32>
    %71 = vector.extract_strided_slice %36 {offsets = [0, 8], sizes = [24, 8], strides = [1, 1]} : vector<24x96xf32> to vector<24x8xf32>
    %cst_27 = arith.constant 0.353553385 : f32
    %72 = vector.broadcast %cst_27 : f32 to vector<24x8xf32>
    %73 = arith.mulf %71, %72 : vector<24x8xf32>
    %74 = vector.shape_cast %73 : vector<24x8xf32> to vector<3x8x8xf32>
    %75 = arith.truncf %74 : vector<3x8x8xf32> to vector<3x8x8xbf16>
    %76 = vector.extract_strided_slice %36 {offsets = [0, 40], sizes = [24, 8], strides = [1, 1]} : vector<24x96xf32> to vector<24x8xf32>
    %77 = vector.shape_cast %76 : vector<24x8xf32> to vector<3x8x8xf32>
    %78 = arith.truncf %77 : vector<3x8x8xf32> to vector<3x8x8xbf16>
    %79 = vector.extract_strided_slice %36 {offsets = [0, 72], sizes = [24, 8], strides = [1, 1]} : vector<24x96xf32> to vector<24x8xf32>
    %80 = vector.shape_cast %79 : vector<24x8xf32> to vector<3x8x8xf32>
    %81 = arith.truncf %80 : vector<3x8x8xf32> to vector<3x8x8xbf16>
    "tpu.trace_start"() <{level = 10 : i32, message = "bqd,bkd->bqk"}> : () -> ()
    %cst_28 = arith.constant dense<0.000000e+00> : vector<3x8x8xf32>
    %82 = tpu.matmul %75, %78, %cst_28 {dimension_numbers = #tpu.dot_dimension_numbers<[2], [2], [1], [1], [0, 0, 0, 1, 1, 1], [0], [0]>} : vector<3x8x8xbf16>, vector<3x8x8xbf16>, vector<3x8x8xf32> -> vector<3x8x8xf32>
    "tpu.trace_stop"() : () -> ()
    %83 = vector.broadcast %37 : vector<3x1x8xf32> to vector<3x8x8xf32>
    %84 = arith.addf %82, %83 : vector<3x8x8xf32>
    %cst_29 = arith.constant dense<0xFF800000> : vector<3x8xf32>
    %85 = vector.multi_reduction <maximumf>, %84, %cst_29 [2] : vector<3x8x8xf32> to vector<3x8xf32>
    %86 = vector.shape_cast %85 : vector<3x8xf32> to vector<3x8x1xf32>
    %87 = vector.broadcast %86 : vector<3x8x1xf32> to vector<3x8x8xf32>
    %88 = arith.subf %84, %87 : vector<3x8x8xf32>
    %89 = math.exp %88 : vector<3x8x8xf32>
    %cst_30 = arith.constant dense<0.000000e+00> : vector<3x8xf32>
    %90 = vector.multi_reduction <add>, %89, %cst_30 [2] : vector<3x8x8xf32> to vector<3x8xf32>
    %91 = vector.shape_cast %90 : vector<3x8xf32> to vector<3x8x1xf32>
    %92 = arith.truncf %89 : vector<3x8x8xf32> to vector<3x8x8xbf16>
    "tpu.trace_start"() <{level = 10 : i32, message = "bqk,bkd->bqd"}> : () -> ()
    %cst_31 = arith.constant dense<0.000000e+00> : vector<3x8x8xf32>
    %93 = tpu.matmul %92, %81, %cst_31 {dimension_numbers = #tpu.dot_dimension_numbers<[2], [1], [1], [2], [0, 0, 0, 1, 1, 2], [0], [0]>} : vector<3x8x8xbf16>, vector<3x8x8xbf16>, vector<3x8x8xf32> -> vector<3x8x8xf32>
    "tpu.trace_stop"() : () -> ()
    %94 = tpu.reciprocal %91 {approx = true} : vector<3x8x1xf32> -> vector<3x8x1xf32>
    %95 = vector.broadcast %94 : vector<3x8x1xf32> to vector<3x8x8xf32>
    %96 = arith.mulf %93, %95 : vector<3x8x8xf32>
    %97 = vector.shape_cast %96 : vector<3x8x8xf32> to vector<24x8xf32>
    %98 = arith.truncf %97 : vector<24x8xf32> to vector<24x8xbf16>
    %c1 = arith.constant 1 : index
    %c0_32 = arith.constant 0 : index
    %c0_33 = arith.constant 0 : index
    %99 = vector.load %arg7[%c1, %c0_32, %c0_33] : memref<4x8x32xbf16, #tpu.memory_space<vmem>>, vector<1x8x32xbf16>
    %100 = vector.shape_cast %99 : vector<1x8x32xbf16> to vector<8x32xbf16>
    %cst_34 = arith.constant dense<0.000000e+00> : vector<24x32xf32>
    %101 = tpu.matmul %98, %100, %cst_34 {dimension_numbers = #tpu.dot_dimension_numbers<[1], [0], [0], [1], [0, 0, 1, 1], [], []>} : vector<24x8xbf16>, vector<8x32xbf16>, vector<24x32xf32> -> vector<24x32xf32>
    %102 = arith.addf %70, %101 : vector<24x32xf32>
    %103 = vector.extract_strided_slice %36 {offsets = [0, 16], sizes = [24, 8], strides = [1, 1]} : vector<24x96xf32> to vector<24x8xf32>
    %cst_35 = arith.constant 0.353553385 : f32
    %104 = vector.broadcast %cst_35 : f32 to vector<24x8xf32>
    %105 = arith.mulf %103, %104 : vector<24x8xf32>
    %106 = vector.shape_cast %105 : vector<24x8xf32> to vector<3x8x8xf32>
    %107 = arith.truncf %106 : vector<3x8x8xf32> to vector<3x8x8xbf16>
    %108 = vector.extract_strided_slice %36 {offsets = [0, 48], sizes = [24, 8], strides = [1, 1]} : vector<24x96xf32> to vector<24x8xf32>
    %109 = vector.shape_cast %108 : vector<24x8xf32> to vector<3x8x8xf32>
    %110 = arith.truncf %109 : vector<3x8x8xf32> to vector<3x8x8xbf16>
    %111 = vector.extract_strided_slice %36 {offsets = [0, 80], sizes = [24, 8], strides = [1, 1]} : vector<24x96xf32> to vector<24x8xf32>
    %112 = vector.shape_cast %111 : vector<24x8xf32> to vector<3x8x8xf32>
    %113 = arith.truncf %112 : vector<3x8x8xf32> to vector<3x8x8xbf16>
    "tpu.trace_start"() <{level = 10 : i32, message = "bqd,bkd->bqk"}> : () -> ()
    %cst_36 = arith.constant dense<0.000000e+00> : vector<3x8x8xf32>
    %114 = tpu.matmul %107, %110, %cst_36 {dimension_numbers = #tpu.dot_dimension_numbers<[2], [2], [1], [1], [0, 0, 0, 1, 1, 1], [0], [0]>} : vector<3x8x8xbf16>, vector<3x8x8xbf16>, vector<3x8x8xf32> -> vector<3x8x8xf32>
    "tpu.trace_stop"() : () -> ()
    %115 = vector.broadcast %37 : vector<3x1x8xf32> to vector<3x8x8xf32>
    %116 = arith.addf %114, %115 : vector<3x8x8xf32>
    %cst_37 = arith.constant dense<0xFF800000> : vector<3x8xf32>
    %117 = vector.multi_reduction <maximumf>, %116, %cst_37 [2] : vector<3x8x8xf32> to vector<3x8xf32>
    %118 = vector.shape_cast %117 : vector<3x8xf32> to vector<3x8x1xf32>
    %119 = vector.broadcast %118 : vector<3x8x1xf32> to vector<3x8x8xf32>
    %120 = arith.subf %116, %119 : vector<3x8x8xf32>
    %121 = math.exp %120 : vector<3x8x8xf32>
    %cst_38 = arith.constant dense<0.000000e+00> : vector<3x8xf32>
    %122 = vector.multi_reduction <add>, %121, %cst_38 [2] : vector<3x8x8xf32> to vector<3x8xf32>
    %123 = vector.shape_cast %122 : vector<3x8xf32> to vector<3x8x1xf32>
    %124 = arith.truncf %121 : vector<3x8x8xf32> to vector<3x8x8xbf16>
    "tpu.trace_start"() <{level = 10 : i32, message = "bqk,bkd->bqd"}> : () -> ()
    %cst_39 = arith.constant dense<0.000000e+00> : vector<3x8x8xf32>
    %125 = tpu.matmul %124, %113, %cst_39 {dimension_numbers = #tpu.dot_dimension_numbers<[2], [1], [1], [2], [0, 0, 0, 1, 1, 2], [0], [0]>} : vector<3x8x8xbf16>, vector<3x8x8xbf16>, vector<3x8x8xf32> -> vector<3x8x8xf32>
    "tpu.trace_stop"() : () -> ()
    %126 = tpu.reciprocal %123 {approx = true} : vector<3x8x1xf32> -> vector<3x8x1xf32>
    %127 = vector.broadcast %126 : vector<3x8x1xf32> to vector<3x8x8xf32>
    %128 = arith.mulf %125, %127 : vector<3x8x8xf32>
    %129 = vector.shape_cast %128 : vector<3x8x8xf32> to vector<24x8xf32>
    %130 = arith.truncf %129 : vector<24x8xf32> to vector<24x8xbf16>
    %c2 = arith.constant 2 : index
    %c0_40 = arith.constant 0 : index
    %c0_41 = arith.constant 0 : index
    %131 = vector.load %arg7[%c2, %c0_40, %c0_41] : memref<4x8x32xbf16, #tpu.memory_space<vmem>>, vector<1x8x32xbf16>
    %132 = vector.shape_cast %131 : vector<1x8x32xbf16> to vector<8x32xbf16>
    %cst_42 = arith.constant dense<0.000000e+00> : vector<24x32xf32>
    %133 = tpu.matmul %130, %132, %cst_42 {dimension_numbers = #tpu.dot_dimension_numbers<[1], [0], [0], [1], [0, 0, 1, 1], [], []>} : vector<24x8xbf16>, vector<8x32xbf16>, vector<24x32xf32> -> vector<24x32xf32>
    %134 = arith.addf %102, %133 : vector<24x32xf32>
    %135 = vector.extract_strided_slice %36 {offsets = [0, 24], sizes = [24, 8], strides = [1, 1]} : vector<24x96xf32> to vector<24x8xf32>
    %cst_43 = arith.constant 0.353553385 : f32
    %136 = vector.broadcast %cst_43 : f32 to vector<24x8xf32>
    %137 = arith.mulf %135, %136 : vector<24x8xf32>
    %138 = vector.shape_cast %137 : vector<24x8xf32> to vector<3x8x8xf32>
    %139 = arith.truncf %138 : vector<3x8x8xf32> to vector<3x8x8xbf16>
    %140 = vector.extract_strided_slice %36 {offsets = [0, 56], sizes = [24, 8], strides = [1, 1]} : vector<24x96xf32> to vector<24x8xf32>
    %141 = vector.shape_cast %140 : vector<24x8xf32> to vector<3x8x8xf32>
    %142 = arith.truncf %141 : vector<3x8x8xf32> to vector<3x8x8xbf16>
    %143 = vector.extract_strided_slice %36 {offsets = [0, 88], sizes = [24, 8], strides = [1, 1]} : vector<24x96xf32> to vector<24x8xf32>
    %144 = vector.shape_cast %143 : vector<24x8xf32> to vector<3x8x8xf32>
    %145 = arith.truncf %144 : vector<3x8x8xf32> to vector<3x8x8xbf16>
    "tpu.trace_start"() <{level = 10 : i32, message = "bqd,bkd->bqk"}> : () -> ()
    %cst_44 = arith.constant dense<0.000000e+00> : vector<3x8x8xf32>
    %146 = tpu.matmul %139, %142, %cst_44 {dimension_numbers = #tpu.dot_dimension_numbers<[2], [2], [1], [1], [0, 0, 0, 1, 1, 1], [0], [0]>} : vector<3x8x8xbf16>, vector<3x8x8xbf16>, vector<3x8x8xf32> -> vector<3x8x8xf32>
    "tpu.trace_stop"() : () -> ()
    %147 = vector.broadcast %37 : vector<3x1x8xf32> to vector<3x8x8xf32>
    %148 = arith.addf %146, %147 : vector<3x8x8xf32>
    %cst_45 = arith.constant dense<0xFF800000> : vector<3x8xf32>
    %149 = vector.multi_reduction <maximumf>, %148, %cst_45 [2] : vector<3x8x8xf32> to vector<3x8xf32>
    %150 = vector.shape_cast %149 : vector<3x8xf32> to vector<3x8x1xf32>
    %151 = vector.broadcast %150 : vector<3x8x1xf32> to vector<3x8x8xf32>
    %152 = arith.subf %148, %151 : vector<3x8x8xf32>
    %153 = math.exp %152 : vector<3x8x8xf32>
    %cst_46 = arith.constant dense<0.000000e+00> : vector<3x8xf32>
    %154 = vector.multi_reduction <add>, %153, %cst_46 [2] : vector<3x8x8xf32> to vector<3x8xf32>
    %155 = vector.shape_cast %154 : vector<3x8xf32> to vector<3x8x1xf32>
    %156 = arith.truncf %153 : vector<3x8x8xf32> to vector<3x8x8xbf16>
    "tpu.trace_start"() <{level = 10 : i32, message = "bqk,bkd->bqd"}> : () -> ()
    %cst_47 = arith.constant dense<0.000000e+00> : vector<3x8x8xf32>
    %157 = tpu.matmul %156, %145, %cst_47 {dimension_numbers = #tpu.dot_dimension_numbers<[2], [1], [1], [2], [0, 0, 0, 1, 1, 2], [0], [0]>} : vector<3x8x8xbf16>, vector<3x8x8xbf16>, vector<3x8x8xf32> -> vector<3x8x8xf32>
    "tpu.trace_stop"() : () -> ()
    %158 = tpu.reciprocal %155 {approx = true} : vector<3x8x1xf32> -> vector<3x8x1xf32>
    %159 = vector.broadcast %158 : vector<3x8x1xf32> to vector<3x8x8xf32>
    %160 = arith.mulf %157, %159 : vector<3x8x8xf32>
    %161 = vector.shape_cast %160 : vector<3x8x8xf32> to vector<24x8xf32>
    %162 = arith.truncf %161 : vector<24x8xf32> to vector<24x8xbf16>
    %c3 = arith.constant 3 : index
    %c0_48 = arith.constant 0 : index
    %c0_49 = arith.constant 0 : index
    %163 = vector.load %arg7[%c3, %c0_48, %c0_49] : memref<4x8x32xbf16, #tpu.memory_space<vmem>>, vector<1x8x32xbf16>
    %164 = vector.shape_cast %163 : vector<1x8x32xbf16> to vector<8x32xbf16>
    %cst_50 = arith.constant dense<0.000000e+00> : vector<24x32xf32>
    %165 = tpu.matmul %162, %164, %cst_50 {dimension_numbers = #tpu.dot_dimension_numbers<[1], [0], [0], [1], [0, 0, 1, 1], [], []>} : vector<24x8xbf16>, vector<8x32xbf16>, vector<24x32xf32> -> vector<24x32xf32>
    %166 = arith.addf %134, %165 : vector<24x32xf32>
    %c0_51 = arith.constant 0 : index
    %c0_52 = arith.constant 0 : index
    %167 = vector.load %arg8[%c0_51, %c0_52] : memref<1x32xf32, #tpu.memory_space<vmem>>, vector<1x32xf32>
    %168 = vector.shape_cast %167 : vector<1x32xf32> to vector<32xf32>
    %169 = vector.shape_cast %168 : vector<32xf32> to vector<1x32xf32>
    %170 = vector.broadcast %169 : vector<1x32xf32> to vector<24x32xf32>
    %171 = arith.addf %166, %170 : vector<24x32xf32>
    %172 = arith.addf %171, %0 : vector<24x32xf32>
    %173 = arith.truncf %172 : vector<24x32xf32> to vector<24x32xbf16>
    %c0_53 = arith.constant 0 : index
    %c0_54 = arith.constant 0 : index
    %174 = vector.load %arg9[%c0_53, %c0_54] : memref<32x128xbf16, #tpu.memory_space<vmem>>, vector<32x128xbf16>
    %cst_55 = arith.constant dense<0.000000e+00> : vector<24x128xf32>
    %175 = tpu.matmul %173, %174, %cst_55 {dimension_numbers = #tpu.dot_dimension_numbers<[1], [0], [0], [1], [0, 0, 1, 1], [], []>} : vector<24x32xbf16>, vector<32x128xbf16>, vector<24x128xf32> -> vector<24x128xf32>
    %c0_56 = arith.constant 0 : index
    %c0_57 = arith.constant 0 : index
    %176 = vector.load %arg10[%c0_56, %c0_57] : memref<1x128xf32, #tpu.memory_space<vmem>>, vector<1x128xf32>
    %177 = vector.shape_cast %176 : vector<1x128xf32> to vector<128xf32>
    %178 = vector.shape_cast %177 : vector<128xf32> to vector<1x128xf32>
    %179 = vector.broadcast %178 : vector<1x128xf32> to vector<24x128xf32>
    %180 = arith.addf %175, %179 : vector<24x128xf32>
    %cst_58 = arith.constant 0.000000e+00 : f32
    %181 = vector.broadcast %cst_58 : f32 to vector<24x128xf32>
    %182 = arith.maximumf %180, %181 : vector<24x128xf32>
    %183 = arith.truncf %182 : vector<24x128xf32> to vector<24x128xbf16>
    %c0_59 = arith.constant 0 : index
    %c0_60 = arith.constant 0 : index
    %184 = vector.load %arg11[%c0_59, %c0_60] : memref<128x32xbf16, #tpu.memory_space<vmem>>, vector<128x32xbf16>
    %cst_61 = arith.constant dense<0.000000e+00> : vector<24x32xf32>
    %185 = tpu.matmul %183, %184, %cst_61 {dimension_numbers = #tpu.dot_dimension_numbers<[1], [0], [0], [1], [0, 0, 1, 1], [], []>} : vector<24x128xbf16>, vector<128x32xbf16>, vector<24x32xf32> -> vector<24x32xf32>
    %c0_62 = arith.constant 0 : index
    %c0_63 = arith.constant 0 : index
    %186 = vector.load %arg12[%c0_62, %c0_63] : memref<1x32xf32, #tpu.memory_space<vmem>>, vector<1x32xf32>
    %187 = vector.shape_cast %186 : vector<1x32xf32> to vector<32xf32>
    %188 = vector.shape_cast %187 : vector<32xf32> to vector<1x32xf32>
    %189 = vector.broadcast %188 : vector<1x32xf32> to vector<24x32xf32>
    %190 = arith.addf %185, %189 : vector<24x32xf32>
    %cst_64 = arith.constant 0.000000e+00 : f32
    %191 = vector.broadcast %cst_64 : f32 to vector<24x32xf32>
    %192 = arith.maximumf %190, %191 : vector<24x32xf32>
    %c0_65 = arith.constant 0 : index
    %c0_66 = arith.constant 0 : index
    %193 = vector.load %arg13[%c0_65, %c0_66] : memref<1x32xf32, #tpu.memory_space<vmem>>, vector<1x32xf32>
    %194 = vector.shape_cast %193 : vector<1x32xf32> to vector<32xf32>
    %c0_67 = arith.constant 0 : index
    %c0_68 = arith.constant 0 : index
    %195 = vector.load %arg14[%c0_67, %c0_68] : memref<1x32xf32, #tpu.memory_space<vmem>>, vector<1x32xf32>
    %196 = vector.shape_cast %195 : vector<1x32xf32> to vector<32xf32>
    %cst_69 = arith.constant dense<0.000000e+00> : vector<24xf32>
    %197 = vector.multi_reduction <add>, %192, %cst_69 [1] : vector<24x32xf32> to vector<24xf32>
    %198 = vector.shape_cast %197 : vector<24xf32> to vector<24x1xf32>
    %cst_70 = arith.constant 3.200000e+01 : f32
    %199 = vector.broadcast %cst_70 : f32 to vector<24x1xf32>
    %200 = arith.divf %198, %199 : vector<24x1xf32>
    %201 = vector.broadcast %200 : vector<24x1xf32> to vector<24x32xf32>
    %202 = arith.subf %192, %201 : vector<24x32xf32>
    %203 = arith.mulf %202, %202 : vector<24x32xf32>
    %cst_71 = arith.constant dense<0.000000e+00> : vector<24xf32>
    %204 = vector.multi_reduction <add>, %203, %cst_71 [1] : vector<24x32xf32> to vector<24xf32>
    %205 = vector.shape_cast %204 : vector<24xf32> to vector<24x1xf32>
    %cst_72 = arith.constant 3.200000e+01 : f32
    %206 = vector.broadcast %cst_72 : f32 to vector<24x1xf32>
    %207 = arith.divf %205, %206 : vector<24x1xf32>
    %208 = vector.broadcast %200 : vector<24x1xf32> to vector<24x32xf32>
    %209 = arith.subf %192, %208 : vector<24x32xf32>
    %cst_73 = arith.constant 9.99999974E-6 : f32
    %210 = vector.broadcast %cst_73 : f32 to vector<24x1xf32>
    %211 = arith.addf %207, %210 : vector<24x1xf32>
    %212 = math.rsqrt %211 : vector<24x1xf32>
    %213 = vector.broadcast %212 : vector<24x1xf32> to vector<24x32xf32>
    %214 = arith.mulf %209, %213 : vector<24x32xf32>
    %215 = vector.shape_cast %194 : vector<32xf32> to vector<1x32xf32>
    %216 = vector.broadcast %215 : vector<1x32xf32> to vector<24x32xf32>
    %217 = arith.mulf %214, %216 : vector<24x32xf32>
    %218 = vector.shape_cast %196 : vector<32xf32> to vector<1x32xf32>
    %219 = vector.broadcast %218 : vector<1x32xf32> to vector<24x32xf32>
    %220 = arith.addf %217, %219 : vector<24x32xf32>
    %c0_74 = arith.constant 0 : index
    %c0_75 = arith.constant 0 : index
    %221 = vector.load %arg15[%c0_74, %c0_75] : memref<24x32xf32, #tpu.memory_space<vmem>>, vector<24x32xf32>
    tpu.vector_store %arg15[%c0_74, %c0_75], %220 {strides = array<i32>} : memref<24x32xf32, #tpu.memory_space<vmem>>, vector<24x32xf32>,
    return
  }
  func.func @transform_0(%arg0: i32) -> (i32, i32) {
    %c0_i32 = arith.constant 0 : i32
    %c0_i32_0 = arith.constant 0 : i32
    return %arg0, %c0_i32 : i32, i32
  }
  func.func @transform_1(%arg0: i32) -> (i32, i32, i32) {
    %c0_i32 = arith.constant 0 : i32
    %c0_i32_0 = arith.constant 0 : i32
    %c0_i32_1 = arith.constant 0 : i32
    return %arg0, %c0_i32, %c0_i32_0 : i32, i32, i32
  }
  func.func @transform_2(%arg0: i32) -> (i32, i32) {
    %c0_i32 = arith.constant 0 : i32
    %c0_i32_0 = arith.constant 0 : i32
    %c0_i32_1 = arith.constant 0 : i32
    return %c0_i32, %c0_i32_0 : i32, i32
  }
  func.func @transform_3(%arg0: i32) -> (i32, i32) {
    %c0_i32 = arith.constant 0 : i32
    %c0_i32_0 = arith.constant 0 : i32
    %c0_i32_1 = arith.constant 0 : i32
    return %c0_i32, %c0_i32_0 : i32, i32
  }
  func.func @transform_4(%arg0: i32) -> (i32, i32) {
    %c0_i32 = arith.constant 0 : i32
    %c0_i32_0 = arith.constant 0 : i32
    %c0_i32_1 = arith.constant 0 : i32
    return %c0_i32, %c0_i32_0 : i32, i32
  }
  func.func @transform_5(%arg0: i32) -> (i32, i32) {
    %c0_i32 = arith.constant 0 : i32
    %c0_i32_0 = arith.constant 0 : i32
    %c0_i32_1 = arith.constant 0 : i32
    return %c0_i32, %c0_i32_0 : i32, i32
  }
  func.func @transform_6(%arg0: i32) -> (i32, i32, i32) {
    %c0_i32 = arith.constant 0 : i32
    %c0_i32_0 = arith.constant 0 : i32
    %c0_i32_1 = arith.constant 0 : i32
    %c0_i32_2 = arith.constant 0 : i32
    return %c0_i32, %c0_i32_0, %c0_i32_1 : i32, i32, i32
  }
  func.func @transform_7(%arg0: i32) -> (i32, i32) {
    %c0_i32 = arith.constant 0 : i32
    %c0_i32_0 = arith.constant 0 : i32
    %c0_i32_1 = arith.constant 0 : i32
    return %c0_i32, %c0_i32_0 : i32, i32
  }
  func.func @transform_8(%arg0: i32) -> (i32, i32) {
    %c0_i32 = arith.constant 0 : i32
    %c0_i32_0 = arith.constant 0 : i32
    %c0_i32_1 = arith.constant 0 : i32
    return %c0_i32, %c0_i32_0 : i32, i32
  }
  func.func @transform_9(%arg0: i32) -> (i32, i32) {
    %c0_i32 = arith.constant 0 : i32
    %c0_i32_0 = arith.constant 0 : i32
    %c0_i32_1 = arith.constant 0 : i32
    return %c0_i32, %c0_i32_0 : i32, i32
  }
  func.func @transform_10(%arg0: i32) -> (i32, i32) {
    %c0_i32 = arith.constant 0 : i32
    %c0_i32_0 = arith.constant 0 : i32
    %c0_i32_1 = arith.constant 0 : i32
    return %c0_i32, %c0_i32_0 : i32, i32
  }
  func.func @transform_11(%arg0: i32) -> (i32, i32) {
    %c0_i32 = arith.constant 0 : i32
    %c0_i32_0 = arith.constant 0 : i32
    %c0_i32_1 = arith.constant 0 : i32
    return %c0_i32, %c0_i32_0 : i32, i32
  }
  func.func @transform_12(%arg0: i32) -> (i32, i32) {
    %c0_i32 = arith.constant 0 : i32
    %c0_i32_0 = arith.constant 0 : i32
    %c0_i32_1 = arith.constant 0 : i32
    return %c0_i32, %c0_i32_0 : i32, i32
  }
  func.func @transform_13(%arg0: i32) -> (i32, i32) {
    %c0_i32 = arith.constant 0 : i32
    %c0_i32_0 = arith.constant 0 : i32
    %c0_i32_1 = arith.constant 0 : i32
    return %c0_i32, %c0_i32_0 : i32, i32
  }
  func.func @transform_14(%arg0: i32) -> (i32, i32) {
    %c0_i32 = arith.constant 0 : i32
    %c0_i32_0 = arith.constant 0 : i32
    return %arg0, %c0_i32 : i32, i32
  }
}

</mosaic_0001>

<llo_original>
// kernel: tpu_custom_call.1
$region0: #{tpu_custom_call.1}
  #allocation0 [shape = 'u32[]', space=smem, size = 0x4, offset = 0x4, fixed_abs, tag = 'smem constant byte address 0x4 - core index']
  #allocation1 [shape = 'u32[72,128]{1,0:T(1,128)}', space=vmem, size = 0x9000, scoped, tag = 'internal scratch']
  %s0 = inlined_call_operand.vmem [shape: f32[48,32], index: 0, kind: input, shape index: {}]
  %s1 = inlined_call_operand.vmem [shape: f32[6,1,8], index: 1, kind: input, shape index: {}]
  %s2 = inlined_call_operand.vmem [shape: f32[1,32], index: 2, kind: input, shape index: {}]
  %s3 = inlined_call_operand.vmem [shape: f32[1,32], index: 3, kind: input, shape index: {}]
  %s4 = inlined_call_operand.vmem [shape: bf16[32,96], index: 4, kind: input, shape index: {}]
  %s5 = inlined_call_operand.vmem [shape: f32[1,96], index: 5, kind: input, shape index: {}]
  %s6 = inlined_call_operand.vmem [shape: bf16[4,8,32], index: 6, kind: input, shape index: {}]
  %s7 = inlined_call_operand.vmem [shape: f32[1,32], index: 7, kind: input, shape index: {}]
  %s8 = inlined_call_operand.vmem [shape: bf16[32,128], index: 8, kind: input, shape index: {}]
  %s9 = inlined_call_operand.vmem [shape: f32[1,128], index: 9, kind: input, shape index: {}]
  %s10 = inlined_call_operand.vmem [shape: bf16[128,32], index: 10, kind: input, shape index: {}]
  %s11 = inlined_call_operand.vmem [shape: f32[1,32], index: 11, kind: input, shape index: {}]
  %s12 = inlined_call_operand.vmem [shape: f32[1,32], index: 12, kind: input, shape index: {}]
  %s13 = inlined_call_operand.vmem [shape: f32[1,32], index: 13, kind: input, shape index: {}]
  %s14 = inlined_call_operand.vmem [shape: f32[48,32], index: 14, kind: output, shape index: {}]
  %s15 = sld [smem:[#allocation0]]
  $region89: #{tpu_custom_call.1} parent=0
    _
  %s17 = ssub.s32 1, %s15
  %s18 = scalar_select 0, %s17, %s15
  loop: start=0, step=1, limit=4
  $region2: #{tpu_custom_call.1} parent=0 // loop_pre_header
    _
  $region3: #{tpu_custom_call.1} parent=0 // loop_header
    %s20 = sphi 0, %s24
    %p21 = scmp.ge.s32.totalorder %s20, 4
    %s30 = sphi 0, %s32
    %s33 = sphi 0, %s30
    %s34 = sphi 0, %s33
    %s50 = sphi 0, %s34
    %s56 = sphi 0, %s58
    %s59 = sphi 0, %s56
    %s60 = sphi 0, %s59
    %s76 = sphi 0, %s60
    %s80 = sphi 0, %s80
    %s82 = sphi 0, %s80
    %s83 = sphi 0, %s82
    %s97 = sphi 0, %s83
    %s101 = sphi 0, %s101
    %s103 = sphi 0, %s101
    %s104 = sphi 0, %s103
    %s118 = sphi 0, %s104
    %s122 = sphi 0, %s122
    %s124 = sphi 0, %s122
    %s125 = sphi 0, %s124
    %s139 = sphi 0, %s125
    %s143 = sphi 0, %s143
    %s145 = sphi 0, %s143
    %s146 = sphi 0, %s145
    %s160 = sphi 0, %s146
    %s164 = sphi 0, %s164
    %s166 = sphi 0, %s164
    %s167 = sphi 0, %s166
    %s181 = sphi 0, %s167
    %s185 = sphi 0, %s185
    %s187 = sphi 0, %s185
    %s188 = sphi 0, %s187
    %s202 = sphi 0, %s188
    %s206 = sphi 0, %s206
    %s208 = sphi 0, %s206
    %s209 = sphi 0, %s208
    %s223 = sphi 0, %s209
    %s227 = sphi 0, %s227
    %s229 = sphi 0, %s227
    %s230 = sphi 0, %s229
    %s244 = sphi 0, %s230
    %s248 = sphi 0, %s248
    %s250 = sphi 0, %s248
    %s251 = sphi 0, %s250
    %s265 = sphi 0, %s251
    %s269 = sphi 0, %s269
    %s271 = sphi 0, %s269
    %s272 = sphi 0, %s271
    %s286 = sphi 0, %s272
    %s290 = sphi 0, %s290
    %s292 = sphi 0, %s290
    %s293 = sphi 0, %s292
    %s307 = sphi 0, %s293
    %s311 = sphi 0, %s311
    %s313 = sphi 0, %s311
    %s314 = sphi 0, %s313
    %s328 = sphi 0, %s314
    %s334 = sphi 0, %s336
    %s337 = sphi 0, %s334
    %s338 = sphi 0, %s337
    %s354 = sphi 0, %s338
  $region4: #{tpu_custom_call.1} parent=0 // loop_header_branch
    %23 = sbr.rel (%p21) target = $region8
  $region5: #{tpu_custom_call.1} parent=0 // loop_body
    %s25 = ssub.s32 %s20, 1
    %s26 = ssub.s32 %s20, 2
    %s27 = sadd.s32 %s20, 1
    %s28 = ssub.s32 %s20, %s27
    %p29 = scmp.eq.s32.totalorder %s28, 0
    %s31 = sadd.s32 %s30, 1
    %s32 = scalar_select %p29, %s30, %s31
    %p35 = pneg %p29
    %p36 = scmp.eq.s32.totalorder %s20, 1
    %p37 = por %p35, %p36
    %p38 = scmp.ne.s32.totalorder %s30, %s33
    %p39 = scmp.eq.s32.totalorder %s20, 0
    %p40 = por %p38, %p39
    %p41 = scmp.ne.s32.totalorder %s30, %s33
    %p42 = scmp.eq.s32.totalorder %s25, 1
    %p43 = por %p41, %p42
    %p44 = scmp.ne.s32.totalorder %s33, %s34
    %p45 = scmp.eq.s32.totalorder %s25, 0
    %p46 = por %p44, %p45
    %p47 = scmp.ne.s32.totalorder %s33, %s34
    %p48 = scmp.eq.s32.totalorder %s26, 1
    %p49 = por %p47, %p48
    %p51 = scmp.ne.s32.totalorder %s34, %s50
    %p52 = scmp.eq.s32.totalorder %s26, 0
    %p53 = por %p51, %p52
    %s54 = ssub.s32 %s20, %s27
    %p55 = scmp.eq.s32.totalorder %s54, 0
    %s57 = sadd.s32 %s56, 1
    %s58 = scalar_select %p55, %s56, %s57
    %p61 = pneg %p55
    %p62 = scmp.eq.s32.totalorder %s20, 1
    %p63 = por %p61, %p62
    %p64 = scmp.ne.s32.totalorder %s56, %s59
    %p65 = scmp.eq.s32.totalorder %s20, 0
    %p66 = por %p64, %p65
    %p67 = scmp.ne.s32.totalorder %s56, %s59
    %p68 = scmp.eq.s32.totalorder %s25, 1
    %p69 = por %p67, %p68
    %p70 = scmp.ne.s32.totalorder %s59, %s60
    %p71 = scmp.eq.s32.totalorder %s25, 0
    %p72 = por %p70, %p71
    %p73 = scmp.ne.s32.totalorder %s59, %s60
    %p74 = scmp.eq.s32.totalorder %s26, 1
    %p75 = por %p73, %p74
    %p77 = scmp.ne.s32.totalorder %s60, %s76
    %p78 = scmp.eq.s32.totalorder %s26, 0
    %p79 = por %p77, %p78
    %s81 = sadd.s32 %s80, 1
    %p84 = scmp.eq.s32.totalorder %s20, 1
    %p85 = scmp.ne.s32.totalorder %s80, %s82
    %p86 = scmp.eq.s32.totalorder %s20, 0
    %p87 = por %p85, %p86
    %p88 = scmp.ne.s32.totalorder %s80, %s82
    %p89 = scmp.eq.s32.totalorder %s25, 1
    %p90 = por %p88, %p89
    %p91 = scmp.ne.s32.totalorder %s82, %s83
    %p92 = scmp.eq.s32.totalorder %s25, 0
    %p93 = por %p91, %p92
    %p94 = scmp.ne.s32.totalorder %s82, %s83
    %p95 = scmp.eq.s32.totalorder %s26, 1
    %p96 = por %p94, %p95
    %p98 = scmp.ne.s32.totalorder %s83, %s97
    %p99 = scmp.eq.s32.totalorder %s26, 0
    %p100 = por %p98, %p99
    %s102 = sadd.s32 %s101, 1
    %p105 = scmp.eq.s32.totalorder %s20, 1
    %p106 = scmp.ne.s32.totalorder %s101, %s103
    %p107 = scmp.eq.s32.totalorder %s20, 0
    %p108 = por %p106, %p107
    %p109 = scmp.ne.s32.totalorder %s101, %s103
    %p110 = scmp.eq.s32.totalorder %s25, 1
    %p111 = por %p109, %p110
    %p112 = scmp.ne.s32.totalorder %s103, %s104
    %p113 = scmp.eq.s32.totalorder %s25, 0
    %p114 = por %p112, %p113
    %p115 = scmp.ne.s32.totalorder %s103, %s104
    %p116 = scmp.eq.s32.totalorder %s26, 1
    %p117 = por %p115, %p116
    %p119 = scmp.ne.s32.totalorder %s104, %s118
    %p120 = scmp.eq.s32.totalorder %s26, 0
    %p121 = por %p119, %p120
    %s123 = sadd.s32 %s122, 1
    %p126 = scmp.eq.s32.totalorder %s20, 1
    %p127 = scmp.ne.s32.totalorder %s122, %s124
    %p128 = scmp.eq.s32.totalorder %s20, 0
    %p129 = por %p127, %p128
    %p130 = scmp.ne.s32.totalorder %s122, %s124
    %p131 = scmp.eq.s32.totalorder %s25, 1
    %p132 = por %p130, %p131
    %p133 = scmp.ne.s32.totalorder %s124, %s125
    %p134 = scmp.eq.s32.totalorder %s25, 0
    %p135 = por %p133, %p134
    %p136 = scmp.ne.s32.totalorder %s124, %s125
    %p137 = scmp.eq.s32.totalorder %s26, 1
    %p138 = por %p136, %p137
    %p140 = scmp.ne.s32.totalorder %s125, %s139
    %p141 = scmp.eq.s32.totalorder %s26, 0
    %p142 = por %p140, %p141
    %s144 = sadd.s32 %s143, 1
    %p147 = scmp.eq.s32.totalorder %s20, 1
    %p148 = scmp.ne.s32.totalorder %s143, %s145
    %p149 = scmp.eq.s32.totalorder %s20, 0
    %p150 = por %p148, %p149
    %p151 = scmp.ne.s32.totalorder %s143, %s145
    %p152 = scmp.eq.s32.totalorder %s25, 1
    %p153 = por %p151, %p152
    %p154 = scmp.ne.s32.totalorder %s145, %s146
    %p155 = scmp.eq.s32.totalorder %s25, 0
    %p156 = por %p154, %p155
    %p157 = scmp.ne.s32.totalorder %s145, %s146
    %p158 = scmp.eq.s32.totalorder %s26, 1
    %p159 = por %p157, %p158
    %p161 = scmp.ne.s32.totalorder %s146, %s160
    %p162 = scmp.eq.s32.totalorder %s26, 0
    %p163 = por %p161, %p162
    %s165 = sadd.s32 %s164, 1
    %p168 = scmp.eq.s32.totalorder %s20, 1
    %p169 = scmp.ne.s32.totalorder %s164, %s166
    %p170 = scmp.eq.s32.totalorder %s20, 0
    %p171 = por %p169, %p170
    %p172 = scmp.ne.s32.totalorder %s164, %s166
    %p173 = scmp.eq.s32.totalorder %s25, 1
    %p174 = por %p172, %p173
    %p175 = scmp.ne.s32.totalorder %s166, %s167
    %p176 = scmp.eq.s32.totalorder %s25, 0
    %p177 = por %p175, %p176
    %p178 = scmp.ne.s32.totalorder %s166, %s167
    %p179 = scmp.eq.s32.totalorder %s26, 1
    %p180 = por %p178, %p179
    %p182 = scmp.ne.s32.totalorder %s167, %s181
    %p183 = scmp.eq.s32.totalorder %s26, 0
    %p184 = por %p182, %p183
    %s186 = sadd.s32 %s185, 1
    %p189 = scmp.eq.s32.totalorder %s20, 1
    %p190 = scmp.ne.s32.totalorder %s185, %s187
    %p191 = scmp.eq.s32.totalorder %s20, 0
    %p192 = por %p190, %p191
    %p193 = scmp.ne.s32.totalorder %s185, %s187
    %p194 = scmp.eq.s32.totalorder %s25, 1
    %p195 = por %p193, %p194
    %p196 = scmp.ne.s32.totalorder %s187, %s188
    %p197 = scmp.eq.s32.totalorder %s25, 0
    %p198 = por %p196, %p197
    %p199 = scmp.ne.s32.totalorder %s187, %s188
    %p200 = scmp.eq.s32.totalorder %s26, 1
    %p201 = por %p199, %p200
    %p203 = scmp.ne.s32.totalorder %s188, %s202
    %p204 = scmp.eq.s32.totalorder %s26, 0
    %p205 = por %p203, %p204
    %s207 = sadd.s32 %s206, 1
    %p210 = scmp.eq.s32.totalorder %s20, 1
    %p211 = scmp.ne.s32.totalorder %s206, %s208
    %p212 = scmp.eq.s32.totalorder %s20, 0
    %p213 = por %p211, %p212
    %p214 = scmp.ne.s32.totalorder %s206, %s208
    %p215 = scmp.eq.s32.totalorder %s25, 1
    %p216 = por %p214, %p215
    %p217 = scmp.ne.s32.totalorder %s208, %s209
    %p218 = scmp.eq.s32.totalorder %s25, 0
    %p219 = por %p217, %p218
    %p220 = scmp.ne.s32.totalorder %s208, %s209
    %p221 = scmp.eq.s32.totalorder %s26, 1
    %p222 = por %p220, %p221
    %p224 = scmp.ne.s32.totalorder %s209, %s223
    %p225 = scmp.eq.s32.totalorder %s26, 0
    %p226 = por %p224, %p225
    %s228 = sadd.s32 %s227, 1
    %p231 = scmp.eq.s32.totalorder %s20, 1
    %p232 = scmp.ne.s32.totalorder %s227, %s229
    %p233 = scmp.eq.s32.totalorder %s20, 0
    %p234 = por %p232, %p233
    %p235 = scmp.ne.s32.totalorder %s227, %s229
    %p236 = scmp.eq.s32.totalorder %s25, 1
    %p237 = por %p235, %p236
    %p238 = scmp.ne.s32.totalorder %s229, %s230
    %p239 = scmp.eq.s32.totalorder %s25, 0
    %p240 = por %p238, %p239
    %p241 = scmp.ne.s32.totalorder %s229, %s230
    %p242 = scmp.eq.s32.totalorder %s26, 1
    %p243 = por %p241, %p242
    %p245 = scmp.ne.s32.totalorder %s230, %s244
    %p246 = scmp.eq.s32.totalorder %s26, 0
    %p247 = por %p245, %p246
    %s249 = sadd.s32 %s248, 1
    %p252 = scmp.eq.s32.totalorder %s20, 1
    %p253 = scmp.ne.s32.totalorder %s248, %s250
    %p254 = scmp.eq.s32.totalorder %s20, 0
    %p255 = por %p253, %p254
    %p256 = scmp.ne.s32.totalorder %s248, %s250
    %p257 = scmp.eq.s32.totalorder %s25, 1
    %p258 = por %p256, %p257
    %p259 = scmp.ne.s32.totalorder %s250, %s251
    %p260 = scmp.eq.s32.totalorder %s25, 0
    %p261 = por %p259, %p260
    %p262 = scmp.ne.s32.totalorder %s250, %s251
    %p263 = scmp.eq.s32.totalorder %s26, 1
    %p264 = por %p262, %p263
    %p266 = scmp.ne.s32.totalorder %s251, %s265
    %p267 = scmp.eq.s32.totalorder %s26, 0
    %p268 = por %p266, %p267
    %s270 = sadd.s32 %s269, 1
    %p273 = scmp.eq.s32.totalorder %s20, 1
    %p274 = scmp.ne.s32.totalorder %s269, %s271
    %p275 = scmp.eq.s32.totalorder %s20, 0
    %p276 = por %p274, %p275
    %p277 = scmp.ne.s32.totalorder %s269, %s271
    %p278 = scmp.eq.s32.totalorder %s25, 1
    %p279 = por %p277, %p278
    %p280 = scmp.ne.s32.totalorder %s271, %s272
    %p281 = scmp.eq.s32.totalorder %s25, 0
    %p282 = por %p280, %p281
    %p283 = scmp.ne.s32.totalorder %s271, %s272
    %p284 = scmp.eq.s32.totalorder %s26, 1
    %p285 = por %p283, %p284
    %p287 = scmp.ne.s32.totalorder %s272, %s286
    %p288 = scmp.eq.s32.totalorder %s26, 0
    %p289 = por %p287, %p288
    %s291 = sadd.s32 %s290, 1
    %p294 = scmp.eq.s32.totalorder %s20, 1
    %p295 = scmp.ne.s32.totalorder %s290, %s292
    %p296 = scmp.eq.s32.totalorder %s20, 0
    %p297 = por %p295, %p296
    %p298 = scmp.ne.s32.totalorder %s290, %s292
    %p299 = scmp.eq.s32.totalorder %s25, 1
    %p300 = por %p298, %p299
    %p301 = scmp.ne.s32.totalorder %s292, %s293
    %p302 = scmp.eq.s32.totalorder %s25, 0
    %p303 = por %p301, %p302
    %p304 = scmp.ne.s32.totalorder %s292, %s293
    %p305 = scmp.eq.s32.totalorder %s26, 1
    %p306 = por %p304, %p305
    %p308 = scmp.ne.s32.totalorder %s293, %s307
    %p309 = scmp.eq.s32.totalorder %s26, 0
    %p310 = por %p308, %p309
    %s312 = sadd.s32 %s311, 1
    %p315 = scmp.eq.s32.totalorder %s20, 1
    %p316 = scmp.ne.s32.totalorder %s311, %s313
    %p317 = scmp.eq.s32.totalorder %s20, 0
    %p318 = por %p316, %p317
    %p319 = scmp.ne.s32.totalorder %s311, %s313
    %p320 = scmp.eq.s32.totalorder %s25, 1
    %p321 = por %p319, %p320
    %p322 = scmp.ne.s32.totalorder %s313, %s314
    %p323 = scmp.eq.s32.totalorder %s25, 0
    %p324 = por %p322, %p323
    %p325 = scmp.ne.s32.totalorder %s313, %s314
    %p326 = scmp.eq.s32.totalorder %s26, 1
    %p327 = por %p325, %p326
    %p329 = scmp.ne.s32.totalorder %s314, %s328
    %p330 = scmp.eq.s32.totalorder %s26, 0
    %p331 = por %p329, %p330
    %s332 = ssub.s32 %s20, %s27
    %p333 = scmp.eq.s32.totalorder %s332, 0
    %s335 = sadd.s32 %s334, 1
    %s336 = scalar_select %p333, %s334, %s335
    %p339 = pneg %p333
    %p340 = scmp.eq.s32.totalorder %s20, 1
    %p341 = por %p339, %p340
    %p342 = scmp.ne.s32.totalorder %s334, %s337
    %p343 = scmp.eq.s32.totalorder %s20, 0
    %p344 = por %p342, %p343
    %p345 = scmp.ne.s32.totalorder %s334, %s337
    %p346 = scmp.eq.s32.totalorder %s25, 1
    %p347 = por %p345, %p346
    %p348 = scmp.ne.s32.totalorder %s337, %s338
    %p349 = scmp.eq.s32.totalorder %s25, 0
    %p350 = por %p348, %p349
    %p351 = scmp.ne.s32.totalorder %s337, %s338
    %p352 = scmp.eq.s32.totalorder %s26, 1
    %p353 = por %p351, %p352
    %p355 = scmp.ne.s32.totalorder %s338, %s354
    %p356 = scmp.eq.s32.totalorder %s26, 0
    %p357 = por %p355, %p356
    %p358 = scmp.le.s32.totalorder 1, %s20
    %p359 = scmp.lt.s32.totalorder %s20, 3
    %p360 = pnand %p358, %p359
    %p361 = pneg %p360
    // Predicated region
    $region9: #{tpu_custom_call.1} parent=5 // pred_check
      _
    $region10: #{tpu_custom_call.1} parent=5 // pred_check_branch
      %363 = sbr.rel (%p360) target = $region12
    $region11: #{tpu_custom_call.1} parent=5 // pred_region
      %s364 = ssub.s32 %s20, 1
      // Predicated region
      $region13: #{tpu_custom_call.1} parent=11 // pred_check
        %p365 = pneg %p93
      $region14: #{tpu_custom_call.1} parent=11 // pred_check_branch
        %367 = sbr.rel (%p365) target = $region16
      $region15: #{tpu_custom_call.1} parent=11 // pred_region
        _
      $region16: #{tpu_custom_call.1} parent=11 // pred_fallthru
        _
      // Predicated region
      $region17: #{tpu_custom_call.1} parent=11 // pred_check
        %p368 = pneg %p114
      $region18: #{tpu_custom_call.1} parent=11 // pred_check_branch
        %370 = sbr.rel (%p368) target = $region20
      $region19: #{tpu_custom_call.1} parent=11 // pred_region
        _
      $region20: #{tpu_custom_call.1} parent=11 // pred_fallthru
        _
      // Predicated region
      $region21: #{tpu_custom_call.1} parent=11 // pred_check
        %p371 = pneg %p135
      $region22: #{tpu_custom_call.1} parent=11 // pred_check_branch
        %373 = sbr.rel (%p371) target = $region24
      $region23: #{tpu_custom_call.1} parent=11 // pred_region
        _
      $region24: #{tpu_custom_call.1} parent=11 // pred_fallthru
        _
      // Predicated region
      $region25: #{tpu_custom_call.1} parent=11 // pred_check
        %p374 = pneg %p156
      $region26: #{tpu_custom_call.1} parent=11 // pred_check_branch
        %376 = sbr.rel (%p374) target = $region28
      $region27: #{tpu_custom_call.1} parent=11 // pred_region
        _
      $region28: #{tpu_custom_call.1} parent=11 // pred_fallthru
        _
      // Predicated region
      $region29: #{tpu_custom_call.1} parent=11 // pred_check
        %p377 = pneg %p177
      $region30: #{tpu_custom_call.1} parent=11 // pred_check_branch
        %379 = sbr.rel (%p377) target = $region32
      $region31: #{tpu_custom_call.1} parent=11 // pred_region
        _
      $region32: #{tpu_custom_call.1} parent=11 // pred_fallthru
        _
      // Predicated region
      $region33: #{tpu_custom_call.1} parent=11 // pred_check
        %p380 = pneg %p198
      $region34: #{tpu_custom_call.1} parent=11 // pred_check_branch
        %382 = sbr.rel (%p380) target = $region36
      $region35: #{tpu_custom_call.1} parent=11 // pred_region
        _
      $region36: #{tpu_custom_call.1} parent=11 // pred_fallthru
        _
      // Predicated region
      $region37: #{tpu_custom_call.1} parent=11 // pred_check
        %p383 = pneg %p219
      $region38: #{tpu_custom_call.1} parent=11 // pred_check_branch
        %385 = sbr.rel (%p383) target = $region40
      $region39: #{tpu_custom_call.1} parent=11 // pred_region
        _
      $region40: #{tpu_custom_call.1} parent=11 // pred_fallthru
        _
      // Predicated region
      $region41: #{tpu_custom_call.1} parent=11 // pred_check
        %p386 = pneg %p240
      $region42: #{tpu_custom_call.1} parent=11 // pred_check_branch
        %388 = sbr.rel (%p386) target = $region44
      $region43: #{tpu_custom_call.1} parent=11 // pred_region
        _
      $region44: #{tpu_custom_call.1} parent=11 // pred_fallthru
        _
      // Predicated region
      $region45: #{tpu_custom_call.1} parent=11 // pred_check
        %p389 = pneg %p261
      $region46: #{tpu_custom_call.1} parent=11 // pred_check_branch
        %391 = sbr.rel (%p389) target = $region48
      $region47: #{tpu_custom_call.1} parent=11 // pred_region
        _
      $region48: #{tpu_custom_call.1} parent=11 // pred_fallthru
        _
      // Predicated region
      $region49: #{tpu_custom_call.1} parent=11 // pred_check
        %p392 = pneg %p282
      $region50: #{tpu_custom_call.1} parent=11 // pred_check_branch
        %394 = sbr.rel (%p392) target = $region52
      $region51: #{tpu_custom_call.1} parent=11 // pred_region
        _
      $region52: #{tpu_custom_call.1} parent=11 // pred_fallthru
        _
      // Predicated region
      $region53: #{tpu_custom_call.1} parent=11 // pred_check
        %p395 = pneg %p303
      $region54: #{tpu_custom_call.1} parent=11 // pred_check_branch
        %397 = sbr.rel (%p395) target = $region56
      $region55: #{tpu_custom_call.1} parent=11 // pred_region
        _
      $region56: #{tpu_custom_call.1} parent=11 // pred_fallthru
        _
      // Predicated region
      $region57: #{tpu_custom_call.1} parent=11 // pred_check
        %p398 = pneg %p324
      $region58: #{tpu_custom_call.1} parent=11 // pred_check_branch
        %400 = sbr.rel (%p398) target = $region60
      $region59: #{tpu_custom_call.1} parent=11 // pred_region
        _
      $region60: #{tpu_custom_call.1} parent=11 // pred_fallthru
        _
    $region12: #{tpu_custom_call.1} parent=5 // pred_fallthru
      _
    %p401 = scmp.lt.s32.totalorder %s20, 2
    // Predicated region
    $region61: #{tpu_custom_call.1} parent=5 // pred_check
      %p402 = pneg %p401
    $region62: #{tpu_custom_call.1} parent=5 // pred_check_branch
      %404 = sbr.rel (%p402) target = $region64
    $region63: #{tpu_custom_call.1} parent=5 // pred_region
      // Predicated region
      $region65: #{tpu_custom_call.1} parent=63 // pred_check
        %p405 = pneg %p40
      $region66: #{tpu_custom_call.1} parent=63 // pred_check_branch
        %407 = sbr.rel (%p405) target = $region68
      $region67: #{tpu_custom_call.1} parent=63 // pred_region
        %s408 = smul.u32 3, %s20
        %p409 = scmp.lt.s32.totalorder %s408, 5
        %s410 = scalar_select %p409, %s408, 5
        %s411 = smul.addr %s410, 8
        %s412 = scalar_lea.vmem %s0, %s411
        %s413 = smul.u32 3, %s20
      $region68: #{tpu_custom_call.1} parent=63 // pred_fallthru
        _
      // Predicated region
      $region69: #{tpu_custom_call.1} parent=63 // pred_check
        %p414 = pneg %p66
      $region70: #{tpu_custom_call.1} parent=63 // pred_check_branch
        %416 = sbr.rel (%p414) target = $region72
      $region71: #{tpu_custom_call.1} parent=63 // pred_region
        %s417 = smul.u32 3, %s20
        %p418 = scmp.lt.s32.totalorder %s417, 5
        %s419 = scalar_select %p418, %s417, 5
        %s420 = scalar_lea.vmem %s1, %s419
        %s421 = smul.u32 3, %s20
      $region72: #{tpu_custom_call.1} parent=63 // pred_fallthru
        _
    $region64: #{tpu_custom_call.1} parent=5 // pred_fallthru
      _
    %p422 = scmp.le.s32.totalorder 1, %s20
    %p423 = scmp.lt.s32.totalorder %s20, 3
    %p424 = pnand %p422, %p423
    %p425 = pneg %p424
    // Predicated region
    $region73: #{tpu_custom_call.1} parent=5 // pred_check
      _
    $region74: #{tpu_custom_call.1} parent=5 // pred_check_branch
      %427 = sbr.rel (%p424) target = $region76
    $region75: #{tpu_custom_call.1} parent=5 // pred_region
      %s428 = ssub.s32 %s20, 1
      %s429 = smul.u32 3, %s25
      %p430 = scmp.lt.s32.totalorder %s429, 5
      %s431 = scalar_select %p430, %s429, 5
      %s432 = smul.addr %s431, 8
      %s433 = scalar_lea.vmem %s0, %s432
      %p434 = pneg %p46
      %p435 = pneg %p43
      %s436 = smul.u32 3, %s25
      %p437 = scmp.lt.s32.totalorder %s436, 5
      %s438 = scalar_select %p437, %s436, 5
      %s439 = scalar_lea.vmem %s1, %s438
      %p440 = pneg %p72
      %p441 = pneg %p69
      %p442 = pneg %p93
      %p443 = pneg %p90
      %p444 = pneg %p114
      %p445 = pneg %p111
      %p446 = pneg %p135
      %p447 = pneg %p132
      %p448 = pneg %p156
      %p449 = pneg %p153
      %p450 = pneg %p177
      %p451 = pneg %p174
      %p452 = pneg %p198
      %p453 = pneg %p195
      %p454 = pneg %p219
      %p455 = pneg %p216
      %p456 = pneg %p240
      %p457 = pneg %p237
      %p458 = pneg %p261
      %p459 = pneg %p258
      %p460 = pneg %p282
      %p461 = pneg %p279
      %p462 = pneg %p303
      %p463 = pneg %p300
      %p464 = pneg %p324
      %p465 = pneg %p321
      %p466 = pneg %p350
      %p467 = pneg %p347
      %s468 = smul.u32 3, %s25
      %p469 = scmp.lt.s32.totalorder %s468, 5
      %s470 = scalar_select %p469, %s468, 5
      %s471 = smul.addr %s470, 8
      %s472 = scalar_lea.vmem %s14, %s471
      %s473 = smul.u32 3, %s25
      %p474 = scmp.lt.s32.totalorder %s473, 5
      %s475 = scalar_select %p474, %s473, 5
      %s476 = smul.addr %s475, 8
      %s477 = scalar_lea.vmem %s0, %s476
      %s478 = smul.u32 3, %s25
      %s479 = smul.u32 3, %s25
      %p480 = scmp.lt.s32.totalorder %s479, 5
      %s481 = scalar_select %p480, %s479, 5
      %s482 = scalar_lea.vmem %s1, %s481
      %s483 = smul.u32 3, %s25
      %s484 = smul.u32 3, %s25
      %p485 = scmp.lt.s32.totalorder %s484, 5
      %s486 = scalar_select %p485, %s484, 5
      %s487 = smul.addr %s486, 8
      %s488 = scalar_lea.vmem %s14, %s487
      %s489 = smul.u32 3, %s25
      %v491 = vld [vmem:[%s477] sm:$0xff]
      %v492 = vld [vmem:[%s477 + $0x8] sm:$0xff]
      %v493 = vld [vmem:[%s477 + $0x10] sm:$0xff]
      %v494 = vld [vmem:[%s2] sm:$0x1]
      %v495 = vld [vmem:[%s3] sm:$0x1]
      %vm496 = vcmask 261120
      %v497 = vsel %vm496, %v491, 0.0
      %498 = vadd.xlane.f32.xlu0 %v497
      %v499 = vpop.xlane.xlu0 %498
      %v500 = vsel %vm496, %v492, 0.0
      %501 = vadd.xlane.f32.xlu0 %v500
      %v502 = vpop.xlane.xlu0 %501
      %v503 = vsel %vm496, %v493, 0.0
      %504 = vadd.xlane.f32.xlu0 %v503
      %v505 = vpop.xlane.xlu0 %504
      %v506 = vrcp.pop 32.0
      %v507 = vmul.f32 32.0, %v506
      %v508 = vsub.f32 1.0, %v507
      %v509 = vmul.f32 %v506, %v508
      %v510 = vadd.f32 %v506, %v509
      %vm511 = vweird.f32 %v506
      %v512 = vsel %vm511, %v506, %v510
      %v513 = vmul.f32 %v499, %v512
      %v514 = vmul.f32 %v502, %v512
      %v515 = vmul.f32 %v505, %v512
      %v516 = vsub.f32 %v491, %v513
      %v517 = vsub.f32 %v492, %v514
      %v518 = vsub.f32 %v493, %v515
      %v519 = vmul.f32 %v516, %v516
      %v520 = vmul.f32 %v517, %v517
      %v521 = vmul.f32 %v518, %v518
      %v522 = vsel %vm496, %v519, 0.0
      %523 = vadd.xlane.f32.xlu0 %v522
      %v524 = vpop.xlane.xlu0 %523
      %v525 = vsel %vm496, %v520, 0.0
      %526 = vadd.xlane.f32.xlu0 %v525
      %v527 = vpop.xlane.xlu0 %526
      %v528 = vsel %vm496, %v521, 0.0
      %529 = vadd.xlane.f32.xlu0 %v528
      %v530 = vpop.xlane.xlu0 %529
      %v531 = vmul.f32 %v524, %v512
      %v532 = vmul.f32 %v527, %v512
      %v533 = vmul.f32 %v530, %v512
      %v534 = vadd.f32 %v531, 1e-05
      %v535 = vadd.f32 %v532, 1e-05
      %v536 = vadd.f32 %v533, 1e-05
      %v537 = vrsqrt.pop %v534
      %v538 = vmul.f32 %v537, %v534
      %v539 = vmul.f32 %v538, %v537
      %v540 = vmul.f32 0.5, %v539
      %v541 = vsub.f32 1.5, %v540
      %v542 = vmul.f32 %v537, %v541
      %vm543 = vweird.f32 %v534
      %vm544 = vweird.f32 %v537
      %vm545 = vmor %vm543, %vm544
      %v546 = vsel %vm545, %v537, %v542
      %v547 = vrsqrt.pop %v535
      %v548 = vmul.f32 %v547, %v535
      %v549 = vmul.f32 %v548, %v547
      %v550 = vmul.f32 0.5, %v549
      %v551 = vsub.f32 1.5, %v550
      %v552 = vmul.f32 %v547, %v551
      %vm553 = vweird.f32 %v535
      %vm554 = vweird.f32 %v547
      %vm555 = vmor %vm553, %vm554
      %v556 = vsel %vm555, %v547, %v552
      %v557 = vrsqrt.pop %v536
      %v558 = vmul.f32 %v557, %v536
      %v559 = vmul.f32 %v558, %v557
      %v560 = vmul.f32 0.5, %v559
      %v561 = vsub.f32 1.5, %v560
      %v562 = vmul.f32 %v557, %v561
      %vm563 = vweird.f32 %v536
      %vm564 = vweird.f32 %v557
      %vm565 = vmor %vm563, %vm564
      %v566 = vsel %vm565, %v557, %v562
      %v567 = vmul.f32 %v516, %v546
      %v568 = vmul.f32 %v517, %v556
      %v569 = vmul.f32 %v518, %v566
      %v571 = vperm.slane %v494, 0
      %v573 = vmul.f32 %v567, %v571
      %v574 = vmul.f32 %v568, %v571
      %v575 = vmul.f32 %v569, %v571
      %v577 = vperm.slane %v495, 0
      %v579 = vadd.f32 %v573, %v577
      %v580 = vadd.f32 %v574, %v577
      %v581 = vadd.f32 %v575, %v577
      %v582 = vpack.c.bf16 %v580, %v579
      %v583 = vpack.c.bf16 %v581, %v581
      %v584 = vld [vmem:[%s4] sm:$0xf]
      %v585 = vld [vmem:[%s4 + $0x4] sm:$0xf]
      %v586 = vld [vmem:[%s4 + $0x8] sm:$0xf]
      %v587 = vld [vmem:[%s4 + $0xc] sm:$0xf]
      %v588 = vld [vmem:[%s5] sm:$0x1]
      %v590 = vperm.slane %v588, 0
      %v596 = vunpack.c.l.b16 %v584
      %v597 = vunpack.c.l.b16 %v585
      %v598 = vunpack.c.l.b16 %v586
      %v599 = vunpack.c.l.b16 %v587
      %v600 = vpack.c.b16 %v597, %v596
      %v601 = vpack.c.b16 %v599, %v598
      %v605 = vsel %vm496, %v582, 0
      %v608 = vsel %vm496, %v583, 0
      %610 = vmatpush.bf16.msra.mxu0 0
      %611 = vmatpush.bf16.msra.mxu0 0
      %612 = vmatpush.bf16.msra.mxu0 0
      %613 = vmatpush.bf16.msra.mxu0 0
      %614 = vmatpush.bf16.msra.mxu0 0
      %615 = vmatpush.bf16.msra.mxu0 0
      %616 = vmatpush.bf16.msra.mxu0 %v601
      %617 = vmatpush.bf16.msra.mxu0 %v600
      %618 = vmatmul.bf16.gmra.mxu0 %v605
      %v619 = vpop.f32.mrf.mxu0
      %v620 = vadd.f32 %v590, %v619
      %v621 = vpop.f32.mrf.mxu0
      %v622 = vadd.f32 %v590, %v621
      %623 = vmatmul.bf16.gmra.mxu0 %v608
      %v624 = vpop.f32.mrf.mxu0
      %v625 = vadd.f32 %v590, %v624
      %v626 = vpop.f32.mrf.mxu0
      %627 = vdwg.mxu0
      %v628 = vld [vmem:[%s482] sm:$0x1]
      %v629 = vld [vmem:[%s482 + $0x1] sm:$0x1]
      %v630 = vld [vmem:[%s482 + $0x2] sm:$0x1]
      %v631 = vmul.f32 %v620, 0.35355338
      %v632 = vmul.f32 %v622, 0.35355338
      %v633 = vmul.f32 %v625, 0.35355338
      %v634 = vpack.c.bf16 %v631, %v631
      %v635 = vpack.c.bf16 %v632, %v632
      %v636 = vpack.c.bf16 %v633, %v633
      %v637 = vpack.c.bf16 %v620, %v620
      %v638 = vpack.c.bf16 %v622, %v622
      %v639 = vpack.c.bf16 %v625, %v625
      %v643 = vperm.slane %v628, 0
      %v644 = vperm.slane %v629, 0
      %v645 = vperm.slane %v630, 0
      %v650 = vunpack.c.l.b16 %v637
      %v651 = vpack.c.b16 %v650, %v650
      %652 = vrot.lane.b32.xlu0 %v651, 96
      %v653 = vpop.permute.xlu0 %652
      %vm654 = vcmask 64512
      %v656 = vsel %vm654, %v634, 0
      %v659 = vsel %vm654, %v653, 0
      %661 = vmatpush.bf16.xpose.msra.mxu0 0
      %662 = vmatpush.bf16.xpose.msra.mxu0 0
      %663 = vmatpush.bf16.xpose.msra.mxu0 0
      %664 = vmatpush.bf16.xpose.msra.mxu0 0
      %665 = vmatpush.bf16.xpose.msra.mxu0 0
      %666 = vmatpush.bf16.xpose.msra.mxu0 0
      %667 = vmatpush.bf16.xpose.msra.mxu0 0
      %668 = vmatpush.bf16.xpose.msra.mxu0 %v659
      %669 = vmatmul.bf16.gmra.mxu0 %v656
      %v670 = vpop.f32.mrf.mxu0
      %v671 = vadd.f32 %v643, %v670
      %v672 = vpop.f32.mrf.mxu0
      %673 = vdwg.mxu0
      %v675 = vunpack.c.l.b16 %v638
      %v676 = vpack.c.b16 %v675, %v675
      %677 = vrot.lane.b32.xlu0 %v676, 96
      %v678 = vpop.permute.xlu0 %677
      %v680 = vsel %vm654, %v635, 0
      %v683 = vsel %vm654, %v678, 0
      %685 = vmatpush.bf16.xpose.msra.mxu0 0
      %686 = vmatpush.bf16.xpose.msra.mxu0 0
      %687 = vmatpush.bf16.xpose.msra.mxu0 0
      %688 = vmatpush.bf16.xpose.msra.mxu0 0
      %689 = vmatpush.bf16.xpose.msra.mxu0 0
      %690 = vmatpush.bf16.xpose.msra.mxu0 0
      %691 = vmatpush.bf16.xpose.msra.mxu0 0
      %692 = vmatpush.bf16.xpose.msra.mxu0 %v683
      %693 = vmatmul.bf16.gmra.mxu0 %v680
      %v694 = vpop.f32.mrf.mxu0
      %v695 = vadd.f32 %v644, %v694
      %v696 = vpop.f32.mrf.mxu0
      %697 = vdwg.mxu0
      %v699 = vunpack.c.l.b16 %v639
      %v700 = vpack.c.b16 %v699, %v699
      %701 = vrot.lane.b32.xlu0 %v700, 96
      %v702 = vpop.permute.xlu0 %701
      %v704 = vsel %vm654, %v636, 0
      %v707 = vsel %vm654, %v702, 0
      %709 = vmatpush.bf16.xpose.msra.mxu0 0
      %710 = vmatpush.bf16.xpose.msra.mxu0 0
      %711 = vmatpush.bf16.xpose.msra.mxu0 0
      %712 = vmatpush.bf16.xpose.msra.mxu0 0
      %713 = vmatpush.bf16.xpose.msra.mxu0 0
      %714 = vmatpush.bf16.xpose.msra.mxu0 0
      %715 = vmatpush.bf16.xpose.msra.mxu0 0
      %716 = vmatpush.bf16.xpose.msra.mxu0 %v707
      %717 = vmatmul.bf16.gmra.mxu0 %v704
      %v718 = vpop.f32.mrf.mxu0
      %v719 = vadd.f32 %v645, %v718
      %v720 = vpop.f32.mrf.mxu0
      %721 = vdwg.mxu0
      %v722 = vsel %vm654, %v671, -inf
      %723 = vmax.xlane.f32.xlu0 %v722
      %v724 = vpop.xlane.xlu0 %723
      %v725 = vsel %vm654, %v695, -inf
      %726 = vmax.xlane.f32.xlu0 %v725
      %v727 = vpop.xlane.xlu0 %726
      %v728 = vsel %vm654, %v719, -inf
      %729 = vmax.xlane.f32.xlu0 %v728
      %v730 = vpop.xlane.xlu0 %729
      %v731 = vsub.f32 %v671, %v724
      %v732 = vsub.f32 %v695, %v727
      %v733 = vsub.f32 %v719, %v730
      %v734 = vmul.f32 %v731, 1.442695
      %v735 = vpow.pop %v734
      %v736 = vmul.f32 %v732, 1.442695
      %v737 = vpow.pop %v736
      %v738 = vmul.f32 %v733, 1.442695
      %v739 = vpow.pop %v738
      %v740 = vsel %vm654, %v735, 0.0
      %741 = vadd.xlane.f32.xlu0 %v740
      %v742 = vpop.xlane.xlu0 %741
      %v743 = vsel %vm654, %v737, 0.0
      %744 = vadd.xlane.f32.xlu0 %v743
      %v745 = vpop.xlane.xlu0 %744
      %v746 = vsel %vm654, %v739, 0.0
      %747 = vadd.xlane.f32.xlu0 %v746
      %v748 = vpop.xlane.xlu0 %747
      %v749 = vpack.c.bf16 %v735, %v735
      %v750 = vpack.c.bf16 %v737, %v737
      %v751 = vpack.c.bf16 %v739, %v739
      %752 = vrot.lane.b32.xlu0 %v651, 64
      %v753 = vpop.permute.xlu0 %752
      %v755 = vsel %vm654, %v749, 0
      %vm757 = vcmask 1043456
      %v759 = vsel %vm757, %v753, 0
      %761 = vmatpush.bf16.msra.mxu0 0
      %762 = vmatpush.bf16.msra.mxu0 0
      %763 = vmatpush.bf16.msra.mxu0 0
      %764 = vmatpush.bf16.msra.mxu0 0
      %765 = vmatpush.bf16.msra.mxu0 0
      %766 = vmatpush.bf16.msra.mxu0 0
      %767 = vmatpush.bf16.msra.mxu0 0
      %768 = vmatpush.bf16.msra.mxu0 %v759
      %769 = vmatmul.bf16.gmra.mxu0 %v755
      %v770 = vpop.f32.mrf.mxu0
      %v771 = vadd.f32 0.0, %v770
      %v772 = vpop.f32.mrf.mxu0
      %773 = vdwg.mxu0
      %774 = vrot.lane.b32.xlu0 %v676, 64
      %v775 = vpop.permute.xlu0 %774
      %v777 = vsel %vm654, %v750, 0
      %v780 = vsel %vm757, %v775, 0
      %782 = vmatpush.bf16.msra.mxu0 0
      %783 = vmatpush.bf16.msra.mxu0 0
      %784 = vmatpush.bf16.msra.mxu0 0
      %785 = vmatpush.bf16.msra.mxu0 0
      %786 = vmatpush.bf16.msra.mxu0 0
      %787 = vmatpush.bf16.msra.mxu0 0
      %788 = vmatpush.bf16.msra.mxu0 0
      %789 = vmatpush.bf16.msra.mxu0 %v780
      %790 = vmatmul.bf16.gmra.mxu0 %v777
      %v791 = vpop.f32.mrf.mxu0
      %v792 = vadd.f32 0.0, %v791
      %v793 = vpop.f32.mrf.mxu0
      %794 = vdwg.mxu0
      %795 = vrot.lane.b32.xlu0 %v700, 64
      %v796 = vpop.permute.xlu0 %795
      %v798 = vsel %vm654, %v751, 0
      %v801 = vsel %vm757, %v796, 0
      %803 = vmatpush.bf16.msra.mxu0 0
      %804 = vmatpush.bf16.msra.mxu0 0
      %805 = vmatpush.bf16.msra.mxu0 0
      %806 = vmatpush.bf16.msra.mxu0 0
      %807 = vmatpush.bf16.msra.mxu0 0
      %808 = vmatpush.bf16.msra.mxu0 0
      %809 = vmatpush.bf16.msra.mxu0 0
      %810 = vmatpush.bf16.msra.mxu0 %v801
      %811 = vmatmul.bf16.gmra.mxu0 %v798
      %v812 = vpop.f32.mrf.mxu0
      %v813 = vadd.f32 0.0, %v812
      %v814 = vpop.f32.mrf.mxu0
      %815 = vdwg.mxu0
      %v816 = vrcp.pop %v742
      %v817 = vrcp.pop %v745
      %v818 = vrcp.pop %v748
      %v819 = vmul.f32 %v771, %v816
      %v820 = vmul.f32 %v792, %v817
      %v821 = vmul.f32 %v813, %v818
      %v822 = vpack.c.bf16 %v820, %v819
      %v823 = vpack.c.bf16 %v821, %v821
      %v824 = vld [vmem:[%s6] sm:$0xf]
      %v826 = vunpack.c.l.b16 %v634
      %v827 = vpack.c.b16 %v826, %v826
      %828 = vrot.lane.b32.xlu0 %v827, 120
      %v829 = vpop.permute.xlu0 %828
      %830 = vrot.lane.b32.xlu0 %v651, 88
      %v831 = vpop.permute.xlu0 %830
      %v833 = vsel %vm654, %v829, 0
      %v836 = vsel %vm654, %v831, 0
      %838 = vmatpush.bf16.xpose.msra.mxu0 0
      %839 = vmatpush.bf16.xpose.msra.mxu0 0
      %840 = vmatpush.bf16.xpose.msra.mxu0 0
      %841 = vmatpush.bf16.xpose.msra.mxu0 0
      %842 = vmatpush.bf16.xpose.msra.mxu0 0
      %843 = vmatpush.bf16.xpose.msra.mxu0 0
      %844 = vmatpush.bf16.xpose.msra.mxu0 0
      %845 = vmatpush.bf16.xpose.msra.mxu0 %v836
      %846 = vmatmul.bf16.gmra.mxu0 %v833
      %v847 = vpop.f32.mrf.mxu0
      %v848 = vadd.f32 %v643, %v847
      %v849 = vpop.f32.mrf.mxu0
      %850 = vdwg.mxu0
      %v852 = vunpack.c.l.b16 %v635
      %v853 = vpack.c.b16 %v852, %v852
      %854 = vrot.lane.b32.xlu0 %v853, 120
      %v855 = vpop.permute.xlu0 %854
      %856 = vrot.lane.b32.xlu0 %v676, 88
      %v857 = vpop.permute.xlu0 %856
      %v859 = vsel %vm654, %v855, 0
      %v862 = vsel %vm654, %v857, 0
      %864 = vmatpush.bf16.xpose.msra.mxu0 0
      %865 = vmatpush.bf16.xpose.msra.mxu0 0
      %866 = vmatpush.bf16.xpose.msra.mxu0 0
      %867 = vmatpush.bf16.xpose.msra.mxu0 0
      %868 = vmatpush.bf16.xpose.msra.mxu0 0
      %869 = vmatpush.bf16.xpose.msra.mxu0 0
      %870 = vmatpush.bf16.xpose.msra.mxu0 0
      %871 = vmatpush.bf16.xpose.msra.mxu0 %v862
      %872 = vmatmul.bf16.gmra.mxu0 %v859
      %v873 = vpop.f32.mrf.mxu0
      %v874 = vadd.f32 %v644, %v873
      %v875 = vpop.f32.mrf.mxu0
      %876 = vdwg.mxu0
      %v878 = vunpack.c.l.b16 %v636
      %v879 = vpack.c.b16 %v878, %v878
      %880 = vrot.lane.b32.xlu0 %v879, 120
      %v881 = vpop.permute.xlu0 %880
      %882 = vrot.lane.b32.xlu0 %v700, 88
      %v883 = vpop.permute.xlu0 %882
      %v885 = vsel %vm654, %v881, 0
      %v888 = vsel %vm654, %v883, 0
      %890 = vmatpush.bf16.xpose.msra.mxu0 0
      %891 = vmatpush.bf16.xpose.msra.mxu0 0
      %892 = vmatpush.bf16.xpose.msra.mxu0 0
      %893 = vmatpush.bf16.xpose.msra.mxu0 0
      %894 = vmatpush.bf16.xpose.msra.mxu0 0
      %895 = vmatpush.bf16.xpose.msra.mxu0 0
      %896 = vmatpush.bf16.xpose.msra.mxu0 0
      %897 = vmatpush.bf16.xpose.msra.mxu0 %v888
      %898 = vmatmul.bf16.gmra.mxu0 %v885
      %v899 = vpop.f32.mrf.mxu0
      %v900 = vadd.f32 %v645, %v899
      %v901 = vpop.f32.mrf.mxu0
      %902 = vdwg.mxu0
      %v903 = vsel %vm654, %v848, -inf
      %904 = vmax.xlane.f32.xlu0 %v903
      %v905 = vpop.xlane.xlu0 %904
      %v906 = vsel %vm654, %v874, -inf
      %907 = vmax.xlane.f32.xlu0 %v906
      %v908 = vpop.xlane.xlu0 %907
      %v909 = vsel %vm654, %v900, -inf
      %910 = vmax.xlane.f32.xlu0 %v909
      %v911 = vpop.xlane.xlu0 %910
      %v912 = vsub.f32 %v848, %v905
      %v913 = vsub.f32 %v874, %v908
      %v914 = vsub.f32 %v900, %v911
      %v915 = vmul.f32 %v912, 1.442695
      %v916 = vpow.pop %v915
      %v917 = vmul.f32 %v913, 1.442695
      %v918 = vpow.pop %v917
      %v919 = vmul.f32 %v914, 1.442695
      %v920 = vpow.pop %v919
      %v921 = vsel %vm654, %v916, 0.0
      %922 = vadd.xlane.f32.xlu0 %v921
      %v923 = vpop.xlane.xlu0 %922
      %v924 = vsel %vm654, %v918, 0.0
      %925 = vadd.xlane.f32.xlu0 %v924
      %v926 = vpop.xlane.xlu0 %925
      %v927 = vsel %vm654, %v920, 0.0
      %928 = vadd.xlane.f32.xlu0 %v927
      %v929 = vpop.xlane.xlu0 %928
      %v930 = vpack.c.bf16 %v916, %v916
      %v931 = vpack.c.bf16 %v918, %v918
      %v932 = vpack.c.bf16 %v920, %v920
      %933 = vrot.lane.b32.xlu0 %v651, 56
      %v934 = vpop.permute.xlu0 %933
      %v936 = vsel %vm654, %v930, 0
      %v939 = vsel %vm757, %v934, 0
      %941 = vmatpush.bf16.msra.mxu0 0
      %942 = vmatpush.bf16.msra.mxu0 0
      %943 = vmatpush.bf16.msra.mxu0 0
      %944 = vmatpush.bf16.msra.mxu0 0
      %945 = vmatpush.bf16.msra.mxu0 0
      %946 = vmatpush.bf16.msra.mxu0 0
      %947 = vmatpush.bf16.msra.mxu0 0
      %948 = vmatpush.bf16.msra.mxu0 %v939
      %949 = vmatmul.bf16.gmra.mxu0 %v936
      %v950 = vpop.f32.mrf.mxu0
      %v951 = vadd.f32 0.0, %v950
      %v952 = vpop.f32.mrf.mxu0
      %953 = vdwg.mxu0
      %954 = vrot.lane.b32.xlu0 %v676, 56
      %v955 = vpop.permute.xlu0 %954
      %v957 = vsel %vm654, %v931, 0
      %v960 = vsel %vm757, %v955, 0
      %962 = vmatpush.bf16.msra.mxu0 0
      %963 = vmatpush.bf16.msra.mxu0 0
      %964 = vmatpush.bf16.msra.mxu0 0
      %965 = vmatpush.bf16.msra.mxu0 0
      %966 = vmatpush.bf16.msra.mxu0 0
      %967 = vmatpush.bf16.msra.mxu0 0
      %968 = vmatpush.bf16.msra.mxu0 0
      %969 = vmatpush.bf16.msra.mxu0 %v960
      %970 = vmatmul.bf16.gmra.mxu0 %v957
      %v971 = vpop.f32.mrf.mxu0
      %v972 = vadd.f32 0.0, %v971
      %v973 = vpop.f32.mrf.mxu0
      %974 = vdwg.mxu0
      %975 = vrot.lane.b32.xlu0 %v700, 56
      %v976 = vpop.permute.xlu0 %975
      %v978 = vsel %vm654, %v932, 0
      %v981 = vsel %vm757, %v976, 0
      %983 = vmatpush.bf16.msra.mxu0 0
      %984 = vmatpush.bf16.msra.mxu0 0
      %985 = vmatpush.bf16.msra.mxu0 0
      %986 = vmatpush.bf16.msra.mxu0 0
      %987 = vmatpush.bf16.msra.mxu0 0
      %988 = vmatpush.bf16.msra.mxu0 0
      %989 = vmatpush.bf16.msra.mxu0 0
      %990 = vmatpush.bf16.msra.mxu0 %v981
      %991 = vmatmul.bf16.gmra.mxu0 %v978
      %v992 = vpop.f32.mrf.mxu0
      %v993 = vadd.f32 0.0, %v992
      %v994 = vpop.f32.mrf.mxu0
      %995 = vdwg.mxu0
      %v996 = vrcp.pop %v923
      %v997 = vrcp.pop %v926
      %v998 = vrcp.pop %v929
      %v999 = vmul.f32 %v951, %v996
      %v1000 = vmul.f32 %v972, %v997
      %v1001 = vmul.f32 %v993, %v998
      %v1002 = vpack.c.bf16 %v1000, %v999
      %v1003 = vpack.c.bf16 %v1001, %v1001
      %s1004 = scalar_lea.vmem %s6, 4
      %v1005 = vld [vmem:[%s1004] sm:$0xf]
      %v1007 = vsel %vm654, %v1002, 0
      %v1010 = vsel %vm654, %v1003, 0
      %v1013 = vsel %vm757, %v1005, 0
      %1015 = vmatpush.bf16.msra.mxu0 0
      %1016 = vmatpush.bf16.msra.mxu0 0
      %1017 = vmatpush.bf16.msra.mxu0 0
      %1018 = vmatpush.bf16.msra.mxu0 0
      %1019 = vmatpush.bf16.msra.mxu0 0
      %1020 = vmatpush.bf16.msra.mxu0 0
      %1021 = vmatpush.bf16.msra.mxu0 0
      %1022 = vmatpush.bf16.msra.mxu0 %v1013
      %1023 = vmatmul.bf16.gmra.mxu0 %v1007
      %v1024 = vpop.f32.mrf.mxu0
      %v1025 = vadd.f32 0.0, %v1024
      %v1026 = vpop.f32.mrf.mxu0
      %v1027 = vadd.f32 0.0, %v1026
      %1028 = vmatmul.bf16.gmra.mxu0 %v1010
      %v1029 = vpop.f32.mrf.mxu0
      %v1030 = vadd.f32 0.0, %v1029
      %v1031 = vpop.f32.mrf.mxu0
      %1032 = vdwg.mxu0
      %v1034 = vsel %vm654, %v822, 0
      %v1037 = vsel %vm654, %v823, 0
      %v1040 = vsel %vm757, %v824, 0
      %1042 = vmatpush.bf16.msra.mxu0 0
      %1043 = vmatpush.bf16.msra.mxu0 0
      %1044 = vmatpush.bf16.msra.mxu0 0
      %1045 = vmatpush.bf16.msra.mxu0 0
      %1046 = vmatpush.bf16.msra.mxu0 0
      %1047 = vmatpush.bf16.msra.mxu0 0
      %1048 = vmatpush.bf16.msra.mxu0 0
      %1049 = vmatpush.bf16.msra.mxu0 %v1040
      %1050 = vmatmul.bf16.gmra.mxu0 %v1034
      %v1051 = vpop.f32.mrf.mxu0
      %v1052 = vadd.f32 %v1025, %v1051
      %v1053 = vpop.f32.mrf.mxu0
      %v1054 = vadd.f32 %v1027, %v1053
      %1055 = vmatmul.bf16.gmra.mxu0 %v1037
      %v1056 = vpop.f32.mrf.mxu0
      %v1057 = vadd.f32 %v1030, %v1056
      %v1058 = vpop.f32.mrf.mxu0
      %1059 = vdwg.mxu0
      %1060 = vrot.lane.b32.xlu0 %v827, 112
      %v1061 = vpop.permute.xlu0 %1060
      %1062 = vrot.lane.b32.xlu0 %v651, 80
      %v1063 = vpop.permute.xlu0 %1062
      %v1065 = vsel %vm654, %v1061, 0
      %v1068 = vsel %vm654, %v1063, 0
      %1070 = vmatpush.bf16.xpose.msra.mxu0 0
      %1071 = vmatpush.bf16.xpose.msra.mxu0 0
      %1072 = vmatpush.bf16.xpose.msra.mxu0 0
      %1073 = vmatpush.bf16.xpose.msra.mxu0 0
      %1074 = vmatpush.bf16.xpose.msra.mxu0 0
      %1075 = vmatpush.bf16.xpose.msra.mxu0 0
      %1076 = vmatpush.bf16.xpose.msra.mxu0 0
      %1077 = vmatpush.bf16.xpose.msra.mxu0 %v1068
      %1078 = vmatmul.bf16.gmra.mxu0 %v1065
      %v1079 = vpop.f32.mrf.mxu0
      %v1080 = vadd.f32 %v643, %v1079
      %v1081 = vpop.f32.mrf.mxu0
      %1082 = vdwg.mxu0
      %1083 = vrot.lane.b32.xlu0 %v853, 112
      %v1084 = vpop.permute.xlu0 %1083
      %1085 = vrot.lane.b32.xlu0 %v676, 80
      %v1086 = vpop.permute.xlu0 %1085
      %v1088 = vsel %vm654, %v1084, 0
      %v1091 = vsel %vm654, %v1086, 0
      %1093 = vmatpush.bf16.xpose.msra.mxu0 0
      %1094 = vmatpush.bf16.xpose.msra.mxu0 0
      %1095 = vmatpush.bf16.xpose.msra.mxu0 0
      %1096 = vmatpush.bf16.xpose.msra.mxu0 0
      %1097 = vmatpush.bf16.xpose.msra.mxu0 0
      %1098 = vmatpush.bf16.xpose.msra.mxu0 0
      %1099 = vmatpush.bf16.xpose.msra.mxu0 0
      %1100 = vmatpush.bf16.xpose.msra.mxu0 %v1091
      %1101 = vmatmul.bf16.gmra.mxu0 %v1088
      %v1102 = vpop.f32.mrf.mxu0
      %v1103 = vadd.f32 %v644, %v1102
      %v1104 = vpop.f32.mrf.mxu0
      %1105 = vdwg.mxu0
      %1106 = vrot.lane.b32.xlu0 %v879, 112
      %v1107 = vpop.permute.xlu0 %1106
      %1108 = vrot.lane.b32.xlu0 %v700, 80
      %v1109 = vpop.permute.xlu0 %1108
      %v1111 = vsel %vm654, %v1107, 0
      %v1114 = vsel %vm654, %v1109, 0
      %1116 = vmatpush.bf16.xpose.msra.mxu0 0
      %1117 = vmatpush.bf16.xpose.msra.mxu0 0
      %1118 = vmatpush.bf16.xpose.msra.mxu0 0
      %1119 = vmatpush.bf16.xpose.msra.mxu0 0
      %1120 = vmatpush.bf16.xpose.msra.mxu0 0
      %1121 = vmatpush.bf16.xpose.msra.mxu0 0
      %1122 = vmatpush.bf16.xpose.msra.mxu0 0
      %1123 = vmatpush.bf16.xpose.msra.mxu0 %v1114
      %1124 = vmatmul.bf16.gmra.mxu0 %v1111
      %v1125 = vpop.f32.mrf.mxu0
      %v1126 = vadd.f32 %v645, %v1125
      %v1127 = vpop.f32.mrf.mxu0
      %1128 = vdwg.mxu0
      %v1129 = vsel %vm654, %v1080, -inf
      %1130 = vmax.xlane.f32.xlu0 %v1129
      %v1131 = vpop.xlane.xlu0 %1130
      %v1132 = vsel %vm654, %v1103, -inf
      %1133 = vmax.xlane.f32.xlu0 %v1132
      %v1134 = vpop.xlane.xlu0 %1133
      %v1135 = vsel %vm654, %v1126, -inf
      %1136 = vmax.xlane.f32.xlu0 %v1135
      %v1137 = vpop.xlane.xlu0 %1136
      %v1138 = vsub.f32 %v1080, %v1131
      %v1139 = vsub.f32 %v1103, %v1134
      %v1140 = vsub.f32 %v1126, %v1137
      %v1141 = vmul.f32 %v1138, 1.442695
      %v1142 = vpow.pop %v1141
      %v1143 = vmul.f32 %v1139, 1.442695
      %v1144 = vpow.pop %v1143
      %v1145 = vmul.f32 %v1140, 1.442695
      %v1146 = vpow.pop %v1145
      %v1147 = vsel %vm654, %v1142, 0.0
      %1148 = vadd.xlane.f32.xlu0 %v1147
      %v1149 = vpop.xlane.xlu0 %1148
      %v1150 = vsel %vm654, %v1144, 0.0
      %1151 = vadd.xlane.f32.xlu0 %v1150
      %v1152 = vpop.xlane.xlu0 %1151
      %v1153 = vsel %vm654, %v1146, 0.0
      %1154 = vadd.xlane.f32.xlu0 %v1153
      %v1155 = vpop.xlane.xlu0 %1154
      %v1156 = vpack.c.bf16 %v1142, %v1142
      %v1157 = vpack.c.bf16 %v1144, %v1144
      %v1158 = vpack.c.bf16 %v1146, %v1146
      %1159 = vrot.lane.b32.xlu0 %v651, 48
      %v1160 = vpop.permute.xlu0 %1159
      %v1162 = vsel %vm654, %v1156, 0
      %v1165 = vsel %vm757, %v1160, 0
      %1167 = vmatpush.bf16.msra.mxu0 0
      %1168 = vmatpush.bf16.msra.mxu0 0
      %1169 = vmatpush.bf16.msra.mxu0 0
      %1170 = vmatpush.bf16.msra.mxu0 0
      %1171 = vmatpush.bf16.msra.mxu0 0
      %1172 = vmatpush.bf16.msra.mxu0 0
      %1173 = vmatpush.bf16.msra.mxu0 0
      %1174 = vmatpush.bf16.msra.mxu0 %v1165
      %1175 = vmatmul.bf16.gmra.mxu0 %v1162
      %v1176 = vpop.f32.mrf.mxu0
      %v1177 = vadd.f32 0.0, %v1176
      %v1178 = vpop.f32.mrf.mxu0
      %1179 = vdwg.mxu0
      %1180 = vrot.lane.b32.xlu0 %v676, 48
      %v1181 = vpop.permute.xlu0 %1180
      %v1183 = vsel %vm654, %v1157, 0
      %v1186 = vsel %vm757, %v1181, 0
      %1188 = vmatpush.bf16.msra.mxu0 0
      %1189 = vmatpush.bf16.msra.mxu0 0
      %1190 = vmatpush.bf16.msra.mxu0 0
      %1191 = vmatpush.bf16.msra.mxu0 0
      %1192 = vmatpush.bf16.msra.mxu0 0
      %1193 = vmatpush.bf16.msra.mxu0 0
      %1194 = vmatpush.bf16.msra.mxu0 0
      %1195 = vmatpush.bf16.msra.mxu0 %v1186
      %1196 = vmatmul.bf16.gmra.mxu0 %v1183
      %v1197 = vpop.f32.mrf.mxu0
      %v1198 = vadd.f32 0.0, %v1197
      %v1199 = vpop.f32.mrf.mxu0
      %1200 = vdwg.mxu0
      %1201 = vrot.lane.b32.xlu0 %v700, 48
      %v1202 = vpop.permute.xlu0 %1201
      %v1204 = vsel %vm654, %v1158, 0
      %v1207 = vsel %vm757, %v1202, 0
      %1209 = vmatpush.bf16.msra.mxu0 0
      %1210 = vmatpush.bf16.msra.mxu0 0
      %1211 = vmatpush.bf16.msra.mxu0 0
      %1212 = vmatpush.bf16.msra.mxu0 0
      %1213 = vmatpush.bf16.msra.mxu0 0
      %1214 = vmatpush.bf16.msra.mxu0 0
      %1215 = vmatpush.bf16.msra.mxu0 0
      %1216 = vmatpush.bf16.msra.mxu0 %v1207
      %1217 = vmatmul.bf16.gmra.mxu0 %v1204
      %v1218 = vpop.f32.mrf.mxu0
      %v1219 = vadd.f32 0.0, %v1218
      %v1220 = vpop.f32.mrf.mxu0
      %1221 = vdwg.mxu0
      %v1222 = vrcp.pop %v1149
      %v1223 = vrcp.pop %v1152
      %v1224 = vrcp.pop %v1155
      %v1225 = vmul.f32 %v1177, %v1222
      %v1226 = vmul.f32 %v1198, %v1223
      %v1227 = vmul.f32 %v1219, %v1224
      %v1228 = vpack.c.bf16 %v1226, %v1225
      %v1229 = vpack.c.bf16 %v1227, %v1227
      %s1230 = scalar_lea.vmem %s6, 8
      %v1231 = vld [vmem:[%s1230] sm:$0xf]
      %v1233 = vsel %vm654, %v1228, 0
      %v1236 = vsel %vm654, %v1229, 0
      %v1239 = vsel %vm757, %v1231, 0
      %1241 = vmatpush.bf16.msra.mxu0 0
      %1242 = vmatpush.bf16.msra.mxu0 0
      %1243 = vmatpush.bf16.msra.mxu0 0
      %1244 = vmatpush.bf16.msra.mxu0 0
      %1245 = vmatpush.bf16.msra.mxu0 0
      %1246 = vmatpush.bf16.msra.mxu0 0
      %1247 = vmatpush.bf16.msra.mxu0 0
      %1248 = vmatpush.bf16.msra.mxu0 %v1239
      %1249 = vmatmul.bf16.gmra.mxu0 %v1233
      %v1250 = vpop.f32.mrf.mxu0
      %v1251 = vadd.f32 0.0, %v1250
      %v1252 = vpop.f32.mrf.mxu0
      %v1253 = vadd.f32 0.0, %v1252
      %1254 = vmatmul.bf16.gmra.mxu0 %v1236
      %v1255 = vpop.f32.mrf.mxu0
      %v1256 = vadd.f32 0.0, %v1255
      %v1257 = vpop.f32.mrf.mxu0
      %1258 = vdwg.mxu0
      %v1259 = vadd.f32 %v1052, %v1251
      %v1260 = vadd.f32 %v1054, %v1253
      %v1261 = vadd.f32 %v1057, %v1256
      %1262 = vrot.lane.b32.xlu0 %v827, 104
      %v1263 = vpop.permute.xlu0 %1262
      %1264 = vrot.lane.b32.xlu0 %v651, 72
      %v1265 = vpop.permute.xlu0 %1264
      %v1267 = vsel %vm654, %v1263, 0
      %v1270 = vsel %vm654, %v1265, 0
      %1272 = vmatpush.bf16.xpose.msra.mxu0 0
      %1273 = vmatpush.bf16.xpose.msra.mxu0 0
      %1274 = vmatpush.bf16.xpose.msra.mxu0 0
      %1275 = vmatpush.bf16.xpose.msra.mxu0 0
      %1276 = vmatpush.bf16.xpose.msra.mxu0 0
      %1277 = vmatpush.bf16.xpose.msra.mxu0 0
      %1278 = vmatpush.bf16.xpose.msra.mxu0 0
      %1279 = vmatpush.bf16.xpose.msra.mxu0 %v1270
      %1280 = vmatmul.bf16.gmra.mxu0 %v1267
      %v1281 = vpop.f32.mrf.mxu0
      %v1282 = vadd.f32 %v643, %v1281
      %v1283 = vpop.f32.mrf.mxu0
      %1284 = vdwg.mxu0
      %1285 = vrot.lane.b32.xlu0 %v853, 104
      %v1286 = vpop.permute.xlu0 %1285
      %1287 = vrot.lane.b32.xlu0 %v676, 72
      %v1288 = vpop.permute.xlu0 %1287
      %v1290 = vsel %vm654, %v1286, 0
      %v1293 = vsel %vm654, %v1288, 0
      %1295 = vmatpush.bf16.xpose.msra.mxu0 0
      %1296 = vmatpush.bf16.xpose.msra.mxu0 0
      %1297 = vmatpush.bf16.xpose.msra.mxu0 0
      %1298 = vmatpush.bf16.xpose.msra.mxu0 0
      %1299 = vmatpush.bf16.xpose.msra.mxu0 0
      %1300 = vmatpush.bf16.xpose.msra.mxu0 0
      %1301 = vmatpush.bf16.xpose.msra.mxu0 0
      %1302 = vmatpush.bf16.xpose.msra.mxu0 %v1293
      %1303 = vmatmul.bf16.gmra.mxu0 %v1290
      %v1304 = vpop.f32.mrf.mxu0
      %v1305 = vadd.f32 %v644, %v1304
      %v1306 = vpop.f32.mrf.mxu0
      %1307 = vdwg.mxu0
      %1308 = vrot.lane.b32.xlu0 %v879, 104
      %v1309 = vpop.permute.xlu0 %1308
      %1310 = vrot.lane.b32.xlu0 %v700, 72
      %v1311 = vpop.permute.xlu0 %1310
      %v1313 = vsel %vm654, %v1309, 0
      %v1316 = vsel %vm654, %v1311, 0
      %1318 = vmatpush.bf16.xpose.msra.mxu0 0
      %1319 = vmatpush.bf16.xpose.msra.mxu0 0
      %1320 = vmatpush.bf16.xpose.msra.mxu0 0
      %1321 = vmatpush.bf16.xpose.msra.mxu0 0
      %1322 = vmatpush.bf16.xpose.msra.mxu0 0
      %1323 = vmatpush.bf16.xpose.msra.mxu0 0
      %1324 = vmatpush.bf16.xpose.msra.mxu0 0
      %1325 = vmatpush.bf16.xpose.msra.mxu0 %v1316
      %1326 = vmatmul.bf16.gmra.mxu0 %v1313
      %v1327 = vpop.f32.mrf.mxu0
      %v1328 = vadd.f32 %v645, %v1327
      %v1329 = vpop.f32.mrf.mxu0
      %1330 = vdwg.mxu0
      %v1331 = vsel %vm654, %v1282, -inf
      %1332 = vmax.xlane.f32.xlu0 %v1331
      %v1333 = vpop.xlane.xlu0 %1332
      %v1334 = vsel %vm654, %v1305, -inf
      %1335 = vmax.xlane.f32.xlu0 %v1334
      %v1336 = vpop.xlane.xlu0 %1335
      %v1337 = vsel %vm654, %v1328, -inf
      %1338 = vmax.xlane.f32.xlu0 %v1337
      %v1339 = vpop.xlane.xlu0 %1338
      %v1340 = vsub.f32 %v1282, %v1333
      %v1341 = vsub.f32 %v1305, %v1336
      %v1342 = vsub.f32 %v1328, %v1339
      %v1343 = vmul.f32 %v1340, 1.442695
      %v1344 = vpow.pop %v1343
      %v1345 = vmul.f32 %v1341, 1.442695
      %v1346 = vpow.pop %v1345
      %v1347 = vmul.f32 %v1342, 1.442695
      %v1348 = vpow.pop %v1347
      %v1349 = vsel %vm654, %v1344, 0.0
      %1350 = vadd.xlane.f32.xlu0 %v1349
      %v1351 = vpop.xlane.xlu0 %1350
      %v1352 = vsel %vm654, %v1346, 0.0
      %1353 = vadd.xlane.f32.xlu0 %v1352
      %v1354 = vpop.xlane.xlu0 %1353
      %v1355 = vsel %vm654, %v1348, 0.0
      %1356 = vadd.xlane.f32.xlu0 %v1355
      %v1357 = vpop.xlane.xlu0 %1356
      %v1358 = vpack.c.bf16 %v1344, %v1344
      %v1359 = vpack.c.bf16 %v1346, %v1346
      %v1360 = vpack.c.bf16 %v1348, %v1348
      %1361 = vrot.lane.b32.xlu0 %v651, 40
      %v1362 = vpop.permute.xlu0 %1361
      %v1364 = vsel %vm654, %v1358, 0
      %v1367 = vsel %vm757, %v1362, 0
      %1369 = vmatpush.bf16.msra.mxu0 0
      %1370 = vmatpush.bf16.msra.mxu0 0
      %1371 = vmatpush.bf16.msra.mxu0 0
      %1372 = vmatpush.bf16.msra.mxu0 0
      %1373 = vmatpush.bf16.msra.mxu0 0
      %1374 = vmatpush.bf16.msra.mxu0 0
      %1375 = vmatpush.bf16.msra.mxu0 0
      %1376 = vmatpush.bf16.msra.mxu0 %v1367
      %1377 = vmatmul.bf16.gmra.mxu0 %v1364
      %v1378 = vpop.f32.mrf.mxu0
      %v1379 = vadd.f32 0.0, %v1378
      %v1380 = vpop.f32.mrf.mxu0
      %1381 = vdwg.mxu0
      %1382 = vrot.lane.b32.xlu0 %v676, 40
      %v1383 = vpop.permute.xlu0 %1382
      %v1385 = vsel %vm654, %v1359, 0
      %v1388 = vsel %vm757, %v1383, 0
      %1390 = vmatpush.bf16.msra.mxu0 0
      %1391 = vmatpush.bf16.msra.mxu0 0
      %1392 = vmatpush.bf16.msra.mxu0 0
      %1393 = vmatpush.bf16.msra.mxu0 0
      %1394 = vmatpush.bf16.msra.mxu0 0
      %1395 = vmatpush.bf16.msra.mxu0 0
      %1396 = vmatpush.bf16.msra.mxu0 0
      %1397 = vmatpush.bf16.msra.mxu0 %v1388
      %1398 = vmatmul.bf16.gmra.mxu0 %v1385
      %v1399 = vpop.f32.mrf.mxu0
      %v1400 = vadd.f32 0.0, %v1399
      %v1401 = vpop.f32.mrf.mxu0
      %1402 = vdwg.mxu0
      %1403 = vrot.lane.b32.xlu0 %v700, 40
      %v1404 = vpop.permute.xlu0 %1403
      %v1406 = vsel %vm654, %v1360, 0
      %v1409 = vsel %vm757, %v1404, 0
      %1411 = vmatpush.bf16.msra.mxu0 0
      %1412 = vmatpush.bf16.msra.mxu0 0
      %1413 = vmatpush.bf16.msra.mxu0 0
      %1414 = vmatpush.bf16.msra.mxu0 0
      %1415 = vmatpush.bf16.msra.mxu0 0
      %1416 = vmatpush.bf16.msra.mxu0 0
      %1417 = vmatpush.bf16.msra.mxu0 0
      %1418 = vmatpush.bf16.msra.mxu0 %v1409
      %1419 = vmatmul.bf16.gmra.mxu0 %v1406
      %v1420 = vpop.f32.mrf.mxu0
      %v1421 = vadd.f32 0.0, %v1420
      %v1422 = vpop.f32.mrf.mxu0
      %1423 = vdwg.mxu0
      %v1424 = vrcp.pop %v1351
      %v1425 = vrcp.pop %v1354
      %v1426 = vrcp.pop %v1357
      %v1427 = vmul.f32 %v1379, %v1424
      %v1428 = vmul.f32 %v1400, %v1425
      %v1429 = vmul.f32 %v1421, %v1426
      %v1430 = vpack.c.bf16 %v1428, %v1427
      %v1431 = vpack.c.bf16 %v1429, %v1429
      %s1432 = scalar_lea.vmem %s6, 12
      %v1433 = vld [vmem:[%s1432] sm:$0xf]
      %v1435 = vsel %vm654, %v1430, 0
      %v1438 = vsel %vm654, %v1431, 0
      %v1441 = vsel %vm757, %v1433, 0
      %1443 = vmatpush.bf16.msra.mxu0 0
      %1444 = vmatpush.bf16.msra.mxu0 0
      %1445 = vmatpush.bf16.msra.mxu0 0
      %1446 = vmatpush.bf16.msra.mxu0 0
      %1447 = vmatpush.bf16.msra.mxu0 0
      %1448 = vmatpush.bf16.msra.mxu0 0
      %1449 = vmatpush.bf16.msra.mxu0 0
      %1450 = vmatpush.bf16.msra.mxu0 %v1441
      %1451 = vmatmul.bf16.gmra.mxu0 %v1435
      %v1452 = vpop.f32.mrf.mxu0
      %v1453 = vadd.f32 0.0, %v1452
      %v1454 = vpop.f32.mrf.mxu0
      %v1455 = vadd.f32 0.0, %v1454
      %1456 = vmatmul.bf16.gmra.mxu0 %v1438
      %v1457 = vpop.f32.mrf.mxu0
      %v1458 = vadd.f32 0.0, %v1457
      %v1459 = vpop.f32.mrf.mxu0
      %1460 = vdwg.mxu0
      %v1461 = vadd.f32 %v1259, %v1453
      %v1462 = vadd.f32 %v1260, %v1455
      %v1463 = vadd.f32 %v1261, %v1458
      %v1464 = vld [vmem:[%s7] sm:$0x1]
      %v1466 = vperm.slane %v1464, 0
      %v1468 = vadd.f32 %v1461, %v1466
      %v1469 = vadd.f32 %v1462, %v1466
      %v1470 = vadd.f32 %v1463, %v1466
      %v1471 = vadd.f32 %v1468, %v491
      %v1472 = vadd.f32 %v1469, %v492
      %v1473 = vadd.f32 %v1470, %v493
      %v1474 = vpack.c.bf16 %v1472, %v1471
      %v1475 = vpack.c.bf16 %v1473, %v1473
      %v1476 = vld [vmem:[%s8] sm:$0xf]
      %v1477 = vld [vmem:[%s8 + $0x4] sm:$0xf]
      %v1478 = vld [vmem:[%s8 + $0x8] sm:$0xf]
      %v1479 = vld [vmem:[%s8 + $0xc] sm:$0xf]
      %v1480 = vld [vmem:[%s9] sm:$0x1]
      %v1482 = vperm.slane %v1480, 0
      %v1488 = vunpack.c.l.b16 %v1476
      %v1489 = vunpack.c.l.b16 %v1477
      %v1490 = vunpack.c.l.b16 %v1478
      %v1491 = vunpack.c.l.b16 %v1479
      %v1492 = vpack.c.b16 %v1489, %v1488
      %v1493 = vpack.c.b16 %v1491, %v1490
      %v1497 = vsel %vm496, %v1474, 0
      %v1500 = vsel %vm496, %v1475, 0
      %1502 = vmatpush.bf16.msra.mxu0 0
      %1503 = vmatpush.bf16.msra.mxu0 0
      %1504 = vmatpush.bf16.msra.mxu0 0
      %1505 = vmatpush.bf16.msra.mxu0 0
      %1506 = vmatpush.bf16.msra.mxu0 0
      %1507 = vmatpush.bf16.msra.mxu0 0
      %1508 = vmatpush.bf16.msra.mxu0 %v1493
      %1509 = vmatpush.bf16.msra.mxu0 %v1492
      %1510 = vmatmul.bf16.gmra.mxu0 %v1497
      %v1511 = vpop.f32.mrf.mxu0
      %v1512 = vadd.f32 %v1482, %v1511
      %v1513 = vpop.f32.mrf.mxu0
      %v1514 = vadd.f32 %v1482, %v1513
      %1515 = vmatmul.bf16.gmra.mxu0 %v1500
      %v1516 = vpop.f32.mrf.mxu0
      %v1517 = vadd.f32 %v1482, %v1516
      %v1518 = vpop.f32.mrf.mxu0
      %1519 = vdwg.mxu0
      %v1520 = vmax.f32 %v1512, 0.0
      %v1521 = vmax.f32 %v1514, 0.0
      %v1522 = vmax.f32 %v1517, 0.0
      %v1523 = vpack.c.bf16 %v1521, %v1520
      %v1524 = vpack.c.bf16 %v1522, %v1522
      %v1525 = vld [vmem:[%s10] sm:$0xf]
      %v1526 = vld [vmem:[%s10 + $0x4] sm:$0xf]
      %v1527 = vld [vmem:[%s10 + $0x8] sm:$0xf]
      %v1528 = vld [vmem:[%s10 + $0xc] sm:$0xf]
      %v1529 = vld [vmem:[%s10 + $0x10] sm:$0xf]
      %v1530 = vld [vmem:[%s10 + $0x14] sm:$0xf]
      %v1531 = vld [vmem:[%s10 + $0x18] sm:$0xf]
      %v1532 = vld [vmem:[%s10 + $0x1c] sm:$0xf]
      %v1533 = vld [vmem:[%s10 + $0x20] sm:$0xf]
      %v1534 = vld [vmem:[%s10 + $0x24] sm:$0xf]
      %v1535 = vld [vmem:[%s10 + $0x28] sm:$0xf]
      %v1536 = vld [vmem:[%s10 + $0x2c] sm:$0xf]
      %v1537 = vld [vmem:[%s10 + $0x30] sm:$0xf]
      %v1538 = vld [vmem:[%s10 + $0x34] sm:$0xf]
      %v1539 = vld [vmem:[%s10 + $0x38] sm:$0xf]
      %v1540 = vld [vmem:[%s10 + $0x3c] sm:$0xf]
      %v1541 = vld [vmem:[%s11] sm:$0x1]
      %v1543 = vperm.slane %v1541, 0
      %v1561 = vunpack.c.l.b16 %v1525
      %v1562 = vunpack.c.l.b16 %v1526
      %v1563 = vunpack.c.l.b16 %v1527
      %v1564 = vunpack.c.l.b16 %v1528
      %v1565 = vunpack.c.l.b16 %v1529
      %v1566 = vunpack.c.l.b16 %v1530
      %v1567 = vunpack.c.l.b16 %v1531
      %v1568 = vunpack.c.l.b16 %v1532
      %v1569 = vunpack.c.l.b16 %v1533
      %v1570 = vunpack.c.l.b16 %v1534
      %v1571 = vunpack.c.l.b16 %v1535
      %v1572 = vunpack.c.l.b16 %v1536
      %v1573 = vunpack.c.l.b16 %v1537
      %v1574 = vunpack.c.l.b16 %v1538
      %v1575 = vunpack.c.l.b16 %v1539
      %v1576 = vunpack.c.l.b16 %v1540
      %v1577 = vpack.c.b16 %v1562, %v1561
      %v1578 = vpack.c.b16 %v1564, %v1563
      %v1579 = vpack.c.b16 %v1566, %v1565
      %v1580 = vpack.c.b16 %v1568, %v1567
      %v1581 = vpack.c.b16 %v1570, %v1569
      %v1582 = vpack.c.b16 %v1572, %v1571
      %v1583 = vpack.c.b16 %v1574, %v1573
      %v1584 = vpack.c.b16 %v1576, %v1575
      %1593 = vmatpush.bf16.msra.mxu0 %v1584
      %1594 = vmatpush.bf16.msra.mxu0 %v1583
      %1595 = vmatpush.bf16.msra.mxu0 %v1582
      %1596 = vmatpush.bf16.msra.mxu0 %v1581
      %1597 = vmatpush.bf16.msra.mxu0 %v1580
      %1598 = vmatpush.bf16.msra.mxu0 %v1579
      %1599 = vmatpush.bf16.msra.mxu0 %v1578
      %1600 = vmatpush.bf16.msra.mxu0 %v1577
      %1601 = vmatmul.bf16.gmra.mxu0 %v1523
      %v1602 = vpop.f32.mrf.mxu0
      %v1603 = vadd.f32 %v1543, %v1602
      %v1604 = vpop.f32.mrf.mxu0
      %v1605 = vadd.f32 %v1543, %v1604
      %1606 = vmatmul.bf16.gmra.mxu0 %v1524
      %v1607 = vpop.f32.mrf.mxu0
      %v1608 = vadd.f32 %v1543, %v1607
      %v1609 = vpop.f32.mrf.mxu0
      %1610 = vdwg.mxu0
      %v1611 = vmax.f32 %v1603, 0.0
      %v1612 = vmax.f32 %v1605, 0.0
      %v1613 = vmax.f32 %v1608, 0.0
      %v1614 = vld [vmem:[%s12] sm:$0x1]
      %v1615 = vld [vmem:[%s13] sm:$0x1]
      %v1616 = vsel %vm496, %v1611, 0.0
      %1617 = vadd.xlane.f32.xlu0 %v1616
      %v1618 = vpop.xlane.xlu0 %1617
      %v1619 = vsel %vm496, %v1612, 0.0
      %1620 = vadd.xlane.f32.xlu0 %v1619
      %v1621 = vpop.xlane.xlu0 %1620
      %v1622 = vsel %vm496, %v1613, 0.0
      %1623 = vadd.xlane.f32.xlu0 %v1622
      %v1624 = vpop.xlane.xlu0 %1623
      %v1625 = vmul.f32 %v1618, %v512
      %v1626 = vmul.f32 %v1621, %v512
      %v1627 = vmul.f32 %v1624, %v512
      %v1628 = vsub.f32 %v1611, %v1625
      %v1629 = vsub.f32 %v1612, %v1626
      %v1630 = vsub.f32 %v1613, %v1627
      %v1631 = vmul.f32 %v1628, %v1628
      %v1632 = vmul.f32 %v1629, %v1629
      %v1633 = vmul.f32 %v1630, %v1630
      %v1634 = vsel %vm496, %v1631, 0.0
      %1635 = vadd.xlane.f32.xlu0 %v1634
      %v1636 = vpop.xlane.xlu0 %1635
      %v1637 = vsel %vm496, %v1632, 0.0
      %1638 = vadd.xlane.f32.xlu0 %v1637
      %v1639 = vpop.xlane.xlu0 %1638
      %v1640 = vsel %vm496, %v1633, 0.0
      %1641 = vadd.xlane.f32.xlu0 %v1640
      %v1642 = vpop.xlane.xlu0 %1641
      %v1643 = vmul.f32 %v1636, %v512
      %v1644 = vmul.f32 %v1639, %v512
      %v1645 = vmul.f32 %v1642, %v512
      %v1646 = vadd.f32 %v1643, 1e-05
      %v1647 = vadd.f32 %v1644, 1e-05
      %v1648 = vadd.f32 %v1645, 1e-05
      %v1649 = vrsqrt.pop %v1646
      %v1650 = vmul.f32 %v1649, %v1646
      %v1651 = vmul.f32 %v1650, %v1649
      %v1652 = vmul.f32 0.5, %v1651
      %v1653 = vsub.f32 1.5, %v1652
      %v1654 = vmul.f32 %v1649, %v1653
      %vm1655 = vweird.f32 %v1646
      %vm1656 = vweird.f32 %v1649
      %vm1657 = vmor %vm1655, %vm1656
      %v1658 = vsel %vm1657, %v1649, %v1654
      %v1659 = vrsqrt.pop %v1647
      %v1660 = vmul.f32 %v1659, %v1647
      %v1661 = vmul.f32 %v1660, %v1659
      %v1662 = vmul.f32 0.5, %v1661
      %v1663 = vsub.f32 1.5, %v1662
      %v1664 = vmul.f32 %v1659, %v1663
      %vm1665 = vweird.f32 %v1647
      %vm1666 = vweird.f32 %v1659
      %vm1667 = vmor %vm1665, %vm1666
      %v1668 = vsel %vm1667, %v1659, %v1664
      %v1669 = vrsqrt.pop %v1648
      %v1670 = vmul.f32 %v1669, %v1648
      %v1671 = vmul.f32 %v1670, %v1669
      %v1672 = vmul.f32 0.5, %v1671
      %v1673 = vsub.f32 1.5, %v1672
      %v1674 = vmul.f32 %v1669, %v1673
      %vm1675 = vweird.f32 %v1648
      %vm1676 = vweird.f32 %v1669
      %vm1677 = vmor %vm1675, %vm1676
      %v1678 = vsel %vm1677, %v1669, %v1674
      %v1679 = vmul.f32 %v1628, %v1658
      %v1680 = vmul.f32 %v1629, %v1668
      %v1681 = vmul.f32 %v1630, %v1678
      %v1683 = vperm.slane %v1614, 0
      %v1685 = vmul.f32 %v1679, %v1683
      %v1686 = vmul.f32 %v1680, %v1683
      %v1687 = vmul.f32 %v1681, %v1683
      %v1689 = vperm.slane %v1615, 0
      %v1691 = vadd.f32 %v1685, %v1689
      %v1692 = vadd.f32 %v1686, %v1689
      %v1693 = vadd.f32 %v1687, %v1689
      %1694 = vst.msk [vmem:[%s488] sm:$0xff] %vm496, %v1691
      %1695 = vst.msk [vmem:[%s488 + $0x8] sm:$0xff] %vm496, %v1692
      %1696 = vst.msk [vmem:[%s488 + $0x10] sm:$0xff] %vm496, %v1693
      %s1697 = smul.u32 3, %s25
      %p1698 = scmp.lt.s32.totalorder %s1697, 5
      %s1699 = scalar_select %p1698, %s1697, 5
      %s1700 = smul.addr %s1699, 8
      %s1701 = scalar_lea.vmem %s14, %s1700
      // Predicated region
      $region77: #{tpu_custom_call.1} parent=75 // pred_check
        %p1702 = pneg %p347
      $region78: #{tpu_custom_call.1} parent=75 // pred_check_branch
        %1704 = sbr.rel (%p1702) target = $region80
      $region79: #{tpu_custom_call.1} parent=75 // pred_region
        %s1705 = smul.u32 3, %s25
      $region80: #{tpu_custom_call.1} parent=75 // pred_fallthru
        _
    $region76: #{tpu_custom_call.1} parent=5 // pred_fallthru
      _
    %p1706 = scmp.le.s32.totalorder 2, %s20
    // Predicated region
    $region81: #{tpu_custom_call.1} parent=5 // pred_check
      %p1707 = pneg %p1706
    $region82: #{tpu_custom_call.1} parent=5 // pred_check_branch
      %1709 = sbr.rel (%p1707) target = $region84
    $region83: #{tpu_custom_call.1} parent=5 // pred_region
      %s1710 = ssub.s32 %s20, 2
      // Predicated region
      $region85: #{tpu_custom_call.1} parent=83 // pred_check
        %p1711 = pneg %p353
      $region86: #{tpu_custom_call.1} parent=83 // pred_check_branch
        %1713 = sbr.rel (%p1711) target = $region88
      $region87: #{tpu_custom_call.1} parent=83 // pred_region
        %s1714 = smul.u32 3, %s26
        %p1715 = scmp.lt.s32.totalorder %s1714, 5
        %s1716 = scalar_select %p1715, %s1714, 5
        %s1717 = smul.addr %s1716, 8
        %s1718 = scalar_lea.vmem %s14, %s1717
      $region88: #{tpu_custom_call.1} parent=83 // pred_fallthru
        _
    $region84: #{tpu_custom_call.1} parent=5 // pred_fallthru
      _
  $region6: #{tpu_custom_call.1} parent=0 // loop_footer
    %s24 = sadd.s32 1, %s20
  $region7: #{tpu_custom_call.1} parent=0 // loop_footer_branch
    %19 = sbr.rel target = $region3
  $region8: #{tpu_custom_call.1} parent=0 // loop_exit
    _

// kernel: tpu_custom_call.1
$region0: #{tpu_custom_call.1}
  #allocation0 [shape = 'u32[]', space=smem, size = 0x4, offset = 0x4, fixed_abs, tag = 'smem constant byte address 0x4 - core index']
  #allocation1 [shape = 'u32[72,128]{1,0:T(1,128)}', space=vmem, size = 0x9000, scoped, tag = 'internal scratch']
  %s0 = inlined_call_operand.vmem [shape: f32[48,32], index: 0, kind: input, shape index: {}]
  %s1 = inlined_call_operand.vmem [shape: f32[6,1,8], index: 1, kind: input, shape index: {}]
  %s2 = inlined_call_operand.vmem [shape: f32[1,32], index: 2, kind: input, shape index: {}]
  %s3 = inlined_call_operand.vmem [shape: f32[1,32], index: 3, kind: input, shape index: {}]
  %s4 = inlined_call_operand.vmem [shape: bf16[32,96], index: 4, kind: input, shape index: {}]
  %s5 = inlined_call_operand.vmem [shape: f32[1,96], index: 5, kind: input, shape index: {}]
  %s6 = inlined_call_operand.vmem [shape: bf16[4,8,32], index: 6, kind: input, shape index: {}]
  %s7 = inlined_call_operand.vmem [shape: f32[1,32], index: 7, kind: input, shape index: {}]
  %s8 = inlined_call_operand.vmem [shape: bf16[32,128], index: 8, kind: input, shape index: {}]
  %s9 = inlined_call_operand.vmem [shape: f32[1,128], index: 9, kind: input, shape index: {}]
  %s10 = inlined_call_operand.vmem [shape: bf16[128,32], index: 10, kind: input, shape index: {}]
  %s11 = inlined_call_operand.vmem [shape: f32[1,32], index: 11, kind: input, shape index: {}]
  %s12 = inlined_call_operand.vmem [shape: f32[1,32], index: 12, kind: input, shape index: {}]
  %s13 = inlined_call_operand.vmem [shape: f32[1,32], index: 13, kind: input, shape index: {}]
  %s14 = inlined_call_operand.vmem [shape: f32[48,32], index: 14, kind: output, shape index: {}]
  %s15 = sld [smem:[#allocation0]]
  $region89: #{tpu_custom_call.1} parent=0
    _
  %s17 = ssub.s32 1, %s15
  %s18 = scalar_select 0, %s17, %s15
  loop: start=0, step=1, limit=4
  $region2: #{tpu_custom_call.1} parent=0 // loop_pre_header
    _
  $region3: #{tpu_custom_call.1} parent=0 // loop_header
    %s20 = sphi 0, %s24
    %p21 = scmp.ge.s32.totalorder %s20, 4
    %s30 = sphi 0, %s32
    %s33 = sphi 0, %s30
    %s34 = sphi 0, %s33
    %s50 = sphi 0, %s34
    %s56 = sphi 0, %s58
    %s59 = sphi 0, %s56
    %s60 = sphi 0, %s59
    %s76 = sphi 0, %s60
    %s80 = sphi 0, %s80
    %s82 = sphi 0, %s80
    %s83 = sphi 0, %s82
    %s97 = sphi 0, %s83
    %s101 = sphi 0, %s101
    %s103 = sphi 0, %s101
    %s104 = sphi 0, %s103
    %s118 = sphi 0, %s104
    %s122 = sphi 0, %s122
    %s124 = sphi 0, %s122
    %s125 = sphi 0, %s124
    %s139 = sphi 0, %s125
    %s143 = sphi 0, %s143
    %s145 = sphi 0, %s143
    %s146 = sphi 0, %s145
    %s160 = sphi 0, %s146
    %s164 = sphi 0, %s164
    %s166 = sphi 0, %s164
    %s167 = sphi 0, %s166
    %s181 = sphi 0, %s167
    %s185 = sphi 0, %s185
    %s187 = sphi 0, %s185
    %s188 = sphi 0, %s187
    %s202 = sphi 0, %s188
    %s206 = sphi 0, %s206
    %s208 = sphi 0, %s206
    %s209 = sphi 0, %s208
    %s223 = sphi 0, %s209
    %s227 = sphi 0, %s227
    %s229 = sphi 0, %s227
    %s230 = sphi 0, %s229
    %s244 = sphi 0, %s230
    %s248 = sphi 0, %s248
    %s250 = sphi 0, %s248
    %s251 = sphi 0, %s250
    %s265 = sphi 0, %s251
    %s269 = sphi 0, %s269
    %s271 = sphi 0, %s269
    %s272 = sphi 0, %s271
    %s286 = sphi 0, %s272
    %s290 = sphi 0, %s290
    %s292 = sphi 0, %s290
    %s293 = sphi 0, %s292
    %s307 = sphi 0, %s293
    %s311 = sphi 0, %s311
    %s313 = sphi 0, %s311
    %s314 = sphi 0, %s313
    %s328 = sphi 0, %s314
    %s334 = sphi 0, %s336
    %s337 = sphi 0, %s334
    %s338 = sphi 0, %s337
    %s354 = sphi 0, %s338
  $region4: #{tpu_custom_call.1} parent=0 // loop_header_branch
    %23 = sbr.rel (%p21) target = $region8
  $region5: #{tpu_custom_call.1} parent=0 // loop_body
    %s25 = ssub.s32 %s20, 1
    %s26 = ssub.s32 %s20, 2
    %s27 = sadd.s32 %s20, 1
    %s28 = ssub.s32 %s20, %s27
    %p29 = scmp.eq.s32.totalorder %s28, 0
    %s31 = sadd.s32 %s30, 1
    %s32 = scalar_select %p29, %s30, %s31
    %p35 = pneg %p29
    %p36 = scmp.eq.s32.totalorder %s20, 1
    %p37 = por %p35, %p36
    %p38 = scmp.ne.s32.totalorder %s30, %s33
    %p39 = scmp.eq.s32.totalorder %s20, 0
    %p40 = por %p38, %p39
    %p41 = scmp.ne.s32.totalorder %s30, %s33
    %p42 = scmp.eq.s32.totalorder %s25, 1
    %p43 = por %p41, %p42
    %p44 = scmp.ne.s32.totalorder %s33, %s34
    %p45 = scmp.eq.s32.totalorder %s25, 0
    %p46 = por %p44, %p45
    %p47 = scmp.ne.s32.totalorder %s33, %s34
    %p48 = scmp.eq.s32.totalorder %s26, 1
    %p49 = por %p47, %p48
    %p51 = scmp.ne.s32.totalorder %s34, %s50
    %p52 = scmp.eq.s32.totalorder %s26, 0
    %p53 = por %p51, %p52
    %s54 = ssub.s32 %s20, %s27
    %p55 = scmp.eq.s32.totalorder %s54, 0
    %s57 = sadd.s32 %s56, 1
    %s58 = scalar_select %p55, %s56, %s57
    %p61 = pneg %p55
    %p62 = scmp.eq.s32.totalorder %s20, 1
    %p63 = por %p61, %p62
    %p64 = scmp.ne.s32.totalorder %s56, %s59
    %p65 = scmp.eq.s32.totalorder %s20, 0
    %p66 = por %p64, %p65
    %p67 = scmp.ne.s32.totalorder %s56, %s59
    %p68 = scmp.eq.s32.totalorder %s25, 1
    %p69 = por %p67, %p68
    %p70 = scmp.ne.s32.totalorder %s59, %s60
    %p71 = scmp.eq.s32.totalorder %s25, 0
    %p72 = por %p70, %p71
    %p73 = scmp.ne.s32.totalorder %s59, %s60
    %p74 = scmp.eq.s32.totalorder %s26, 1
    %p75 = por %p73, %p74
    %p77 = scmp.ne.s32.totalorder %s60, %s76
    %p78 = scmp.eq.s32.totalorder %s26, 0
    %p79 = por %p77, %p78
    %s81 = sadd.s32 %s80, 1
    %p84 = scmp.eq.s32.totalorder %s20, 1
    %p85 = scmp.ne.s32.totalorder %s80, %s82
    %p86 = scmp.eq.s32.totalorder %s20, 0
    %p87 = por %p85, %p86
    %p88 = scmp.ne.s32.totalorder %s80, %s82
    %p89 = scmp.eq.s32.totalorder %s25, 1
    %p90 = por %p88, %p89
    %p91 = scmp.ne.s32.totalorder %s82, %s83
    %p92 = scmp.eq.s32.totalorder %s25, 0
    %p93 = por %p91, %p92
    %p94 = scmp.ne.s32.totalorder %s82, %s83
    %p95 = scmp.eq.s32.totalorder %s26, 1
    %p96 = por %p94, %p95
    %p98 = scmp.ne.s32.totalorder %s83, %s97
    %p99 = scmp.eq.s32.totalorder %s26, 0
    %p100 = por %p98, %p99
    %s102 = sadd.s32 %s101, 1
    %p105 = scmp.eq.s32.totalorder %s20, 1
    %p106 = scmp.ne.s32.totalorder %s101, %s103
    %p107 = scmp.eq.s32.totalorder %s20, 0
    %p108 = por %p106, %p107
    %p109 = scmp.ne.s32.totalorder %s101, %s103
    %p110 = scmp.eq.s32.totalorder %s25, 1
    %p111 = por %p109, %p110
    %p112 = scmp.ne.s32.totalorder %s103, %s104
    %p113 = scmp.eq.s32.totalorder %s25, 0
    %p114 = por %p112, %p113
    %p115 = scmp.ne.s32.totalorder %s103, %s104
    %p116 = scmp.eq.s32.totalorder %s26, 1
    %p117 = por %p115, %p116
    %p119 = scmp.ne.s32.totalorder %s104, %s118
    %p120 = scmp.eq.s32.totalorder %s26, 0
    %p121 = por %p119, %p120
    %s123 = sadd.s32 %s122, 1
    %p126 = scmp.eq.s32.totalorder %s20, 1
    %p127 = scmp.ne.s32.totalorder %s122, %s124
    %p128 = scmp.eq.s32.totalorder %s20, 0
    %p129 = por %p127, %p128
    %p130 = scmp.ne.s32.totalorder %s122, %s124
    %p131 = scmp.eq.s32.totalorder %s25, 1
    %p132 = por %p130, %p131
    %p133 = scmp.ne.s32.totalorder %s124, %s125
    %p134 = scmp.eq.s32.totalorder %s25, 0
    %p135 = por %p133, %p134
    %p136 = scmp.ne.s32.totalorder %s124, %s125
    %p137 = scmp.eq.s32.totalorder %s26, 1
    %p138 = por %p136, %p137
    %p140 = scmp.ne.s32.totalorder %s125, %s139
    %p141 = scmp.eq.s32.totalorder %s26, 0
    %p142 = por %p140, %p141
    %s144 = sadd.s32 %s143, 1
    %p147 = scmp.eq.s32.totalorder %s20, 1
    %p148 = scmp.ne.s32.totalorder %s143, %s145
    %p149 = scmp.eq.s32.totalorder %s20, 0
    %p150 = por %p148, %p149
    %p151 = scmp.ne.s32.totalorder %s143, %s145
    %p152 = scmp.eq.s32.totalorder %s25, 1
    %p153 = por %p151, %p152
    %p154 = scmp.ne.s32.totalorder %s145, %s146
    %p155 = scmp.eq.s32.totalorder %s25, 0
    %p156 = por %p154, %p155
    %p157 = scmp.ne.s32.totalorder %s145, %s146
    %p158 = scmp.eq.s32.totalorder %s26, 1
    %p159 = por %p157, %p158
    %p161 = scmp.ne.s32.totalorder %s146, %s160
    %p162 = scmp.eq.s32.totalorder %s26, 0
    %p163 = por %p161, %p162
    %s165 = sadd.s32 %s164, 1
    %p168 = scmp.eq.s32.totalorder %s20, 1
    %p169 = scmp.ne.s32.totalorder %s164, %s166
    %p170 = scmp.eq.s32.totalorder %s20, 0
    %p171 = por %p169, %p170
    %p172 = scmp.ne.s32.totalorder %s164, %s166
    %p173 = scmp.eq.s32.totalorder %s25, 1
    %p174 = por %p172, %p173
    %p175 = scmp.ne.s32.totalorder %s166, %s167
    %p176 = scmp.eq.s32.totalorder %s25, 0
    %p177 = por %p175, %p176
    %p178 = scmp.ne.s32.totalorder %s166, %s167
    %p179 = scmp.eq.s32.totalorder %s26, 1
    %p180 = por %p178, %p179
    %p182 = scmp.ne.s32.totalorder %s167, %s181
    %p183 = scmp.eq.s32.totalorder %s26, 0
    %p184 = por %p182, %p183
    %s186 = sadd.s32 %s185, 1
    %p189 = scmp.eq.s32.totalorder %s20, 1
    %p190 = scmp.ne.s32.totalorder %s185, %s187
    %p191 = scmp.eq.s32.totalorder %s20, 0
    %p192 = por %p190, %p191
    %p193 = scmp.ne.s32.totalorder %s185, %s187
    %p194 = scmp.eq.s32.totalorder %s25, 1
    %p195 = por %p193, %p194
    %p196 = scmp.ne.s32.totalorder %s187, %s188
    %p197 = scmp.eq.s32.totalorder %s25, 0
    %p198 = por %p196, %p197
    %p199 = scmp.ne.s32.totalorder %s187, %s188
    %p200 = scmp.eq.s32.totalorder %s26, 1
    %p201 = por %p199, %p200
    %p203 = scmp.ne.s32.totalorder %s188, %s202
    %p204 = scmp.eq.s32.totalorder %s26, 0
    %p205 = por %p203, %p204
    %s207 = sadd.s32 %s206, 1
    %p210 = scmp.eq.s32.totalorder %s20, 1
    %p211 = scmp.ne.s32.totalorder %s206, %s208
    %p212 = scmp.eq.s32.totalorder %s20, 0
    %p213 = por %p211, %p212
    %p214 = scmp.ne.s32.totalorder %s206, %s208
    %p215 = scmp.eq.s32.totalorder %s25, 1
    %p216 = por %p214, %p215
    %p217 = scmp.ne.s32.totalorder %s208, %s209
    %p218 = scmp.eq.s32.totalorder %s25, 0
    %p219 = por %p217, %p218
    %p220 = scmp.ne.s32.totalorder %s208, %s209
    %p221 = scmp.eq.s32.totalorder %s26, 1
    %p222 = por %p220, %p221
    %p224 = scmp.ne.s32.totalorder %s209, %s223
    %p225 = scmp.eq.s32.totalorder %s26, 0
    %p226 = por %p224, %p225
    %s228 = sadd.s32 %s227, 1
    %p231 = scmp.eq.s32.totalorder %s20, 1
    %p232 = scmp.ne.s32.totalorder %s227, %s229
    %p233 = scmp.eq.s32.totalorder %s20, 0
    %p234 = por %p232, %p233
    %p235 = scmp.ne.s32.totalorder %s227, %s229
    %p236 = scmp.eq.s32.totalorder %s25, 1
    %p237 = por %p235, %p236
    %p238 = scmp.ne.s32.totalorder %s229, %s230
    %p239 = scmp.eq.s32.totalorder %s25, 0
    %p240 = por %p238, %p239
    %p241 = scmp.ne.s32.totalorder %s229, %s230
    %p242 = scmp.eq.s32.totalorder %s26, 1
    %p243 = por %p241, %p242
    %p245 = scmp.ne.s32.totalorder %s230, %s244
    %p246 = scmp.eq.s32.totalorder %s26, 0
    %p247 = por %p245, %p246
    %s249 = sadd.s32 %s248, 1
    %p252 = scmp.eq.s32.totalorder %s20, 1
    %p253 = scmp.ne.s32.totalorder %s248, %s250
    %p254 = scmp.eq.s32.totalorder %s20, 0
    %p255 = por %p253, %p254
    %p256 = scmp.ne.s32.totalorder %s248, %s250
    %p257 = scmp.eq.s32.totalorder %s25, 1
    %p258 = por %p256, %p257
    %p259 = scmp.ne.s32.totalorder %s250, %s251
    %p260 = scmp.eq.s32.totalorder %s25, 0
    %p261 = por %p259, %p260
    %p262 = scmp.ne.s32.totalorder %s250, %s251
    %p263 = scmp.eq.s32.totalorder %s26, 1
    %p264 = por %p262, %p263
    %p266 = scmp.ne.s32.totalorder %s251, %s265
    %p267 = scmp.eq.s32.totalorder %s26, 0
    %p268 = por %p266, %p267
    %s270 = sadd.s32 %s269, 1
    %p273 = scmp.eq.s32.totalorder %s20, 1
    %p274 = scmp.ne.s32.totalorder %s269, %s271
    %p275 = scmp.eq.s32.totalorder %s20, 0
    %p276 = por %p274, %p275
    %p277 = scmp.ne.s32.totalorder %s269, %s271
    %p278 = scmp.eq.s32.totalorder %s25, 1
    %p279 = por %p277, %p278
    %p280 = scmp.ne.s32.totalorder %s271, %s272
    %p281 = scmp.eq.s32.totalorder %s25, 0
    %p282 = por %p280, %p281
    %p283 = scmp.ne.s32.totalorder %s271, %s272
    %p284 = scmp.eq.s32.totalorder %s26, 1
    %p285 = por %p283, %p284
    %p287 = scmp.ne.s32.totalorder %s272, %s286
    %p288 = scmp.eq.s32.totalorder %s26, 0
    %p289 = por %p287, %p288
    %s291 = sadd.s32 %s290, 1
    %p294 = scmp.eq.s32.totalorder %s20, 1
    %p295 = scmp.ne.s32.totalorder %s290, %s292
    %p296 = scmp.eq.s32.totalorder %s20, 0
    %p297 = por %p295, %p296
    %p298 = scmp.ne.s32.totalorder %s290, %s292
    %p299 = scmp.eq.s32.totalorder %s25, 1
    %p300 = por %p298, %p299
    %p301 = scmp.ne.s32.totalorder %s292, %s293
    %p302 = scmp.eq.s32.totalorder %s25, 0
    %p303 = por %p301, %p302
    %p304 = scmp.ne.s32.totalorder %s292, %s293
    %p305 = scmp.eq.s32.totalorder %s26, 1
    %p306 = por %p304, %p305
    %p308 = scmp.ne.s32.totalorder %s293, %s307
    %p309 = scmp.eq.s32.totalorder %s26, 0
    %p310 = por %p308, %p309
    %s312 = sadd.s32 %s311, 1
    %p315 = scmp.eq.s32.totalorder %s20, 1
    %p316 = scmp.ne.s32.totalorder %s311, %s313
    %p317 = scmp.eq.s32.totalorder %s20, 0
    %p318 = por %p316, %p317
    %p319 = scmp.ne.s32.totalorder %s311, %s313
    %p320 = scmp.eq.s32.totalorder %s25, 1
    %p321 = por %p319, %p320
    %p322 = scmp.ne.s32.totalorder %s313, %s314
    %p323 = scmp.eq.s32.totalorder %s25, 0
    %p324 = por %p322, %p323
    %p325 = scmp.ne.s32.totalorder %s313, %s314
    %p326 = scmp.eq.s32.totalorder %s26, 1
    %p327 = por %p325, %p326
    %p329 = scmp.ne.s32.totalorder %s314, %s328
    %p330 = scmp.eq.s32.totalorder %s26, 0
    %p331 = por %p329, %p330
    %s332 = ssub.s32 %s20, %s27
    %p333 = scmp.eq.s32.totalorder %s332, 0
    %s335 = sadd.s32 %s334, 1
    %s336 = scalar_select %p333, %s334, %s335
    %p339 = pneg %p333
    %p340 = scmp.eq.s32.totalorder %s20, 1
    %p341 = por %p339, %p340
    %p342 = scmp.ne.s32.totalorder %s334, %s337
    %p343 = scmp.eq.s32.totalorder %s20, 0
    %p344 = por %p342, %p343
    %p345 = scmp.ne.s32.totalorder %s334, %s337
    %p346 = scmp.eq.s32.totalorder %s25, 1
    %p347 = por %p345, %p346
    %p348 = scmp.ne.s32.totalorder %s337, %s338
    %p349 = scmp.eq.s32.totalorder %s25, 0
    %p350 = por %p348, %p349
    %p351 = scmp.ne.s32.totalorder %s337, %s338
    %p352 = scmp.eq.s32.totalorder %s26, 1
    %p353 = por %p351, %p352
    %p355 = scmp.ne.s32.totalorder %s338, %s354
    %p356 = scmp.eq.s32.totalorder %s26, 0
    %p357 = por %p355, %p356
    %p358 = scmp.le.s32.totalorder 1, %s20
    %p359 = scmp.lt.s32.totalorder %s20, 3
    %p360 = pnand %p358, %p359
    %p361 = pneg %p360
    // Predicated region
    $region9: #{tpu_custom_call.1} parent=5 // pred_check
      _
    $region10: #{tpu_custom_call.1} parent=5 // pred_check_branch
      %363 = sbr.rel (%p360) target = $region12
    $region11: #{tpu_custom_call.1} parent=5 // pred_region
      %s364 = ssub.s32 %s20, 1
      // Predicated region
      $region13: #{tpu_custom_call.1} parent=11 // pred_check
        %p365 = pneg %p93
      $region14: #{tpu_custom_call.1} parent=11 // pred_check_branch
        %367 = sbr.rel (%p365) target = $region16
      $region15: #{tpu_custom_call.1} parent=11 // pred_region
        _
      $region16: #{tpu_custom_call.1} parent=11 // pred_fallthru
        _
      // Predicated region
      $region17: #{tpu_custom_call.1} parent=11 // pred_check
        %p368 = pneg %p114
      $region18: #{tpu_custom_call.1} parent=11 // pred_check_branch
        %370 = sbr.rel (%p368) target = $region20
      $region19: #{tpu_custom_call.1} parent=11 // pred_region
        _
      $region20: #{tpu_custom_call.1} parent=11 // pred_fallthru
        _
      // Predicated region
      $region21: #{tpu_custom_call.1} parent=11 // pred_check
        %p371 = pneg %p135
      $region22: #{tpu_custom_call.1} parent=11 // pred_check_branch
        %373 = sbr.rel (%p371) target = $region24
      $region23: #{tpu_custom_call.1} parent=11 // pred_region
        _
      $region24: #{tpu_custom_call.1} parent=11 // pred_fallthru
        _
      // Predicated region
      $region25: #{tpu_custom_call.1} parent=11 // pred_check
        %p374 = pneg %p156
      $region26: #{tpu_custom_call.1} parent=11 // pred_check_branch
        %376 = sbr.rel (%p374) target = $region28
      $region27: #{tpu_custom_call.1} parent=11 // pred_region
        _
      $region28: #{tpu_custom_call.1} parent=11 // pred_fallthru
        _
      // Predicated region
      $region29: #{tpu_custom_call.1} parent=11 // pred_check
        %p377 = pneg %p177
      $region30: #{tpu_custom_call.1} parent=11 // pred_check_branch
        %379 = sbr.rel (%p377) target = $region32
      $region31: #{tpu_custom_call.1} parent=11 // pred_region
        _
      $region32: #{tpu_custom_call.1} parent=11 // pred_fallthru
        _
      // Predicated region
      $region33: #{tpu_custom_call.1} parent=11 // pred_check
        %p380 = pneg %p198
      $region34: #{tpu_custom_call.1} parent=11 // pred_check_branch
        %382 = sbr.rel (%p380) target = $region36
      $region35: #{tpu_custom_call.1} parent=11 // pred_region
        _
      $region36: #{tpu_custom_call.1} parent=11 // pred_fallthru
        _
      // Predicated region
      $region37: #{tpu_custom_call.1} parent=11 // pred_check
        %p383 = pneg %p219
      $region38: #{tpu_custom_call.1} parent=11 // pred_check_branch
        %385 = sbr.rel (%p383) target = $region40
      $region39: #{tpu_custom_call.1} parent=11 // pred_region
        _
      $region40: #{tpu_custom_call.1} parent=11 // pred_fallthru
        _
      // Predicated region
      $region41: #{tpu_custom_call.1} parent=11 // pred_check
        %p386 = pneg %p240
      $region42: #{tpu_custom_call.1} parent=11 // pred_check_branch
        %388 = sbr.rel (%p386) target = $region44
      $region43: #{tpu_custom_call.1} parent=11 // pred_region
        _
      $region44: #{tpu_custom_call.1} parent=11 // pred_fallthru
        _
      // Predicated region
      $region45: #{tpu_custom_call.1} parent=11 // pred_check
        %p389 = pneg %p261
      $region46: #{tpu_custom_call.1} parent=11 // pred_check_branch
        %391 = sbr.rel (%p389) target = $region48
      $region47: #{tpu_custom_call.1} parent=11 // pred_region
        _
      $region48: #{tpu_custom_call.1} parent=11 // pred_fallthru
        _
      // Predicated region
      $region49: #{tpu_custom_call.1} parent=11 // pred_check
        %p392 = pneg %p282
      $region50: #{tpu_custom_call.1} parent=11 // pred_check_branch
        %394 = sbr.rel (%p392) target = $region52
      $region51: #{tpu_custom_call.1} parent=11 // pred_region
        _
      $region52: #{tpu_custom_call.1} parent=11 // pred_fallthru
        _
      // Predicated region
      $region53: #{tpu_custom_call.1} parent=11 // pred_check
        %p395 = pneg %p303
      $region54: #{tpu_custom_call.1} parent=11 // pred_check_branch
        %397 = sbr.rel (%p395) target = $region56
      $region55: #{tpu_custom_call.1} parent=11 // pred_region
        _
      $region56: #{tpu_custom_call.1} parent=11 // pred_fallthru
        _
      // Predicated region
      $region57: #{tpu_custom_call.1} parent=11 // pred_check
        %p398 = pneg %p324
      $region58: #{tpu_custom_call.1} parent=11 // pred_check_branch
        %400 = sbr.rel (%p398) target = $region60
      $region59: #{tpu_custom_call.1} parent=11 // pred_region
        _
      $region60: #{tpu_custom_call.1} parent=11 // pred_fallthru
        _
    $region12: #{tpu_custom_call.1} parent=5 // pred_fallthru
      _
    %p401 = scmp.lt.s32.totalorder %s20, 2
    // Predicated region
    $region61: #{tpu_custom_call.1} parent=5 // pred_check
      %p402 = pneg %p401
    $region62: #{tpu_custom_call.1} parent=5 // pred_check_branch
      %404 = sbr.rel (%p402) target = $region64
    $region63: #{tpu_custom_call.1} parent=5 // pred_region
      // Predicated region
      $region65: #{tpu_custom_call.1} parent=63 // pred_check
        %p405 = pneg %p40
      $region66: #{tpu_custom_call.1} parent=63 // pred_check_branch
        %407 = sbr.rel (%p405) target = $region68
      $region67: #{tpu_custom_call.1} parent=63 // pred_region
        %s408 = smul.u32 3, %s20
        %p409 = scmp.lt.s32.totalorder %s408, 5
        %s410 = scalar_select %p409, %s408, 5
        %s411 = smul.addr %s410, 8
        %s412 = scalar_lea.vmem %s0, %s411
        %s413 = smul.u32 3, %s20
      $region68: #{tpu_custom_call.1} parent=63 // pred_fallthru
        _
      // Predicated region
      $region69: #{tpu_custom_call.1} parent=63 // pred_check
        %p414 = pneg %p66
      $region70: #{tpu_custom_call.1} parent=63 // pred_check_branch
        %416 = sbr.rel (%p414) target = $region72
      $region71: #{tpu_custom_call.1} parent=63 // pred_region
        %s417 = smul.u32 3, %s20
        %p418 = scmp.lt.s32.totalorder %s417, 5
        %s419 = scalar_select %p418, %s417, 5
        %s420 = scalar_lea.vmem %s1, %s419
        %s421 = smul.u32 3, %s20
      $region72: #{tpu_custom_call.1} parent=63 // pred_fallthru
        _
    $region64: #{tpu_custom_call.1} parent=5 // pred_fallthru
      _
    %p422 = scmp.le.s32.totalorder 1, %s20
    %p423 = scmp.lt.s32.totalorder %s20, 3
    %p424 = pnand %p422, %p423
    %p425 = pneg %p424
    // Predicated region
    $region73: #{tpu_custom_call.1} parent=5 // pred_check
      _
    $region74: #{tpu_custom_call.1} parent=5 // pred_check_branch
      %427 = sbr.rel (%p424) target = $region76
    $region75: #{tpu_custom_call.1} parent=5 // pred_region
      %s428 = ssub.s32 %s20, 1
      %s429 = smul.u32 3, %s25
      %p430 = scmp.lt.s32.totalorder %s429, 5
      %s431 = scalar_select %p430, %s429, 5
      %s432 = smul.addr %s431, 8
      %s433 = scalar_lea.vmem %s0, %s432
      %p434 = pneg %p46
      %p435 = pneg %p43
      %s436 = smul.u32 3, %s25
      %p437 = scmp.lt.s32.totalorder %s436, 5
      %s438 = scalar_select %p437, %s436, 5
      %s439 = scalar_lea.vmem %s1, %s438
      %p440 = pneg %p72
      %p441 = pneg %p69
      %p442 = pneg %p93
      %p443 = pneg %p90
      %p444 = pneg %p114
      %p445 = pneg %p111
      %p446 = pneg %p135
      %p447 = pneg %p132
      %p448 = pneg %p156
      %p449 = pneg %p153
      %p450 = pneg %p177
      %p451 = pneg %p174
      %p452 = pneg %p198
      %p453 = pneg %p195
      %p454 = pneg %p219
      %p455 = pneg %p216
      %p456 = pneg %p240
      %p457 = pneg %p237
      %p458 = pneg %p261
      %p459 = pneg %p258
      %p460 = pneg %p282
      %p461 = pneg %p279
      %p462 = pneg %p303
      %p463 = pneg %p300
      %p464 = pneg %p324
      %p465 = pneg %p321
      %p466 = pneg %p350
      %p467 = pneg %p347
      %s468 = smul.u32 3, %s25
      %p469 = scmp.lt.s32.totalorder %s468, 5
      %s470 = scalar_select %p469, %s468, 5
      %s471 = smul.addr %s470, 8
      %s472 = scalar_lea.vmem %s14, %s471
      %s473 = smul.u32 3, %s25
      %p474 = scmp.lt.s32.totalorder %s473, 5
      %s475 = scalar_select %p474, %s473, 5
      %s476 = smul.addr %s475, 8
      %s477 = scalar_lea.vmem %s0, %s476
      %s478 = smul.u32 3, %s25
      %s479 = smul.u32 3, %s25
      %p480 = scmp.lt.s32.totalorder %s479, 5
      %s481 = scalar_select %p480, %s479, 5
      %s482 = scalar_lea.vmem %s1, %s481
      %s483 = smul.u32 3, %s25
      %s484 = smul.u32 3, %s25
      %p485 = scmp.lt.s32.totalorder %s484, 5
      %s486 = scalar_select %p485, %s484, 5
      %s487 = smul.addr %s486, 8
      %s488 = scalar_lea.vmem %s14, %s487
      %s489 = smul.u32 3, %s25
      %v491 = vld [vmem:[%s477] sm:$0xff]
      %v492 = vld [vmem:[%s477 + $0x8] sm:$0xff]
      %v493 = vld [vmem:[%s477 + $0x10] sm:$0xff]
      %v494 = vld [vmem:[%s2] sm:$0x1]
      %v495 = vld [vmem:[%s3] sm:$0x1]
      %vm496 = vcmask 261120
      %v497 = vsel %vm496, %v491, 0.0
      %498 = vadd.xlane.f32.xlu0 %v497
      %v499 = vpop.xlane.xlu0 %498
      %v500 = vsel %vm496, %v492, 0.0
      %501 = vadd.xlane.f32.xlu0 %v500
      %v502 = vpop.xlane.xlu0 %501
      %v503 = vsel %vm496, %v493, 0.0
      %504 = vadd.xlane.f32.xlu0 %v503
      %v505 = vpop.xlane.xlu0 %504
      %v506 = vrcp.pop 32.0
      %v507 = vmul.f32 32.0, %v506
      %v508 = vsub.f32 1.0, %v507
      %v509 = vmul.f32 %v506, %v508
      %v510 = vadd.f32 %v506, %v509
      %vm511 = vweird.f32 %v506
      %v512 = vsel %vm511, %v506, %v510
      %v513 = vmul.f32 %v499, %v512
      %v514 = vmul.f32 %v502, %v512
      %v515 = vmul.f32 %v505, %v512
      %v516 = vsub.f32 %v491, %v513
      %v517 = vsub.f32 %v492, %v514
      %v518 = vsub.f32 %v493, %v515
      %v519 = vmul.f32 %v516, %v516
      %v520 = vmul.f32 %v517, %v517
      %v521 = vmul.f32 %v518, %v518
      %v522 = vsel %vm496, %v519, 0.0
      %523 = vadd.xlane.f32.xlu0 %v522
      %v524 = vpop.xlane.xlu0 %523
      %v525 = vsel %vm496, %v520, 0.0
      %526 = vadd.xlane.f32.xlu0 %v525
      %v527 = vpop.xlane.xlu0 %526
      %v528 = vsel %vm496, %v521, 0.0
      %529 = vadd.xlane.f32.xlu0 %v528
      %v530 = vpop.xlane.xlu0 %529
      %v531 = vmul.f32 %v524, %v512
      %v532 = vmul.f32 %v527, %v512
      %v533 = vmul.f32 %v530, %v512
      %v534 = vadd.f32 %v531, 1e-05
      %v535 = vadd.f32 %v532, 1e-05
      %v536 = vadd.f32 %v533, 1e-05
      %v537 = vrsqrt.pop %v534
      %v538 = vmul.f32 %v537, %v534
      %v539 = vmul.f32 %v538, %v537
      %v540 = vmul.f32 0.5, %v539
      %v541 = vsub.f32 1.5, %v540
      %v542 = vmul.f32 %v537, %v541
      %vm543 = vweird.f32 %v534
      %vm544 = vweird.f32 %v537
      %vm545 = vmor %vm543, %vm544
      %v546 = vsel %vm545, %v537, %v542
      %v547 = vrsqrt.pop %v535
      %v548 = vmul.f32 %v547, %v535
      %v549 = vmul.f32 %v548, %v547
      %v550 = vmul.f32 0.5, %v549
      %v551 = vsub.f32 1.5, %v550
      %v552 = vmul.f32 %v547, %v551
      %vm553 = vweird.f32 %v535
      %vm554 = vweird.f32 %v547
      %vm555 = vmor %vm553, %vm554
      %v556 = vsel %vm555, %v547, %v552
      %v557 = vrsqrt.pop %v536
      %v558 = vmul.f32 %v557, %v536
      %v559 = vmul.f32 %v558, %v557
      %v560 = vmul.f32 0.5, %v559
      %v561 = vsub.f32 1.5, %v560
      %v562 = vmul.f32 %v557, %v561
      %vm563 = vweird.f32 %v536
      %vm564 = vweird.f32 %v557
      %vm565 = vmor %vm563, %vm564
      %v566 = vsel %vm565, %v557, %v562
      %v567 = vmul.f32 %v516, %v546
      %v568 = vmul.f32 %v517, %v556
      %v569 = vmul.f32 %v518, %v566
      %v571 = vperm.slane %v494, 0
      %v573 = vmul.f32 %v567, %v571
      %v574 = vmul.f32 %v568, %v571
      %v575 = vmul.f32 %v569, %v571
      %v577 = vperm.slane %v495, 0
      %v579 = vadd.f32 %v573, %v577
      %v580 = vadd.f32 %v574, %v577
      %v581 = vadd.f32 %v575, %v577
      %v582 = vpack.c.bf16 %v580, %v579
      %v583 = vpack.c.bf16 %v581, %v581
      %v584 = vld [vmem:[%s4] sm:$0xf]
      %v585 = vld [vmem:[%s4 + $0x4] sm:$0xf]
      %v586 = vld [vmem:[%s4 + $0x8] sm:$0xf]
      %v587 = vld [vmem:[%s4 + $0xc] sm:$0xf]
      %v588 = vld [vmem:[%s5] sm:$0x1]
      %v590 = vperm.slane %v588, 0
      %v596 = vunpack.c.l.b16 %v584
      %v597 = vunpack.c.l.b16 %v585
      %v598 = vunpack.c.l.b16 %v586
      %v599 = vunpack.c.l.b16 %v587
      %v600 = vpack.c.b16 %v597, %v596
      %v601 = vpack.c.b16 %v599, %v598
      %v605 = vsel %vm496, %v582, 0
      %v608 = vsel %vm496, %v583, 0
      %610 = vmatpush.bf16.msra.mxu0 0
      %611 = vmatpush.bf16.msra.mxu0 0
      %612 = vmatpush.bf16.msra.mxu0 0
      %613 = vmatpush.bf16.msra.mxu0 0
      %614 = vmatpush.bf16.msra.mxu0 0
      %615 = vmatpush.bf16.msra.mxu0 0
      %616 = vmatpush.bf16.msra.mxu0 %v601
      %617 = vmatpush.bf16.msra.mxu0 %v600
      %618 = vmatmul.bf16.gmra.mxu0 %v605
      %v619 = vpop.f32.mrf.mxu0
      %v620 = vadd.f32 %v590, %v619
      %v621 = vpop.f32.mrf.mxu0
      %v622 = vadd.f32 %v590, %v621
      %623 = vmatmul.bf16.gmra.mxu0 %v608
      %v624 = vpop.f32.mrf.mxu0
      %v625 = vadd.f32 %v590, %v624
      %v626 = vpop.f32.mrf.mxu0
      %627 = vdwg.mxu0
      %v628 = vld [vmem:[%s482] sm:$0x1]
      %v629 = vld [vmem:[%s482 + $0x1] sm:$0x1]
      %v630 = vld [vmem:[%s482 + $0x2] sm:$0x1]
      %v631 = vmul.f32 %v620, 0.35355338
      %v632 = vmul.f32 %v622, 0.35355338
      %v633 = vmul.f32 %v625, 0.35355338
      %v634 = vpack.c.bf16 %v631, %v631
      %v635 = vpack.c.bf16 %v632, %v632
      %v636 = vpack.c.bf16 %v633, %v633
      %v637 = vpack.c.bf16 %v620, %v620
      %v638 = vpack.c.bf16 %v622, %v622
      %v639 = vpack.c.bf16 %v625, %v625
      %v643 = vperm.slane %v628, 0
      %v644 = vperm.slane %v629, 0
      %v645 = vperm.slane %v630, 0
      %v650 = vunpack.c.l.b16 %v637
      %v651 = vpack.c.b16 %v650, %v650
      %652 = vrot.lane.b32.xlu0 %v651, 96
      %v653 = vpop.permute.xlu0 %652
      %vm654 = vcmask 64512
      %v656 = vsel %vm654, %v634, 0
      %v659 = vsel %vm654, %v653, 0
      %661 = vmatpush.bf16.xpose.msra.mxu0 0
      %662 = vmatpush.bf16.xpose.msra.mxu0 0
      %663 = vmatpush.bf16.xpose.msra.mxu0 0
      %664 = vmatpush.bf16.xpose.msra.mxu0 0
      %665 = vmatpush.bf16.xpose.msra.mxu0 0
      %666 = vmatpush.bf16.xpose.msra.mxu0 0
      %667 = vmatpush.bf16.xpose.msra.mxu0 0
      %668 = vmatpush.bf16.xpose.msra.mxu0 %v659
      %669 = vmatmul.bf16.gmra.mxu0 %v656
      %v670 = vpop.f32.mrf.mxu0
      %v671 = vadd.f32 %v643, %v670
      %v672 = vpop.f32.mrf.mxu0
      %673 = vdwg.mxu0
      %v675 = vunpack.c.l.b16 %v638
      %v676 = vpack.c.b16 %v675, %v675
      %677 = vrot.lane.b32.xlu0 %v676, 96
      %v678 = vpop.permute.xlu0 %677
      %v680 = vsel %vm654, %v635, 0
      %v683 = vsel %vm654, %v678, 0
      %685 = vmatpush.bf16.xpose.msra.mxu0 0
      %686 = vmatpush.bf16.xpose.msra.mxu0 0
      %687 = vmatpush.bf16.xpose.msra.mxu0 0
      %688 = vmatpush.bf16.xpose.msra.mxu0 0
      %689 = vmatpush.bf16.xpose.msra.mxu0 0
      %690 = vmatpush.bf16.xpose.msra.mxu0 0
      %691 = vmatpush.bf16.xpose.msra.mxu0 0
      %692 = vmatpush.bf16.xpose.msra.mxu0 %v683
      %693 = vmatmul.bf16.gmra.mxu0 %v680
      %v694 = vpop.f32.mrf.mxu0
      %v695 = vadd.f32 %v644, %v694
      %v696 = vpop.f32.mrf.mxu0
      %697 = vdwg.mxu0
      %v699 = vunpack.c.l.b16 %v639
      %v700 = vpack.c.b16 %v699, %v699
      %701 = vrot.lane.b32.xlu0 %v700, 96
      %v702 = vpop.permute.xlu0 %701
      %v704 = vsel %vm654, %v636, 0
      %v707 = vsel %vm654, %v702, 0
      %709 = vmatpush.bf16.xpose.msra.mxu0 0
      %710 = vmatpush.bf16.xpose.msra.mxu0 0
      %711 = vmatpush.bf16.xpose.msra.mxu0 0
      %712 = vmatpush.bf16.xpose.msra.mxu0 0
      %713 = vmatpush.bf16.xpose.msra.mxu0 0
      %714 = vmatpush.bf16.xpose.msra.mxu0 0
      %715 = vmatpush.bf16.xpose.msra.mxu0 0
      %716 = vmatpush.bf16.xpose.msra.mxu0 %v707
      %717 = vmatmul.bf16.gmra.mxu0 %v704
      %v718 = vpop.f32.mrf.mxu0
      %v719 = vadd.f32 %v645, %v718
      %v720 = vpop.f32.mrf.mxu0
      %721 = vdwg.mxu0
      %v722 = vsel %vm654, %v671, -inf
      %723 = vmax.xlane.f32.xlu0 %v722
      %v724 = vpop.xlane.xlu0 %723
      %v725 = vsel %vm654, %v695, -inf
      %726 = vmax.xlane.f32.xlu0 %v725
      %v727 = vpop.xlane.xlu0 %726
      %v728 = vsel %vm654, %v719, -inf
      %729 = vmax.xlane.f32.xlu0 %v728
      %v730 = vpop.xlane.xlu0 %729
      %v731 = vsub.f32 %v671, %v724
      %v732 = vsub.f32 %v695, %v727
      %v733 = vsub.f32 %v719, %v730
      %v734 = vmul.f32 %v731, 1.442695
      %v735 = vpow.pop %v734
      %v736 = vmul.f32 %v732, 1.442695
      %v737 = vpow.pop %v736
      %v738 = vmul.f32 %v733, 1.442695
      %v739 = vpow.pop %v738
      %v740 = vsel %vm654, %v735, 0.0
      %741 = vadd.xlane.f32.xlu0 %v740
      %v742 = vpop.xlane.xlu0 %741
      %v743 = vsel %vm654, %v737, 0.0
      %744 = vadd.xlane.f32.xlu0 %v743
      %v745 = vpop.xlane.xlu0 %744
      %v746 = vsel %vm654, %v739, 0.0
      %747 = vadd.xlane.f32.xlu0 %v746
      %v748 = vpop.xlane.xlu0 %747
      %v749 = vpack.c.bf16 %v735, %v735
      %v750 = vpack.c.bf16 %v737, %v737
      %v751 = vpack.c.bf16 %v739, %v739
      %752 = vrot.lane.b32.xlu0 %v651, 64
      %v753 = vpop.permute.xlu0 %752
      %v755 = vsel %vm654, %v749, 0
      %vm757 = vcmask 1043456
      %v759 = vsel %vm757, %v753, 0
      %761 = vmatpush.bf16.msra.mxu0 0
      %762 = vmatpush.bf16.msra.mxu0 0
      %763 = vmatpush.bf16.msra.mxu0 0
      %764 = vmatpush.bf16.msra.mxu0 0
      %765 = vmatpush.bf16.msra.mxu0 0
      %766 = vmatpush.bf16.msra.mxu0 0
      %767 = vmatpush.bf16.msra.mxu0 0
      %768 = vmatpush.bf16.msra.mxu0 %v759
      %769 = vmatmul.bf16.gmra.mxu0 %v755
      %v770 = vpop.f32.mrf.mxu0
      %v771 = vadd.f32 0.0, %v770
      %v772 = vpop.f32.mrf.mxu0
      %773 = vdwg.mxu0
      %774 = vrot.lane.b32.xlu0 %v676, 64
      %v775 = vpop.permute.xlu0 %774
      %v777 = vsel %vm654, %v750, 0
      %v780 = vsel %vm757, %v775, 0
      %782 = vmatpush.bf16.msra.mxu0 0
      %783 = vmatpush.bf16.msra.mxu0 0
      %784 = vmatpush.bf16.msra.mxu0 0
      %785 = vmatpush.bf16.msra.mxu0 0
      %786 = vmatpush.bf16.msra.mxu0 0
      %787 = vmatpush.bf16.msra.mxu0 0
      %788 = vmatpush.bf16.msra.mxu0 0
      %789 = vmatpush.bf16.msra.mxu0 %v780
      %790 = vmatmul.bf16.gmra.mxu0 %v777
      %v791 = vpop.f32.mrf.mxu0
      %v792 = vadd.f32 0.0, %v791
      %v793 = vpop.f32.mrf.mxu0
      %794 = vdwg.mxu0
      %795 = vrot.lane.b32.xlu0 %v700, 64
      %v796 = vpop.permute.xlu0 %795
      %v798 = vsel %vm654, %v751, 0
      %v801 = vsel %vm757, %v796, 0
      %803 = vmatpush.bf16.msra.mxu0 0
      %804 = vmatpush.bf16.msra.mxu0 0
      %805 = vmatpush.bf16.msra.mxu0 0
      %806 = vmatpush.bf16.msra.mxu0 0
      %807 = vmatpush.bf16.msra.mxu0 0
      %808 = vmatpush.bf16.msra.mxu0 0
      %809 = vmatpush.bf16.msra.mxu0 0
      %810 = vmatpush.bf16.msra.mxu0 %v801
      %811 = vmatmul.bf16.gmra.mxu0 %v798
      %v812 = vpop.f32.mrf.mxu0
      %v813 = vadd.f32 0.0, %v812
      %v814 = vpop.f32.mrf.mxu0
      %815 = vdwg.mxu0
      %v816 = vrcp.pop %v742
      %v817 = vrcp.pop %v745
      %v818 = vrcp.pop %v748
      %v819 = vmul.f32 %v771, %v816
      %v820 = vmul.f32 %v792, %v817
      %v821 = vmul.f32 %v813, %v818
      %v822 = vpack.c.bf16 %v820, %v819
      %v823 = vpack.c.bf16 %v821, %v821
      %v824 = vld [vmem:[%s6] sm:$0xf]
      %v826 = vunpack.c.l.b16 %v634
      %v827 = vpack.c.b16 %v826, %v826
      %828 = vrot.lane.b32.xlu0 %v827, 120
      %v829 = vpop.permute.xlu0 %828
      %830 = vrot.lane.b32.xlu0 %v651, 88
      %v831 = vpop.permute.xlu0 %830
      %v833 = vsel %vm654, %v829, 0
      %v836 = vsel %vm654, %v831, 0
      %838 = vmatpush.bf16.xpose.msra.mxu0 0
      %839 = vmatpush.bf16.xpose.msra.mxu0 0
      %840 = vmatpush.bf16.xpose.msra.mxu0 0
      %841 = vmatpush.bf16.xpose.msra.mxu0 0
      %842 = vmatpush.bf16.xpose.msra.mxu0 0
      %843 = vmatpush.bf16.xpose.msra.mxu0 0
      %844 = vmatpush.bf16.xpose.msra.mxu0 0
      %845 = vmatpush.bf16.xpose.msra.mxu0 %v836
      %846 = vmatmul.bf16.gmra.mxu0 %v833
      %v847 = vpop.f32.mrf.mxu0
      %v848 = vadd.f32 %v643, %v847
      %v849 = vpop.f32.mrf.mxu0
      %850 = vdwg.mxu0
      %v852 = vunpack.c.l.b16 %v635
      %v853 = vpack.c.b16 %v852, %v852
      %854 = vrot.lane.b32.xlu0 %v853, 120
      %v855 = vpop.permute.xlu0 %854
      %856 = vrot.lane.b32.xlu0 %v676, 88
      %v857 = vpop.permute.xlu0 %856
      %v859 = vsel %vm654, %v855, 0
      %v862 = vsel %vm654, %v857, 0
      %864 = vmatpush.bf16.xpose.msra.mxu0 0
      %865 = vmatpush.bf16.xpose.msra.mxu0 0
      %866 = vmatpush.bf16.xpose.msra.mxu0 0
      %867 = vmatpush.bf16.xpose.msra.mxu0 0
      %868 = vmatpush.bf16.xpose.msra.mxu0 0
      %869 = vmatpush.bf16.xpose.msra.mxu0 0
      %870 = vmatpush.bf16.xpose.msra.mxu0 0
      %871 = vmatpush.bf16.xpose.msra.mxu0 %v862
      %872 = vmatmul.bf16.gmra.mxu0 %v859
      %v873 = vpop.f32.mrf.mxu0
      %v874 = vadd.f32 %v644, %v873
      %v875 = vpop.f32.mrf.mxu0
      %876 = vdwg.mxu0
      %v878 = vunpack.c.l.b16 %v636
      %v879 = vpack.c.b16 %v878, %v878
      %880 = vrot.lane.b32.xlu0 %v879, 120
      %v881 = vpop.permute.xlu0 %880
      %882 = vrot.lane.b32.xlu0 %v700, 88
      %v883 = vpop.permute.xlu0 %882
      %v885 = vsel %vm654, %v881, 0
      %v888 = vsel %vm654, %v883, 0
      %890 = vmatpush.bf16.xpose.msra.mxu0 0
      %891 = vmatpush.bf16.xpose.msra.mxu0 0
      %892 = vmatpush.bf16.xpose.msra.mxu0 0
      %893 = vmatpush.bf16.xpose.msra.mxu0 0
      %894 = vmatpush.bf16.xpose.msra.mxu0 0
      %895 = vmatpush.bf16.xpose.msra.mxu0 0
      %896 = vmatpush.bf16.xpose.msra.mxu0 0
      %897 = vmatpush.bf16.xpose.msra.mxu0 %v888
      %898 = vmatmul.bf16.gmra.mxu0 %v885
      %v899 = vpop.f32.mrf.mxu0
      %v900 = vadd.f32 %v645, %v899
      %v901 = vpop.f32.mrf.mxu0
      %902 = vdwg.mxu0
      %v903 = vsel %vm654, %v848, -inf
      %904 = vmax.xlane.f32.xlu0 %v903
      %v905 = vpop.xlane.xlu0 %904
      %v906 = vsel %vm654, %v874, -inf
      %907 = vmax.xlane.f32.xlu0 %v906
      %v908 = vpop.xlane.xlu0 %907
      %v909 = vsel %vm654, %v900, -inf
      %910 = vmax.xlane.f32.xlu0 %v909
      %v911 = vpop.xlane.xlu0 %910
      %v912 = vsub.f32 %v848, %v905
      %v913 = vsub.f32 %v874, %v908
      %v914 = vsub.f32 %v900, %v911
      %v915 = vmul.f32 %v912, 1.442695
      %v916 = vpow.pop %v915
      %v917 = vmul.f32 %v913, 1.442695
      %v918 = vpow.pop %v917
      %v919 = vmul.f32 %v914, 1.442695
      %v920 = vpow.pop %v919
      %v921 = vsel %vm654, %v916, 0.0
      %922 = vadd.xlane.f32.xlu0 %v921
      %v923 = vpop.xlane.xlu0 %922
      %v924 = vsel %vm654, %v918, 0.0
      %925 = vadd.xlane.f32.xlu0 %v924
      %v926 = vpop.xlane.xlu0 %925
      %v927 = vsel %vm654, %v920, 0.0
      %928 = vadd.xlane.f32.xlu0 %v927
      %v929 = vpop.xlane.xlu0 %928
      %v930 = vpack.c.bf16 %v916, %v916
      %v931 = vpack.c.bf16 %v918, %v918
      %v932 = vpack.c.bf16 %v920, %v920
      %933 = vrot.lane.b32.xlu0 %v651, 56
      %v934 = vpop.permute.xlu0 %933
      %v936 = vsel %vm654, %v930, 0
      %v939 = vsel %vm757, %v934, 0
      %941 = vmatpush.bf16.msra.mxu0 0
      %942 = vmatpush.bf16.msra.mxu0 0
      %943 = vmatpush.bf16.msra.mxu0 0
      %944 = vmatpush.bf16.msra.mxu0 0
      %945 = vmatpush.bf16.msra.mxu0 0
      %946 = vmatpush.bf16.msra.mxu0 0
      %947 = vmatpush.bf16.msra.mxu0 0
      %948 = vmatpush.bf16.msra.mxu0 %v939
      %949 = vmatmul.bf16.gmra.mxu0 %v936
      %v950 = vpop.f32.mrf.mxu0
      %v951 = vadd.f32 0.0, %v950
      %v952 = vpop.f32.mrf.mxu0
      %953 = vdwg.mxu0
      %954 = vrot.lane.b32.xlu0 %v676, 56
      %v955 = vpop.permute.xlu0 %954
      %v957 = vsel %vm654, %v931, 0
      %v960 = vsel %vm757, %v955, 0
      %962 = vmatpush.bf16.msra.mxu0 0
      %963 = vmatpush.bf16.msra.mxu0 0
      %964 = vmatpush.bf16.msra.mxu0 0
      %965 = vmatpush.bf16.msra.mxu0 0
      %966 = vmatpush.bf16.msra.mxu0 0
      %967 = vmatpush.bf16.msra.mxu0 0
      %968 = vmatpush.bf16.msra.mxu0 0
      %969 = vmatpush.bf16.msra.mxu0 %v960
      %970 = vmatmul.bf16.gmra.mxu0 %v957
      %v971 = vpop.f32.mrf.mxu0
      %v972 = vadd.f32 0.0, %v971
      %v973 = vpop.f32.mrf.mxu0
      %974 = vdwg.mxu0
      %975 = vrot.lane.b32.xlu0 %v700, 56
      %v976 = vpop.permute.xlu0 %975
      %v978 = vsel %vm654, %v932, 0
      %v981 = vsel %vm757, %v976, 0
      %983 = vmatpush.bf16.msra.mxu0 0
      %984 = vmatpush.bf16.msra.mxu0 0
      %985 = vmatpush.bf16.msra.mxu0 0
      %986 = vmatpush.bf16.msra.mxu0 0
      %987 = vmatpush.bf16.msra.mxu0 0
      %988 = vmatpush.bf16.msra.mxu0 0
      %989 = vmatpush.bf16.msra.mxu0 0
      %990 = vmatpush.bf16.msra.mxu0 %v981
      %991 = vmatmul.bf16.gmra.mxu0 %v978
      %v992 = vpop.f32.mrf.mxu0
      %v993 = vadd.f32 0.0, %v992
      %v994 = vpop.f32.mrf.mxu0
      %995 = vdwg.mxu0
      %v996 = vrcp.pop %v923
      %v997 = vrcp.pop %v926
      %v998 = vrcp.pop %v929
      %v999 = vmul.f32 %v951, %v996
      %v1000 = vmul.f32 %v972, %v997
      %v1001 = vmul.f32 %v993, %v998
      %v1002 = vpack.c.bf16 %v1000, %v999
      %v1003 = vpack.c.bf16 %v1001, %v1001
      %s1004 = scalar_lea.vmem %s6, 4
      %v1005 = vld [vmem:[%s1004] sm:$0xf]
      %v1007 = vsel %vm654, %v1002, 0
      %v1010 = vsel %vm654, %v1003, 0
      %v1013 = vsel %vm757, %v1005, 0
      %1015 = vmatpush.bf16.msra.mxu0 0
      %1016 = vmatpush.bf16.msra.mxu0 0
      %1017 = vmatpush.bf16.msra.mxu0 0
      %1018 = vmatpush.bf16.msra.mxu0 0
      %1019 = vmatpush.bf16.msra.mxu0 0
      %1020 = vmatpush.bf16.msra.mxu0 0
      %1021 = vmatpush.bf16.msra.mxu0 0
      %1022 = vmatpush.bf16.msra.mxu0 %v1013
      %1023 = vmatmul.bf16.gmra.mxu0 %v1007
      %v1024 = vpop.f32.mrf.mxu0
      %v1025 = vadd.f32 0.0, %v1024
      %v1026 = vpop.f32.mrf.mxu0
      %v1027 = vadd.f32 0.0, %v1026
      %1028 = vmatmul.bf16.gmra.mxu0 %v1010
      %v1029 = vpop.f32.mrf.mxu0
      %v1030 = vadd.f32 0.0, %v1029
      %v1031 = vpop.f32.mrf.mxu0
      %1032 = vdwg.mxu0
      %v1034 = vsel %vm654, %v822, 0
      %v1037 = vsel %vm654, %v823, 0
      %v1040 = vsel %vm757, %v824, 0
      %1042 = vmatpush.bf16.msra.mxu0 0
      %1043 = vmatpush.bf16.msra.mxu0 0
      %1044 = vmatpush.bf16.msra.mxu0 0
      %1045 = vmatpush.bf16.msra.mxu0 0
      %1046 = vmatpush.bf16.msra.mxu0 0
      %1047 = vmatpush.bf16.msra.mxu0 0
      %1048 = vmatpush.bf16.msra.mxu0 0
      %1049 = vmatpush.bf16.msra.mxu0 %v1040
      %1050 = vmatmul.bf16.gmra.mxu0 %v1034
      %v1051 = vpop.f32.mrf.mxu0
      %v1052 = vadd.f32 %v1025, %v1051
      %v1053 = vpop.f32.mrf.mxu0
      %v1054 = vadd.f32 %v1027, %v1053
      %1055 = vmatmul.bf16.gmra.mxu0 %v1037
      %v1056 = vpop.f32.mrf.mxu0
      %v1057 = vadd.f32 %v1030, %v1056
      %v1058 = vpop.f32.mrf.mxu0
      %1059 = vdwg.mxu0
      %1060 = vrot.lane.b32.xlu0 %v827, 112
      %v1061 = vpop.permute.xlu0 %1060
      %1062 = vrot.lane.b32.xlu0 %v651, 80
      %v1063 = vpop.permute.xlu0 %1062
      %v1065 = vsel %vm654, %v1061, 0
      %v1068 = vsel %vm654, %v1063, 0
      %1070 = vmatpush.bf16.xpose.msra.mxu0 0
      %1071 = vmatpush.bf16.xpose.msra.mxu0 0
      %1072 = vmatpush.bf16.xpose.msra.mxu0 0
      %1073 = vmatpush.bf16.xpose.msra.mxu0 0
      %1074 = vmatpush.bf16.xpose.msra.mxu0 0
      %1075 = vmatpush.bf16.xpose.msra.mxu0 0
      %1076 = vmatpush.bf16.xpose.msra.mxu0 0
      %1077 = vmatpush.bf16.xpose.msra.mxu0 %v1068
      %1078 = vmatmul.bf16.gmra.mxu0 %v1065
      %v1079 = vpop.f32.mrf.mxu0
      %v1080 = vadd.f32 %v643, %v1079
      %v1081 = vpop.f32.mrf.mxu0
      %1082 = vdwg.mxu0
      %1083 = vrot.lane.b32.xlu0 %v853, 112
      %v1084 = vpop.permute.xlu0 %1083
      %1085 = vrot.lane.b32.xlu0 %v676, 80
      %v1086 = vpop.permute.xlu0 %1085
      %v1088 = vsel %vm654, %v1084, 0
      %v1091 = vsel %vm654, %v1086, 0
      %1093 = vmatpush.bf16.xpose.msra.mxu0 0
      %1094 = vmatpush.bf16.xpose.msra.mxu0 0
      %1095 = vmatpush.bf16.xpose.msra.mxu0 0
      %1096 = vmatpush.bf16.xpose.msra.mxu0 0
      %1097 = vmatpush.bf16.xpose.msra.mxu0 0
      %1098 = vmatpush.bf16.xpose.msra.mxu0 0
      %1099 = vmatpush.bf16.xpose.msra.mxu0 0
      %1100 = vmatpush.bf16.xpose.msra.mxu0 %v1091
      %1101 = vmatmul.bf16.gmra.mxu0 %v1088
      %v1102 = vpop.f32.mrf.mxu0
      %v1103 = vadd.f32 %v644, %v1102
      %v1104 = vpop.f32.mrf.mxu0
      %1105 = vdwg.mxu0
      %1106 = vrot.lane.b32.xlu0 %v879, 112
      %v1107 = vpop.permute.xlu0 %1106
      %1108 = vrot.lane.b32.xlu0 %v700, 80
      %v1109 = vpop.permute.xlu0 %1108
      %v1111 = vsel %vm654, %v1107, 0
      %v1114 = vsel %vm654, %v1109, 0
      %1116 = vmatpush.bf16.xpose.msra.mxu0 0
      %1117 = vmatpush.bf16.xpose.msra.mxu0 0
      %1118 = vmatpush.bf16.xpose.msra.mxu0 0
      %1119 = vmatpush.bf16.xpose.msra.mxu0 0
      %1120 = vmatpush.bf16.xpose.msra.mxu0 0
      %1121 = vmatpush.bf16.xpose.msra.mxu0 0
      %1122 = vmatpush.bf16.xpose.msra.mxu0 0
      %1123 = vmatpush.bf16.xpose.msra.mxu0 %v1114
      %1124 = vmatmul.bf16.gmra.mxu0 %v1111
      %v1125 = vpop.f32.mrf.mxu0
      %v1126 = vadd.f32 %v645, %v1125
      %v1127 = vpop.f32.mrf.mxu0
      %1128 = vdwg.mxu0
      %v1129 = vsel %vm654, %v1080, -inf
      %1130 = vmax.xlane.f32.xlu0 %v1129
      %v1131 = vpop.xlane.xlu0 %1130
      %v1132 = vsel %vm654, %v1103, -inf
      %1133 = vmax.xlane.f32.xlu0 %v1132
      %v1134 = vpop.xlane.xlu0 %1133
      %v1135 = vsel %vm654, %v1126, -inf
      %1136 = vmax.xlane.f32.xlu0 %v1135
      %v1137 = vpop.xlane.xlu0 %1136
      %v1138 = vsub.f32 %v1080, %v1131
      %v1139 = vsub.f32 %v1103, %v1134
      %v1140 = vsub.f32 %v1126, %v1137
      %v1141 = vmul.f32 %v1138, 1.442695
      %v1142 = vpow.pop %v1141
      %v1143 = vmul.f32 %v1139, 1.442695
      %v1144 = vpow.pop %v1143
      %v1145 = vmul.f32 %v1140, 1.442695
      %v1146 = vpow.pop %v1145
      %v1147 = vsel %vm654, %v1142, 0.0
      %1148 = vadd.xlane.f32.xlu0 %v1147
      %v1149 = vpop.xlane.xlu0 %1148
      %v1150 = vsel %vm654, %v1144, 0.0
      %1151 = vadd.xlane.f32.xlu0 %v1150
      %v1152 = vpop.xlane.xlu0 %1151
      %v1153 = vsel %vm654, %v1146, 0.0
      %1154 = vadd.xlane.f32.xlu0 %v1153
      %v1155 = vpop.xlane.xlu0 %1154
      %v1156 = vpack.c.bf16 %v1142, %v1142
      %v1157 = vpack.c.bf16 %v1144, %v1144
      %v1158 = vpack.c.bf16 %v1146, %v1146
      %1159 = vrot.lane.b32.xlu0 %v651, 48
      %v1160 = vpop.permute.xlu0 %1159
      %v1162 = vsel %vm654, %v1156, 0
      %v1165 = vsel %vm757, %v1160, 0
      %1167 = vmatpush.bf16.msra.mxu0 0
      %1168 = vmatpush.bf16.msra.mxu0 0
      %1169 = vmatpush.bf16.msra.mxu0 0
      %1170 = vmatpush.bf16.msra.mxu0 0
      %1171 = vmatpush.bf16.msra.mxu0 0
      %1172 = vmatpush.bf16.msra.mxu0 0
      %1173 = vmatpush.bf16.msra.mxu0 0
      %1174 = vmatpush.bf16.msra.mxu0 %v1165
      %1175 = vmatmul.bf16.gmra.mxu0 %v1162
      %v1176 = vpop.f32.mrf.mxu0
      %v1177 = vadd.f32 0.0, %v1176
      %v1178 = vpop.f32.mrf.mxu0
      %1179 = vdwg.mxu0
      %1180 = vrot.lane.b32.xlu0 %v676, 48
      %v1181 = vpop.permute.xlu0 %1180
      %v1183 = vsel %vm654, %v1157, 0
      %v1186 = vsel %vm757, %v1181, 0
      %1188 = vmatpush.bf16.msra.mxu0 0
      %1189 = vmatpush.bf16.msra.mxu0 0
      %1190 = vmatpush.bf16.msra.mxu0 0
      %1191 = vmatpush.bf16.msra.mxu0 0
      %1192 = vmatpush.bf16.msra.mxu0 0
      %1193 = vmatpush.bf16.msra.mxu0 0
      %1194 = vmatpush.bf16.msra.mxu0 0
      %1195 = vmatpush.bf16.msra.mxu0 %v1186
      %1196 = vmatmul.bf16.gmra.mxu0 %v1183
      %v1197 = vpop.f32.mrf.mxu0
      %v1198 = vadd.f32 0.0, %v1197
      %v1199 = vpop.f32.mrf.mxu0
      %1200 = vdwg.mxu0
      %1201 = vrot.lane.b32.xlu0 %v700, 48
      %v1202 = vpop.permute.xlu0 %1201
      %v1204 = vsel %vm654, %v1158, 0
      %v1207 = vsel %vm757, %v1202, 0
      %1209 = vmatpush.bf16.msra.mxu0 0
      %1210 = vmatpush.bf16.msra.mxu0 0
      %1211 = vmatpush.bf16.msra.mxu0 0
      %1212 = vmatpush.bf16.msra.mxu0 0
      %1213 = vmatpush.bf16.msra.mxu0 0
      %1214 = vmatpush.bf16.msra.mxu0 0
      %1215 = vmatpush.bf16.msra.mxu0 0
      %1216 = vmatpush.bf16.msra.mxu0 %v1207
      %1217 = vmatmul.bf16.gmra.mxu0 %v1204
      %v1218 = vpop.f32.mrf.mxu0
      %v1219 = vadd.f32 0.0, %v1218
      %v1220 = vpop.f32.mrf.mxu0
      %1221 = vdwg.mxu0
      %v1222 = vrcp.pop %v1149
      %v1223 = vrcp.pop %v1152
      %v1224 = vrcp.pop %v1155
      %v1225 = vmul.f32 %v1177, %v1222
      %v1226 = vmul.f32 %v1198, %v1223
      %v1227 = vmul.f32 %v1219, %v1224
      %v1228 = vpack.c.bf16 %v1226, %v1225
      %v1229 = vpack.c.bf16 %v1227, %v1227
      %s1230 = scalar_lea.vmem %s6, 8
      %v1231 = vld [vmem:[%s1230] sm:$0xf]
      %v1233 = vsel %vm654, %v1228, 0
      %v1236 = vsel %vm654, %v1229, 0
      %v1239 = vsel %vm757, %v1231, 0
      %1241 = vmatpush.bf16.msra.mxu0 0
      %1242 = vmatpush.bf16.msra.mxu0 0
      %1243 = vmatpush.bf16.msra.mxu0 0
      %1244 = vmatpush.bf16.msra.mxu0 0
      %1245 = vmatpush.bf16.msra.mxu0 0
      %1246 = vmatpush.bf16.msra.mxu0 0
      %1247 = vmatpush.bf16.msra.mxu0 0
      %1248 = vmatpush.bf16.msra.mxu0 %v1239
      %1249 = vmatmul.bf16.gmra.mxu0 %v1233
      %v1250 = vpop.f32.mrf.mxu0
      %v1251 = vadd.f32 0.0, %v1250
      %v1252 = vpop.f32.mrf.mxu0
      %v1253 = vadd.f32 0.0, %v1252
      %1254 = vmatmul.bf16.gmra.mxu0 %v1236
      %v1255 = vpop.f32.mrf.mxu0
      %v1256 = vadd.f32 0.0, %v1255
      %v1257 = vpop.f32.mrf.mxu0
      %1258 = vdwg.mxu0
      %v1259 = vadd.f32 %v1052, %v1251
      %v1260 = vadd.f32 %v1054, %v1253
      %v1261 = vadd.f32 %v1057, %v1256
      %1262 = vrot.lane.b32.xlu0 %v827, 104
      %v1263 = vpop.permute.xlu0 %1262
      %1264 = vrot.lane.b32.xlu0 %v651, 72
      %v1265 = vpop.permute.xlu0 %1264
      %v1267 = vsel %vm654, %v1263, 0
      %v1270 = vsel %vm654, %v1265, 0
      %1272 = vmatpush.bf16.xpose.msra.mxu0 0
      %1273 = vmatpush.bf16.xpose.msra.mxu0 0
      %1274 = vmatpush.bf16.xpose.msra.mxu0 0
      %1275 = vmatpush.bf16.xpose.msra.mxu0 0
      %1276 = vmatpush.bf16.xpose.msra.mxu0 0
      %1277 = vmatpush.bf16.xpose.msra.mxu0 0
      %1278 = vmatpush.bf16.xpose.msra.mxu0 0
      %1279 = vmatpush.bf16.xpose.msra.mxu0 %v1270
      %1280 = vmatmul.bf16.gmra.mxu0 %v1267
      %v1281 = vpop.f32.mrf.mxu0
      %v1282 = vadd.f32 %v643, %v1281
      %v1283 = vpop.f32.mrf.mxu0
      %1284 = vdwg.mxu0
      %1285 = vrot.lane.b32.xlu0 %v853, 104
      %v1286 = vpop.permute.xlu0 %1285
      %1287 = vrot.lane.b32.xlu0 %v676, 72
      %v1288 = vpop.permute.xlu0 %1287
      %v1290 = vsel %vm654, %v1286, 0
      %v1293 = vsel %vm654, %v1288, 0
      %1295 = vmatpush.bf16.xpose.msra.mxu0 0
      %1296 = vmatpush.bf16.xpose.msra.mxu0 0
      %1297 = vmatpush.bf16.xpose.msra.mxu0 0
      %1298 = vmatpush.bf16.xpose.msra.mxu0 0
      %1299 = vmatpush.bf16.xpose.msra.mxu0 0
      %1300 = vmatpush.bf16.xpose.msra.mxu0 0
      %1301 = vmatpush.bf16.xpose.msra.mxu0 0
      %1302 = vmatpush.bf16.xpose.msra.mxu0 %v1293
      %1303 = vmatmul.bf16.gmra.mxu0 %v1290
      %v1304 = vpop.f32.mrf.mxu0
      %v1305 = vadd.f32 %v644, %v1304
      %v1306 = vpop.f32.mrf.mxu0
      %1307 = vdwg.mxu0
      %1308 = vrot.lane.b32.xlu0 %v879, 104
      %v1309 = vpop.permute.xlu0 %1308
      %1310 = vrot.lane.b32.xlu0 %v700, 72
      %v1311 = vpop.permute.xlu0 %1310
      %v1313 = vsel %vm654, %v1309, 0
      %v1316 = vsel %vm654, %v1311, 0
      %1318 = vmatpush.bf16.xpose.msra.mxu0 0
      %1319 = vmatpush.bf16.xpose.msra.mxu0 0
      %1320 = vmatpush.bf16.xpose.msra.mxu0 0
      %1321 = vmatpush.bf16.xpose.msra.mxu0 0
      %1322 = vmatpush.bf16.xpose.msra.mxu0 0
      %1323 = vmatpush.bf16.xpose.msra.mxu0 0
      %1324 = vmatpush.bf16.xpose.msra.mxu0 0
      %1325 = vmatpush.bf16.xpose.msra.mxu0 %v1316
      %1326 = vmatmul.bf16.gmra.mxu0 %v1313
      %v1327 = vpop.f32.mrf.mxu0
      %v1328 = vadd.f32 %v645, %v1327
      %v1329 = vpop.f32.mrf.mxu0
      %1330 = vdwg.mxu0
      %v1331 = vsel %vm654, %v1282, -inf
      %1332 = vmax.xlane.f32.xlu0 %v1331
      %v1333 = vpop.xlane.xlu0 %1332
      %v1334 = vsel %vm654, %v1305, -inf
      %1335 = vmax.xlane.f32.xlu0 %v1334
      %v1336 = vpop.xlane.xlu0 %1335
      %v1337 = vsel %vm654, %v1328, -inf
      %1338 = vmax.xlane.f32.xlu0 %v1337
      %v1339 = vpop.xlane.xlu0 %1338
      %v1340 = vsub.f32 %v1282, %v1333
      %v1341 = vsub.f32 %v1305, %v1336
      %v1342 = vsub.f32 %v1328, %v1339
      %v1343 = vmul.f32 %v1340, 1.442695
      %v1344 = vpow.pop %v1343
      %v1345 = vmul.f32 %v1341, 1.442695
      %v1346 = vpow.pop %v1345
      %v1347 = vmul.f32 %v1342, 1.442695
      %v1348 = vpow.pop %v1347
      %v1349 = vsel %vm654, %v1344, 0.0
      %1350 = vadd.xlane.f32.xlu0 %v1349
      %v1351 = vpop.xlane.xlu0 %1350
      %v1352 = vsel %vm654, %v1346, 0.0
      %1353 = vadd.xlane.f32.xlu0 %v1352
      %v1354 = vpop.xlane.xlu0 %1353
      %v1355 = vsel %vm654, %v1348, 0.0
      %1356 = vadd.xlane.f32.xlu0 %v1355
      %v1357 = vpop.xlane.xlu0 %1356
      %v1358 = vpack.c.bf16 %v1344, %v1344
      %v1359 = vpack.c.bf16 %v1346, %v1346
      %v1360 = vpack.c.bf16 %v1348, %v1348
      %1361 = vrot.lane.b32.xlu0 %v651, 40
      %v1362 = vpop.permute.xlu0 %1361
      %v1364 = vsel %vm654, %v1358, 0
      %v1367 = vsel %vm757, %v1362, 0
      %1369 = vmatpush.bf16.msra.mxu0 0
      %1370 = vmatpush.bf16.msra.mxu0 0
      %1371 = vmatpush.bf16.msra.mxu0 0
      %1372 = vmatpush.bf16.msra.mxu0 0
      %1373 = vmatpush.bf16.msra.mxu0 0
      %1374 = vmatpush.bf16.msra.mxu0 0
      %1375 = vmatpush.bf16.msra.mxu0 0
      %1376 = vmatpush.bf16.msra.mxu0 %v1367
      %1377 = vmatmul.bf16.gmra.mxu0 %v1364
      %v1378 = vpop.f32.mrf.mxu0
      %v1379 = vadd.f32 0.0, %v1378
      %v1380 = vpop.f32.mrf.mxu0
      %1381 = vdwg.mxu0
      %1382 = vrot.lane.b32.xlu0 %v676, 40
      %v1383 = vpop.permute.xlu0 %1382
      %v1385 = vsel %vm654, %v1359, 0
      %v1388 = vsel %vm757, %v1383, 0
      %1390 = vmatpush.bf16.msra.mxu0 0
      %1391 = vmatpush.bf16.msra.mxu0 0
      %1392 = vmatpush.bf16.msra.mxu0 0
      %1393 = vmatpush.bf16.msra.mxu0 0
      %1394 = vmatpush.bf16.msra.mxu0 0
      %1395 = vmatpush.bf16.msra.mxu0 0
      %1396 = vmatpush.bf16.msra.mxu0 0
      %1397 = vmatpush.bf16.msra.mxu0 %v1388
      %1398 = vmatmul.bf16.gmra.mxu0 %v1385
      %v1399 = vpop.f32.mrf.mxu0
      %v1400 = vadd.f32 0.0, %v1399
      %v1401 = vpop.f32.mrf.mxu0
      %1402 = vdwg.mxu0
      %1403 = vrot.lane.b32.xlu0 %v700, 40
      %v1404 = vpop.permute.xlu0 %1403
      %v1406 = vsel %vm654, %v1360, 0
      %v1409 = vsel %vm757, %v1404, 0
      %1411 = vmatpush.bf16.msra.mxu0 0
      %1412 = vmatpush.bf16.msra.mxu0 0
      %1413 = vmatpush.bf16.msra.mxu0 0
      %1414 = vmatpush.bf16.msra.mxu0 0
      %1415 = vmatpush.bf16.msra.mxu0 0
      %1416 = vmatpush.bf16.msra.mxu0 0
      %1417 = vmatpush.bf16.msra.mxu0 0
      %1418 = vmatpush.bf16.msra.mxu0 %v1409
      %1419 = vmatmul.bf16.gmra.mxu0 %v1406
      %v1420 = vpop.f32.mrf.mxu0
      %v1421 = vadd.f32 0.0, %v1420
      %v1422 = vpop.f32.mrf.mxu0
      %1423 = vdwg.mxu0
      %v1424 = vrcp.pop %v1351
      %v1425 = vrcp.pop %v1354
      %v1426 = vrcp.pop %v1357
      %v1427 = vmul.f32 %v1379, %v1424
      %v1428 = vmul.f32 %v1400, %v1425
      %v1429 = vmul.f32 %v1421, %v1426
      %v1430 = vpack.c.bf16 %v1428, %v1427
      %v1431 = vpack.c.bf16 %v1429, %v1429
      %s1432 = scalar_lea.vmem %s6, 12
      %v1433 = vld [vmem:[%s1432] sm:$0xf]
      %v1435 = vsel %vm654, %v1430, 0
      %v1438 = vsel %vm654, %v1431, 0
      %v1441 = vsel %vm757, %v1433, 0
      %1443 = vmatpush.bf16.msra.mxu0 0
      %1444 = vmatpush.bf16.msra.mxu0 0
      %1445 = vmatpush.bf16.msra.mxu0 0
      %1446 = vmatpush.bf16.msra.mxu0 0
      %1447 = vmatpush.bf16.msra.mxu0 0
      %1448 = vmatpush.bf16.msra.mxu0 0
      %1449 = vmatpush.bf16.msra.mxu0 0
      %1450 = vmatpush.bf16.msra.mxu0 %v1441
      %1451 = vmatmul.bf16.gmra.mxu0 %v1435
      %v1452 = vpop.f32.mrf.mxu0
      %v1453 = vadd.f32 0.0, %v1452
      %v1454 = vpop.f32.mrf.mxu0
      %v1455 = vadd.f32 0.0, %v1454
      %1456 = vmatmul.bf16.gmra.mxu0 %v1438
      %v1457 = vpop.f32.mrf.mxu0
      %v1458 = vadd.f32 0.0, %v1457
      %v1459 = vpop.f32.mrf.mxu0
      %1460 = vdwg.mxu0
      %v1461 = vadd.f32 %v1259, %v1453
      %v1462 = vadd.f32 %v1260, %v1455
      %v1463 = vadd.f32 %v1261, %v1458
      %v1464 = vld [vmem:[%s7] sm:$0x1]
      %v1466 = vperm.slane %v1464, 0
      %v1468 = vadd.f32 %v1461, %v1466
      %v1469 = vadd.f32 %v1462, %v1466
      %v1470 = vadd.f32 %v1463, %v1466
      %v1471 = vadd.f32 %v1468, %v491
      %v1472 = vadd.f32 %v1469, %v492
      %v1473 = vadd.f32 %v1470, %v493
      %v1474 = vpack.c.bf16 %v1472, %v1471
      %v1475 = vpack.c.bf16 %v1473, %v1473
      %v1476 = vld [vmem:[%s8] sm:$0xf]
      %v1477 = vld [vmem:[%s8 + $0x4] sm:$0xf]
      %v1478 = vld [vmem:[%s8 + $0x8] sm:$0xf]
      %v1479 = vld [vmem:[%s8 + $0xc] sm:$0xf]
      %v1480 = vld [vmem:[%s9] sm:$0x1]
      %v1482 = vperm.slane %v1480, 0
      %v1488 = vunpack.c.l.b16 %v1476
      %v1489 = vunpack.c.l.b16 %v1477
      %v1490 = vunpack.c.l.b16 %v1478
      %v1491 = vunpack.c.l.b16 %v1479
      %v1492 = vpack.c.b16 %v1489, %v1488
      %v1493 = vpack.c.b16 %v1491, %v1490
      %v1497 = vsel %vm496, %v1474, 0
      %v1500 = vsel %vm496, %v1475, 0
      %1502 = vmatpush.bf16.msra.mxu0 0
      %1503 = vmatpush.bf16.msra.mxu0 0
      %1504 = vmatpush.bf16.msra.mxu0 0
      %1505 = vmatpush.bf16.msra.mxu0 0
      %1506 = vmatpush.bf16.msra.mxu0 0
      %1507 = vmatpush.bf16.msra.mxu0 0
      %1508 = vmatpush.bf16.msra.mxu0 %v1493
      %1509 = vmatpush.bf16.msra.mxu0 %v1492
      %1510 = vmatmul.bf16.gmra.mxu0 %v1497
      %v1511 = vpop.f32.mrf.mxu0
      %v1512 = vadd.f32 %v1482, %v1511
      %v1513 = vpop.f32.mrf.mxu0
      %v1514 = vadd.f32 %v1482, %v1513
      %1515 = vmatmul.bf16.gmra.mxu0 %v1500
      %v1516 = vpop.f32.mrf.mxu0
      %v1517 = vadd.f32 %v1482, %v1516
      %v1518 = vpop.f32.mrf.mxu0
      %1519 = vdwg.mxu0
      %v1520 = vmax.f32 %v1512, 0.0
      %v1521 = vmax.f32 %v1514, 0.0
      %v1522 = vmax.f32 %v1517, 0.0
      %v1523 = vpack.c.bf16 %v1521, %v1520
      %v1524 = vpack.c.bf16 %v1522, %v1522
      %v1525 = vld [vmem:[%s10] sm:$0xf]
      %v1526 = vld [vmem:[%s10 + $0x4] sm:$0xf]
      %v1527 = vld [vmem:[%s10 + $0x8] sm:$0xf]
      %v1528 = vld [vmem:[%s10 + $0xc] sm:$0xf]
      %v1529 = vld [vmem:[%s10 + $0x10] sm:$0xf]
      %v1530 = vld [vmem:[%s10 + $0x14] sm:$0xf]
      %v1531 = vld [vmem:[%s10 + $0x18] sm:$0xf]
      %v1532 = vld [vmem:[%s10 + $0x1c] sm:$0xf]
      %v1533 = vld [vmem:[%s10 + $0x20] sm:$0xf]
      %v1534 = vld [vmem:[%s10 + $0x24] sm:$0xf]
      %v1535 = vld [vmem:[%s10 + $0x28] sm:$0xf]
      %v1536 = vld [vmem:[%s10 + $0x2c] sm:$0xf]
      %v1537 = vld [vmem:[%s10 + $0x30] sm:$0xf]
      %v1538 = vld [vmem:[%s10 + $0x34] sm:$0xf]
      %v1539 = vld [vmem:[%s10 + $0x38] sm:$0xf]
      %v1540 = vld [vmem:[%s10 + $0x3c] sm:$0xf]
      %v1541 = vld [vmem:[%s11] sm:$0x1]
      %v1543 = vperm.slane %v1541, 0
      %v1561 = vunpack.c.l.b16 %v1525
      %v1562 = vunpack.c.l.b16 %v1526
      %v1563 = vunpack.c.l.b16 %v1527
      %v1564 = vunpack.c.l.b16 %v1528
      %v1565 = vunpack.c.l.b16 %v1529
      %v1566 = vunpack.c.l.b16 %v1530
      %v1567 = vunpack.c.l.b16 %v1531
      %v1568 = vunpack.c.l.b16 %v1532
      %v1569 = vunpack.c.l.b16 %v1533
      %v1570 = vunpack.c.l.b16 %v1534
      %v1571 = vunpack.c.l.b16 %v1535
      %v1572 = vunpack.c.l.b16 %v1536
      %v1573 = vunpack.c.l.b16 %v1537
      %v1574 = vunpack.c.l.b16 %v1538
      %v1575 = vunpack.c.l.b16 %v1539
      %v1576 = vunpack.c.l.b16 %v1540
      %v1577 = vpack.c.b16 %v1562, %v1561
      %v1578 = vpack.c.b16 %v1564, %v1563
      %v1579 = vpack.c.b16 %v1566, %v1565
      %v1580 = vpack.c.b16 %v1568, %v1567
      %v1581 = vpack.c.b16 %v1570, %v1569
      %v1582 = vpack.c.b16 %v1572, %v1571
      %v1583 = vpack.c.b16 %v1574, %v1573
      %v1584 = vpack.c.b16 %v1576, %v1575
      %1593 = vmatpush.bf16.msra.mxu0 %v1584
      %1594 = vmatpush.bf16.msra.mxu0 %v1583
      %1595 = vmatpush.bf16.msra.mxu0 %v1582
      %1596 = vmatpush.bf16.msra.mxu0 %v1581
      %1597 = vmatpush.bf16.msra.mxu0 %v1580
      %1598 = vmatpush.bf16.msra.mxu0 %v1579
      %1599 = vmatpush.bf16.msra.mxu0 %v1578
      %1600 = vmatpush.bf16.msra.mxu0 %v1577
      %1601 = vmatmul.bf16.gmra.mxu0 %v1523
      %v1602 = vpop.f32.mrf.mxu0
      %v1603 = vadd.f32 %v1543, %v1602
      %v1604 = vpop.f32.mrf.mxu0
      %v1605 = vadd.f32 %v1543, %v1604
      %1606 = vmatmul.bf16.gmra.mxu0 %v1524
      %v1607 = vpop.f32.mrf.mxu0
      %v1608 = vadd.f32 %v1543, %v1607
      %v1609 = vpop.f32.mrf.mxu0
      %1610 = vdwg.mxu0
      %v1611 = vmax.f32 %v1603, 0.0
      %v1612 = vmax.f32 %v1605, 0.0
      %v1613 = vmax.f32 %v1608, 0.0
      %v1614 = vld [vmem:[%s12] sm:$0x1]
      %v1615 = vld [vmem:[%s13] sm:$0x1]
      %v1616 = vsel %vm496, %v1611, 0.0
      %1617 = vadd.xlane.f32.xlu0 %v1616
      %v1618 = vpop.xlane.xlu0 %1617
      %v1619 = vsel %vm496, %v1612, 0.0
      %1620 = vadd.xlane.f32.xlu0 %v1619
      %v1621 = vpop.xlane.xlu0 %1620
      %v1622 = vsel %vm496, %v1613, 0.0
      %1623 = vadd.xlane.f32.xlu0 %v1622
      %v1624 = vpop.xlane.xlu0 %1623
      %v1625 = vmul.f32 %v1618, %v512
      %v1626 = vmul.f32 %v1621, %v512
      %v1627 = vmul.f32 %v1624, %v512
      %v1628 = vsub.f32 %v1611, %v1625
      %v1629 = vsub.f32 %v1612, %v1626
      %v1630 = vsub.f32 %v1613, %v1627
      %v1631 = vmul.f32 %v1628, %v1628
      %v1632 = vmul.f32 %v1629, %v1629
      %v1633 = vmul.f32 %v1630, %v1630
      %v1634 = vsel %vm496, %v1631, 0.0
      %1635 = vadd.xlane.f32.xlu0 %v1634
      %v1636 = vpop.xlane.xlu0 %1635
      %v1637 = vsel %vm496, %v1632, 0.0
      %1638 = vadd.xlane.f32.xlu0 %v1637
      %v1639 = vpop.xlane.xlu0 %1638
      %v1640 = vsel %vm496, %v1633, 0.0
      %1641 = vadd.xlane.f32.xlu0 %v1640
      %v1642 = vpop.xlane.xlu0 %1641
      %v1643 = vmul.f32 %v1636, %v512
      %v1644 = vmul.f32 %v1639, %v512
      %v1645 = vmul.f32 %v1642, %v512
      %v1646 = vadd.f32 %v1643, 1e-05
      %v1647 = vadd.f32 %v1644, 1e-05
      %v1648 = vadd.f32 %v1645, 1e-05
      %v1649 = vrsqrt.pop %v1646
      %v1650 = vmul.f32 %v1649, %v1646
      %v1651 = vmul.f32 %v1650, %v1649
      %v1652 = vmul.f32 0.5, %v1651
      %v1653 = vsub.f32 1.5, %v1652
      %v1654 = vmul.f32 %v1649, %v1653
      %vm1655 = vweird.f32 %v1646
      %vm1656 = vweird.f32 %v1649
      %vm1657 = vmor %vm1655, %vm1656
      %v1658 = vsel %vm1657, %v1649, %v1654
      %v1659 = vrsqrt.pop %v1647
      %v1660 = vmul.f32 %v1659, %v1647
      %v1661 = vmul.f32 %v1660, %v1659
      %v1662 = vmul.f32 0.5, %v1661
      %v1663 = vsub.f32 1.5, %v1662
      %v1664 = vmul.f32 %v1659, %v1663
      %vm1665 = vweird.f32 %v1647
      %vm1666 = vweird.f32 %v1659
      %vm1667 = vmor %vm1665, %vm1666
      %v1668 = vsel %vm1667, %v1659, %v1664
      %v1669 = vrsqrt.pop %v1648
      %v1670 = vmul.f32 %v1669, %v1648
      %v1671 = vmul.f32 %v1670, %v1669
      %v1672 = vmul.f32 0.5, %v1671
      %v1673 = vsub.f32 1.5, %v1672
      %v1674 = vmul.f32 %v1669, %v1673
      %vm1675 = vweird.f32 %v1648
      %vm1676 = vweird.f32 %v1669
      %vm1677 = vmor %vm1675, %vm1676
      %v1678 = vsel %vm1677, %v1669, %v1674
      %v1679 = vmul.f32 %v1628, %v1658
      %v1680 = vmul.f32 %v1629, %v1668
      %v1681 = vmul.f32 %v1630, %v1678
      %v1683 = vperm.slane %v1614, 0
      %v1685 = vmul.f32 %v1679, %v1683
      %v1686 = vmul.f32 %v1680, %v1683
      %v1687 = vmul.f32 %v1681, %v1683
      %v1689 = vperm.slane %v1615, 0
      %v1691 = vadd.f32 %v1685, %v1689
      %v1692 = vadd.f32 %v1686, %v1689
      %v1693 = vadd.f32 %v1687, %v1689
      %1694 = vst.msk [vmem:[%s488] sm:$0xff] %vm496, %v1691
      %1695 = vst.msk [vmem:[%s488 + $0x8] sm:$0xff] %vm496, %v1692
      %1696 = vst.msk [vmem:[%s488 + $0x10] sm:$0xff] %vm496, %v1693
      %s1697 = smul.u32 3, %s25
      %p1698 = scmp.lt.s32.totalorder %s1697, 5
      %s1699 = scalar_select %p1698, %s1697, 5
      %s1700 = smul.addr %s1699, 8
      %s1701 = scalar_lea.vmem %s14, %s1700
      // Predicated region
      $region77: #{tpu_custom_call.1} parent=75 // pred_check
        %p1702 = pneg %p347
      $region78: #{tpu_custom_call.1} parent=75 // pred_check_branch
        %1704 = sbr.rel (%p1702) target = $region80
      $region79: #{tpu_custom_call.1} parent=75 // pred_region
        %s1705 = smul.u32 3, %s25
      $region80: #{tpu_custom_call.1} parent=75 // pred_fallthru
        _
    $region76: #{tpu_custom_call.1} parent=5 // pred_fallthru
      _
    %p1706 = scmp.le.s32.totalorder 2, %s20
    // Predicated region
    $region81: #{tpu_custom_call.1} parent=5 // pred_check
      %p1707 = pneg %p1706
    $region82: #{tpu_custom_call.1} parent=5 // pred_check_branch
      %1709 = sbr.rel (%p1707) target = $region84
    $region83: #{tpu_custom_call.1} parent=5 // pred_region
      %s1710 = ssub.s32 %s20, 2
      // Predicated region
      $region85: #{tpu_custom_call.1} parent=83 // pred_check
        %p1711 = pneg %p353
      $region86: #{tpu_custom_call.1} parent=83 // pred_check_branch
        %1713 = sbr.rel (%p1711) target = $region88
      $region87: #{tpu_custom_call.1} parent=83 // pred_region
        %s1714 = smul.u32 3, %s26
        %p1715 = scmp.lt.s32.totalorder %s1714, 5
        %s1716 = scalar_select %p1715, %s1714, 5
        %s1717 = smul.addr %s1716, 8
        %s1718 = scalar_lea.vmem %s14, %s1717
      $region88: #{tpu_custom_call.1} parent=83 // pred_fallthru
        _
    $region84: #{tpu_custom_call.1} parent=5 // pred_fallthru
      _
  $region6: #{tpu_custom_call.1} parent=0 // loop_footer
    %s24 = sadd.s32 1, %s20
  $region7: #{tpu_custom_call.1} parent=0 // loop_footer_branch
    %19 = sbr.rel target = $region3
  $region8: #{tpu_custom_call.1} parent=0 // loop_exit
    _

</llo_original>
